<compile_context>
chip_gen: v7x
topology: tpu7x:2x2x1
jax: 0.10.0
libtpu: 0.0.40
codegen_flags: <defaults>
</compile_context>

<pallas_src>
import functools

import jax
import jax.numpy as jnp
from jax.experimental import pallas as pl
from jax.experimental.pallas import tpu as pltpu


# --------------------------------- kernel -----------------------------------

def _lstm_kernel(x_ref, wih_hbm, whh_hbm, bias_ref,            # inputs
                 y_ref, cn_ref,                                # outputs
                 wih_vmem, whh_vmem, gx_sc, h_sc, c_sc, dma_sem,   # scratch
                 *, t_blk, seq_len, hidden, needs_mask, unroll):
    """One grid step = one (batch-block, time-chunk) tile.

    x_ref   : (t_blk, b_blk, I)  f32   input chunk
    wih_hbm : (I, 4H) bf16  ANY/HBM    input weights (transposed)
    whh_hbm : (H, 4H) bf16  ANY/HBM    recurrent weights (transposed)
    bias_ref: (1, 4H) f32              b_ih + b_hh
    y_ref   : (t_blk, b_blk, H)        hidden outputs for this chunk
    cn_ref  : (b_blk, H)               final cell state for this batch block
    wih_vmem/whh_vmem : single-buffered VMEM weight copies (persist over grid)
    gx_sc   : (t_blk, b_blk, 4H) f32   per-chunk input projection
    h_sc    : (b_blk, H) bf16          hidden carry (bf16 MXU LHS)
    c_sc    : (b_blk, H) f32           cell carry
    """
    chunk = pl.program_id(1)
    b_blk = h_sc.shape[0]
    in_dim = x_ref.shape[-1]

    # ---- start of a recurrence (per batch block): load weights, reset state.
    # (Weights are re-DMA'd once per batch block; cheap vs. the T-step
    #  recurrence and keeps them single-buffered in VMEM.)
    @pl.when(chunk == 0)
    def _():
        w1 = pltpu.make_async_copy(wih_hbm, wih_vmem, dma_sem.at[0])
        w2 = pltpu.make_async_copy(whh_hbm, whh_vmem, dma_sem.at[1])
        w1.start()
        w2.start()
        h_sc[...] = jnp.zeros_like(h_sc)
        c_sc[...] = jnp.zeros_like(c_sc)
        if needs_mask:
            cn_ref[...] = jnp.zeros_like(cn_ref)   # robust init of revisited block
        w1.wait()
        w2.wait()

    # ---- per-chunk parallel input projection (one big MXU matmul) ----------
    xb = x_ref[...].reshape(t_blk * b_blk, in_dim).astype(jnp.bfloat16)
    gx = jnp.dot(xb, wih_vmem[...], preferred_element_type=jnp.float32)
    gx_sc[...] = (gx + bias_ref[...]).reshape(t_blk, b_blk, 4 * hidden)

    # ---- serial recurrence over the chunk (unconditional steps) ------------
    def step(i, carry):
        # gates = gx[t] + h_{t-1} @ W_hh^T   (bf16 MXU, f32 accumulate)
        gates = gx_sc[i] + jnp.dot(h_sc[...], whh_vmem[...],
                                   preferred_element_type=jnp.float32)
        i_g = jax.nn.sigmoid(gates[:, 0 * hidden:1 * hidden])
        f_g = jax.nn.sigmoid(gates[:, 1 * hidden:2 * hidden])
        g_g = jnp.tanh(gates[:, 2 * hidden:3 * hidden])
        o_g = jax.nn.sigmoid(gates[:, 3 * hidden:4 * hidden])

        c_new = f_g * c_sc[...] + i_g * g_g
        h_new = o_g * jnp.tanh(c_new)

        c_sc[...] = c_new
        h_sc[...] = h_new.astype(h_sc.dtype)
        y_ref[i] = h_new.astype(y_ref.dtype)

        if needs_mask:
            # Time axis was padded: capture c_n exactly at the last real step.
            # Only a tiny conditional store — the step body itself is not
            # predicated, so the serial chain stays short.
            @pl.when(chunk * t_blk + i == seq_len - 1)
            def _():
                cn_ref[...] = c_new.astype(cn_ref.dtype)
        return carry

    jax.lax.fori_loop(0, t_blk, step, 0, unroll=unroll)

    if not needs_mask:
        # No padding: every chunk-end state is valid; write each time so the
        # output block is always initialized (no reliance on deferred writeback).
        cn_ref[...] = c_sc[...].astype(cn_ref.dtype)


# --------------------------------- wrapper ----------------------------------

def lstm_forward(x, w_ih, w_hh, b_ih, b_hh, *, t_blk=None, b_blk=None,
                 vmem_budget_bytes=24 << 20):
    """Single-layer unidirectional LSTM, zero initial state.

    x:    (T, B, I) float32      (seq_len, batch, input) — batch_first=False
    w_ih: (4H, I), w_hh: (4H, H), b_ih/b_hh: (4H,)   (PyTorch nn.LSTM layout)
    Returns (output (T, B, H), (h_n (1, B, H), c_n (1, B, H))), like nn.LSTM.
    """
    T, B, I = x.shape
    H = w_hh.shape[1]
    assert w_ih.shape == (4 * H, I) and w_hh.shape == (4 * H, H)

    # bf16 weights for the MXU; all accumulation stays f32.
    wih_t = jnp.transpose(w_ih).astype(jnp.bfloat16)     # (I, 4H)
    whh_t = jnp.transpose(w_hh).astype(jnp.bfloat16)     # (H, 4H)
    bias = (b_ih + b_hh).astype(jnp.float32).reshape(1, 4 * H)

    # Batch tile: <=32 rows per kernel instance keeps the per-step gates tensor
    # small in vregs; the parallel batch grid axis shards across TensorCores.
    if b_blk is None:
        b_blk = next((c for c in (32, 16, 8) if B % c == 0), B)
    n_b = B // b_blk
    assert n_b * b_blk == B

    # Time chunk derived from a VMEM budget (x & y blocks are double-buffered,
    # gx scratch single, weights single-buffered).
    if t_blk is None:
        per_t = b_blk * (2 * I * 4 + 2 * H * 4 + 4 * H * 4)
        fixed = ((I + H) * 4 * H * 2          # weight scratch (bf16)
                 + b_blk * H * (2 + 4)        # h/c carries
                 + 2 * b_blk * H * 4          # c_n block
                 + 2 * 4 * H * 4)             # bias block
        t_blk = (vmem_budget_bytes - fixed) // max(per_t, 1)
    t_blk = int(max(1, min(t_blk, T, 64)))

    n_chunks = pl.cdiv(T, t_blk)
    t_pad = n_chunks * t_blk
    needs_mask = (t_pad != T)
    if needs_mask:
        x = jnp.pad(x, ((0, t_pad - T), (0, 0), (0, 0)))

    # Full unroll only while the per-step working set is small.
    unroll = True if b_blk <= 32 else 8

    kernel = functools.partial(_lstm_kernel, t_blk=t_blk, seq_len=T, hidden=H,
                               needs_mask=needs_mask, unroll=unroll)

    vmem_bytes = (2 * t_blk * b_blk * I * 4        # x block (double-buffered)
                  + 2 * t_blk * b_blk * H * 4      # y block (double-buffered)
                  + 2 * b_blk * H * 4              # c_n block
                  + 2 * 4 * H * 4                  # bias block
                  + (I + H) * 4 * H * 2            # weight scratch (bf16)
                  + t_blk * b_blk * 4 * H * 4      # gx scratch
                  + b_blk * H * (2 + 4))           # h/c carries
    vmem_limit = int(min(64 << 20, max(32 << 20, vmem_bytes * 3 // 2 + (2 << 20))))

    grid_spec = pltpu.PrefetchScalarGridSpec(
        num_scalar_prefetch=0,
        grid=(n_b, n_chunks),
        in_specs=[
            pl.BlockSpec((t_blk, b_blk, I), lambda b, c: (c, b, 0)),  # x chunk
            pl.BlockSpec(memory_space=pl.ANY),                        # W_ih^T (HBM)
            pl.BlockSpec(memory_space=pl.ANY),                        # W_hh^T (HBM)
            pl.BlockSpec((1, 4 * H), lambda b, c: (0, 0)),            # bias
        ],
        out_specs=[
            pl.BlockSpec((t_blk, b_blk, H), lambda b, c: (c, b, 0)),  # y chunk
            pl.BlockSpec((b_blk, H), lambda b, c: (b, 0)),            # c_n
        ],
        scratch_shapes=[
            pltpu.VMEM((I, 4 * H), jnp.bfloat16),            # W_ih^T (1 copy)
            pltpu.VMEM((H, 4 * H), jnp.bfloat16),            # W_hh^T (1 copy)
            pltpu.VMEM((t_blk, b_blk, 4 * H), jnp.float32),  # gx for this chunk
            pltpu.VMEM((b_blk, H), jnp.bfloat16),            # h carry (bf16)
            pltpu.VMEM((b_blk, H), jnp.float32),             # c carry (f32)
            pltpu.SemaphoreType.DMA((2,)),                   # weight-load sems
        ],
    )

    y_pad, c_n = pl.pallas_call(
        kernel,
        out_shape=(
            jax.ShapeDtypeStruct((t_pad, B, H), x.dtype),
            jax.ShapeDtypeStruct((B, H), x.dtype),
        ),
        grid_spec=grid_spec,
        compiler_params=pltpu.CompilerParams(
            dimension_semantics=("parallel", "arbitrary"),  # batch ∥, time serial
            vmem_limit_bytes=vmem_limit),
    )(x, wih_t, whh_t, bias)

    y = y_pad[:T] if needs_mask else y_pad
    h_n = y[T - 1][None]      # h_n is just the last hidden output
    c_n = c_n[None]
    return y, (h_n, c_n)


# ------------------------- parameter initialization -------------------------

def _orthogonal(key, rows, cols):
    a = jax.random.normal(key, (max(rows, cols), min(rows, cols)),
                          dtype=jnp.float32)
    q, r = jnp.linalg.qr(a)
    q = q * jnp.sign(jnp.diag(r))[None, :]
    if rows < cols:
        q = q.T
    return q[:rows, :cols]


def block_orthogonal(key, rows_per_block, cols, num_blocks):
    """Mimics block_orthogonal(tensor, [hidden, in_dim]) for a (4H, in) weight."""
    keys = jax.random.split(key, num_blocks)
    blocks = [_orthogonal(k, rows_per_block, cols) for k in keys]
    return jnp.concatenate(blocks, axis=0)


def init_lstm_params(key, input_size, hidden_size):
    k1, k2, k3, k4 = jax.random.split(key, 4)
    w_ih = block_orthogonal(k1, hidden_size, input_size, 4)    # (4H, I)
    w_hh = block_orthogonal(k2, hidden_size, hidden_size, 4)   # (4H, H)
    bound = 1.0 / jnp.sqrt(hidden_size)
    b_ih = jax.random.uniform(k3, (4 * hidden_size,), jnp.float32, -bound, bound)
    b_hh = jax.random.uniform(k4, (4 * hidden_size,), jnp.float32, -bound, bound)
    return w_ih, w_hh, b_ih, b_hh


# ------------------------------ pure-JAX reference ---------------------------

def lstm_reference(x, w_ih, w_hh, b_ih, b_hh):
    """Reference scan using the same bf16-operand / f32-accumulate matmuls."""
    T, B, I = x.shape
    H = w_ih.shape[0] // 4
    wih_t = w_ih.T.astype(jnp.bfloat16)
    whh_t = w_hh.T.astype(jnp.bfloat16)
    bias = (b_ih + b_hh).astype(jnp.float32)

    def step(carry, x_t):
        h, c = carry
        gates = (jnp.dot(x_t.astype(jnp.bfloat16), wih_t,
                         preferred_element_type=jnp.float32)
                 + jnp.dot(h.astype(jnp.bfloat16), whh_t,
                           preferred_element_type=jnp.float32)
                 + bias)
        i = jax.nn.sigmoid(gates[:, 0 * H:1 * H])
        f = jax.nn.sigmoid(gates[:, 1 * H:2 * H])
        g = jnp.tanh(gates[:, 2 * H:3 * H])
        o = jax.nn.sigmoid(gates[:, 3 * H:4 * H])
        c_new = f * c + i * g
        h_new = o * jnp.tanh(c_new)
        return (h_new, c_new), h_new

    init = (jnp.zeros((B, H), jnp.float32), jnp.zeros((B, H), jnp.float32))
    (h_n, c_n), ys = jax.lax.scan(step, init, x)
    return ys, (h_n[None], c_n[None])


# ------------------------------------ main -----------------------------------

if __name__ == "__main__":
    T, B, I, H = 8, 8, 128, 128   # seq=8, batch=8, input=128, hidden=128

    key = jax.random.PRNGKey(0)
    kp, kx = jax.random.split(key)
    w_ih, w_hh, b_ih, b_hh = init_lstm_params(kp, I, H)
    x = jax.random.normal(kx, (T, B, I), dtype=jnp.float32)

    y, (h_n, c_n) = jax.jit(lstm_forward)(x, w_ih, w_hh, b_ih, b_hh)
    jax.block_until_ready((y, h_n, c_n))

    y_ref, (hn_ref, cn_ref) = lstm_reference(x, w_ih, w_hh, b_ih, b_hh)

    # Same bf16 quantization of weights/inputs in kernel and reference; the
    # tolerance only absorbs f32 summation-order / transcendental-impl diffs.
    assert jnp.allclose(y, y_ref, atol=2e-3, rtol=2e-3), \
        float(jnp.max(jnp.abs(y - y_ref)))
    assert jnp.allclose(h_n, hn_ref, atol=2e-3, rtol=2e-3)
    assert jnp.allclose(c_n, cn_ref, atol=2e-3, rtol=2e-3)

    # TODO(synk): dynamic_rnn (lengths-aware packed-sequence path), stacked
    # num_layers>1, dropout and bidirectional variants are not implemented;
    # only the lengths=None, single-layer, unidirectional forward is covered.
    print("KERNEL_OK")
</pallas_src>

<mosaic_0001>
module attributes {stable_mosaic.version = 11 : i64} {
  func.func @_lstm_kernel(%arg0: i32, %arg1: i32, %arg2: memref<8x8x128xf32, #tpu.memory_space<vmem>>, %arg3: memref<128x512xbf16, #tpu.memory_space<any>>, %arg4: memref<128x512xbf16, #tpu.memory_space<any>>, %arg5: memref<1x512xf32, #tpu.memory_space<vmem>>, %arg6: memref<8x8x128xf32, #tpu.memory_space<vmem>>, %arg7: memref<8x128xf32, #tpu.memory_space<vmem>>, %arg8: memref<128x512xbf16, #tpu.memory_space<vmem>>, %arg9: memref<128x512xbf16, #tpu.memory_space<vmem>>, %arg10: memref<8x8x512xf32, #tpu.memory_space<vmem>>, %arg11: memref<8x128xbf16, #tpu.memory_space<vmem>>, %arg12: memref<8x128xf32, #tpu.memory_space<vmem>>, %arg13: memref<2x!tpu.dma_semaphore, #tpu.memory_space<semaphore_mem>>) attributes {dimension_semantics = [#tpu.dimension_semantics<parallel>, #tpu.dimension_semantics<arbitrary>], iteration_bounds = array<i64: 1, 1>, scalar_prefetch = 0 : i64, scratch_operands = 6 : i64, tpu.core_type = #tpu.core_type<tc>, window_params = [{transform_indices = @transform_0, window_bounds = array<i64: 8, 8, 128>}, {}, {}, {pipeline_mode = #tpu.pipeline_mode<synchronous>, transform_indices = @transform_3, window_bounds = array<i64: 1, 512>}, {transform_indices = @transform_4, window_bounds = array<i64: 8, 8, 128>}, {transform_indices = @transform_5, window_bounds = array<i64: 8, 128>}]} {
    %c0_i32 = arith.constant 0 : i32
    %0 = arith.cmpi eq, %arg1, %c0_i32 : i32
    %1 = arith.extui %0 : i1 to i32
    %c0_i32_0 = arith.constant 0 : i32
    %2 = arith.cmpi ne, %1, %c0_i32_0 : i32
    scf.if %2 {
      %c0_i32_159 = arith.constant 0 : i32
      %335 = tpu.memref_slice %arg13[%c0_i32_159] : memref<2x!tpu.dma_semaphore, #tpu.memory_space<semaphore_mem>> -> memref<1x!tpu.dma_semaphore, #tpu.memory_space<semaphore_mem>>
      %336 = tpu.memref_squeeze %335 : memref<1x!tpu.dma_semaphore, #tpu.memory_space<semaphore_mem>> -> memref<!tpu.dma_semaphore, #tpu.memory_space<semaphore_mem>>
      tpu.enqueue_dma source(%arg3 : memref<128x512xbf16, #tpu.memory_space<any>>) target(%arg8 : memref<128x512xbf16, #tpu.memory_space<vmem>>) target_semaphore(%336 : memref<!tpu.dma_semaphore, #tpu.memory_space<semaphore_mem>>)
      %c1_i32_160 = arith.constant 1 : i32
      %337 = tpu.memref_slice %arg13[%c1_i32_160] : memref<2x!tpu.dma_semaphore, #tpu.memory_space<semaphore_mem>> -> memref<1x!tpu.dma_semaphore, #tpu.memory_space<semaphore_mem>>
      %338 = tpu.memref_squeeze %337 : memref<1x!tpu.dma_semaphore, #tpu.memory_space<semaphore_mem>> -> memref<!tpu.dma_semaphore, #tpu.memory_space<semaphore_mem>>
      tpu.enqueue_dma source(%arg4 : memref<128x512xbf16, #tpu.memory_space<any>>) target(%arg9 : memref<128x512xbf16, #tpu.memory_space<vmem>>) target_semaphore(%338 : memref<!tpu.dma_semaphore, #tpu.memory_space<semaphore_mem>>)
      %cst_161 = arith.constant 0.000000e+00 : bf16
      %339 = vector.broadcast %cst_161 : bf16 to vector<8x128xbf16>
      %c0_162 = arith.constant 0 : index
      %c0_163 = arith.constant 0 : index
      %340 = vector.load %arg11[%c0_162, %c0_163] : memref<8x128xbf16, #tpu.memory_space<vmem>>, vector<8x128xbf16>
      tpu.vector_store %arg11[%c0_162, %c0_163], %339 {strides = array<i32>} : memref<8x128xbf16, #tpu.memory_space<vmem>>, vector<8x128xbf16>,
      %cst_164 = arith.constant 0.000000e+00 : f32
      %341 = vector.broadcast %cst_164 : f32 to vector<8x128xf32>
      %c0_165 = arith.constant 0 : index
      %c0_166 = arith.constant 0 : index
      %342 = vector.load %arg12[%c0_165, %c0_166] : memref<8x128xf32, #tpu.memory_space<vmem>>, vector<8x128xf32>
      tpu.vector_store %arg12[%c0_165, %c0_166], %341 {strides = array<i32>} : memref<8x128xf32, #tpu.memory_space<vmem>>, vector<8x128xf32>,
      %c0_i32_167 = arith.constant 0 : i32
      %343 = tpu.memref_slice %arg13[%c0_i32_167] : memref<2x!tpu.dma_semaphore, #tpu.memory_space<semaphore_mem>> -> memref<1x!tpu.dma_semaphore, #tpu.memory_space<semaphore_mem>>
      %344 = tpu.memref_squeeze %343 : memref<1x!tpu.dma_semaphore, #tpu.memory_space<semaphore_mem>> -> memref<!tpu.dma_semaphore, #tpu.memory_space<semaphore_mem>>
      tpu.wait_dma2 semaphore(%344 : memref<!tpu.dma_semaphore, #tpu.memory_space<semaphore_mem>>) src(%arg3 : memref<128x512xbf16, #tpu.memory_space<any>>) dst(%arg8 : memref<128x512xbf16, #tpu.memory_space<vmem>>)
      %c1_i32_168 = arith.constant 1 : i32
      %345 = tpu.memref_slice %arg13[%c1_i32_168] : memref<2x!tpu.dma_semaphore, #tpu.memory_space<semaphore_mem>> -> memref<1x!tpu.dma_semaphore, #tpu.memory_space<semaphore_mem>>
      %346 = tpu.memref_squeeze %345 : memref<1x!tpu.dma_semaphore, #tpu.memory_space<semaphore_mem>> -> memref<!tpu.dma_semaphore, #tpu.memory_space<semaphore_mem>>
      tpu.wait_dma2 semaphore(%346 : memref<!tpu.dma_semaphore, #tpu.memory_space<semaphore_mem>>) src(%arg4 : memref<128x512xbf16, #tpu.memory_space<any>>) dst(%arg9 : memref<128x512xbf16, #tpu.memory_space<vmem>>)
    } else {
    }
    %c0 = arith.constant 0 : index
    %c0_1 = arith.constant 0 : index
    %c0_2 = arith.constant 0 : index
    %3 = vector.load %arg2[%c0, %c0_1, %c0_2] : memref<8x8x128xf32, #tpu.memory_space<vmem>>, vector<8x8x128xf32>
    %4 = vector.shape_cast %3 : vector<8x8x128xf32> to vector<64x128xf32>
    %5 = arith.truncf %4 : vector<64x128xf32> to vector<64x128xbf16>
    %c0_3 = arith.constant 0 : index
    %c0_4 = arith.constant 0 : index
    %6 = vector.load %arg8[%c0_3, %c0_4] : memref<128x512xbf16, #tpu.memory_space<vmem>>, vector<128x512xbf16>
    %cst = arith.constant dense<0.000000e+00> : vector<64x512xf32>
    %7 = tpu.matmul %5, %6, %cst {dimension_numbers = #tpu.dot_dimension_numbers<[1], [0], [0], [1], [0, 0, 1, 1], [], []>} : vector<64x128xbf16>, vector<128x512xbf16>, vector<64x512xf32> -> vector<64x512xf32>
    %c0_5 = arith.constant 0 : index
    %c0_6 = arith.constant 0 : index
    %8 = vector.load %arg5[%c0_5, %c0_6] : memref<1x512xf32, #tpu.memory_space<vmem>>, vector<1x512xf32>
    %9 = vector.broadcast %8 : vector<1x512xf32> to vector<64x512xf32>
    %10 = arith.addf %7, %9 : vector<64x512xf32>
    %11 = vector.shape_cast %10 : vector<64x512xf32> to vector<8x8x512xf32>
    %c0_7 = arith.constant 0 : index
    %c0_8 = arith.constant 0 : index
    %c0_9 = arith.constant 0 : index
    %12 = vector.load %arg10[%c0_7, %c0_8, %c0_9] : memref<8x8x512xf32, #tpu.memory_space<vmem>>, vector<8x8x512xf32>
    tpu.vector_store %arg10[%c0_7, %c0_8, %c0_9], %11 {strides = array<i32>} : memref<8x8x512xf32, #tpu.memory_space<vmem>>, vector<8x8x512xf32>,
    %c0_i32_10 = arith.constant 0 : i32
    %13 = arith.index_cast %c0_i32_10 : i32 to index
    %c0_11 = arith.constant 0 : index
    %c0_12 = arith.constant 0 : index
    %14 = vector.load %arg10[%13, %c0_11, %c0_12] : memref<8x8x512xf32, #tpu.memory_space<vmem>>, vector<1x8x512xf32>
    %15 = vector.shape_cast %14 : vector<1x8x512xf32> to vector<8x512xf32>
    %c0_13 = arith.constant 0 : index
    %c0_14 = arith.constant 0 : index
    %16 = vector.load %arg11[%c0_13, %c0_14] : memref<8x128xbf16, #tpu.memory_space<vmem>>, vector<8x128xbf16>
    %c0_15 = arith.constant 0 : index
    %c0_16 = arith.constant 0 : index
    %17 = vector.load %arg9[%c0_15, %c0_16] : memref<128x512xbf16, #tpu.memory_space<vmem>>, vector<128x512xbf16>
    %cst_17 = arith.constant dense<0.000000e+00> : vector<8x512xf32>
    %18 = tpu.matmul %16, %17, %cst_17 {dimension_numbers = #tpu.dot_dimension_numbers<[1], [0], [0], [1], [0, 0, 1, 1], [], []>} : vector<8x128xbf16>, vector<128x512xbf16>, vector<8x512xf32> -> vector<8x512xf32>
    %19 = arith.addf %15, %18 : vector<8x512xf32>
    %20 = vector.extract_strided_slice %19 {offsets = [0, 0], sizes = [8, 128], strides = [1, 1]} : vector<8x512xf32> to vector<8x128xf32>
    %21 = arith.negf %20 : vector<8x128xf32>
    %22 = math.exp %21 : vector<8x128xf32>
    %cst_18 = arith.constant 1.000000e+00 : f32
    %23 = vector.broadcast %cst_18 : f32 to vector<8x128xf32>
    %24 = arith.addf %23, %22 : vector<8x128xf32>
    %25 = arith.divf %23, %24 : vector<8x128xf32>
    %26 = vector.extract_strided_slice %19 {offsets = [0, 128], sizes = [8, 128], strides = [1, 1]} : vector<8x512xf32> to vector<8x128xf32>
    %27 = arith.negf %26 : vector<8x128xf32>
    %28 = math.exp %27 : vector<8x128xf32>
    %cst_19 = arith.constant 1.000000e+00 : f32
    %29 = vector.broadcast %cst_19 : f32 to vector<8x128xf32>
    %30 = arith.addf %29, %28 : vector<8x128xf32>
    %31 = arith.divf %29, %30 : vector<8x128xf32>
    %32 = vector.extract_strided_slice %19 {offsets = [0, 256], sizes = [8, 128], strides = [1, 1]} : vector<8x512xf32> to vector<8x128xf32>
    %33 = math.tanh %32 : vector<8x128xf32>
    %34 = vector.extract_strided_slice %19 {offsets = [0, 384], sizes = [8, 128], strides = [1, 1]} : vector<8x512xf32> to vector<8x128xf32>
    %35 = arith.negf %34 : vector<8x128xf32>
    %36 = math.exp %35 : vector<8x128xf32>
    %cst_20 = arith.constant 1.000000e+00 : f32
    %37 = vector.broadcast %cst_20 : f32 to vector<8x128xf32>
    %38 = arith.addf %37, %36 : vector<8x128xf32>
    %39 = arith.divf %37, %38 : vector<8x128xf32>
    %c0_21 = arith.constant 0 : index
    %c0_22 = arith.constant 0 : index
    %40 = vector.load %arg12[%c0_21, %c0_22] : memref<8x128xf32, #tpu.memory_space<vmem>>, vector<8x128xf32>
    %41 = arith.mulf %31, %40 : vector<8x128xf32>
    %42 = arith.mulf %25, %33 : vector<8x128xf32>
    %43 = arith.addf %41, %42 : vector<8x128xf32>
    %44 = math.tanh %43 : vector<8x128xf32>
    %45 = arith.mulf %39, %44 : vector<8x128xf32>
    %c0_23 = arith.constant 0 : index
    %c0_24 = arith.constant 0 : index
    %46 = vector.load %arg12[%c0_23, %c0_24] : memref<8x128xf32, #tpu.memory_space<vmem>>, vector<8x128xf32>
    tpu.vector_store %arg12[%c0_23, %c0_24], %43 {strides = array<i32>} : memref<8x128xf32, #tpu.memory_space<vmem>>, vector<8x128xf32>,
    %47 = arith.truncf %45 : vector<8x128xf32> to vector<8x128xbf16>
    %c0_25 = arith.constant 0 : index
    %c0_26 = arith.constant 0 : index
    %48 = vector.load %arg11[%c0_25, %c0_26] : memref<8x128xbf16, #tpu.memory_space<vmem>>, vector<8x128xbf16>
    tpu.vector_store %arg11[%c0_25, %c0_26], %47 {strides = array<i32>} : memref<8x128xbf16, #tpu.memory_space<vmem>>, vector<8x128xbf16>,
    %49 = arith.index_cast %c0_i32_10 : i32 to index
    %c0_27 = arith.constant 0 : index
    %c0_28 = arith.constant 0 : index
    %50 = vector.load %arg6[%49, %c0_27, %c0_28] : memref<8x8x128xf32, #tpu.memory_space<vmem>>, vector<1x8x128xf32>
    %51 = vector.shape_cast %50 : vector<1x8x128xf32> to vector<8x128xf32>
    %52 = vector.shape_cast %45 : vector<8x128xf32> to vector<1x8x128xf32>
    tpu.vector_store %arg6[%49, %c0_27, %c0_28], %52 {strides = array<i32>} : memref<8x8x128xf32, #tpu.memory_space<vmem>>, vector<1x8x128xf32>,
    %c1_i32 = arith.constant 1 : i32
    %53 = arith.index_cast %c1_i32 : i32 to index
    %c0_29 = arith.constant 0 : index
    %c0_30 = arith.constant 0 : index
    %54 = vector.load %arg10[%53, %c0_29, %c0_30] : memref<8x8x512xf32, #tpu.memory_space<vmem>>, vector<1x8x512xf32>
    %55 = vector.shape_cast %54 : vector<1x8x512xf32> to vector<8x512xf32>
    %c0_31 = arith.constant 0 : index
    %c0_32 = arith.constant 0 : index
    %56 = vector.load %arg11[%c0_31, %c0_32] : memref<8x128xbf16, #tpu.memory_space<vmem>>, vector<8x128xbf16>
    %c0_33 = arith.constant 0 : index
    %c0_34 = arith.constant 0 : index
    %57 = vector.load %arg9[%c0_33, %c0_34] : memref<128x512xbf16, #tpu.memory_space<vmem>>, vector<128x512xbf16>
    %cst_35 = arith.constant dense<0.000000e+00> : vector<8x512xf32>
    %58 = tpu.matmul %56, %57, %cst_35 {dimension_numbers = #tpu.dot_dimension_numbers<[1], [0], [0], [1], [0, 0, 1, 1], [], []>} : vector<8x128xbf16>, vector<128x512xbf16>, vector<8x512xf32> -> vector<8x512xf32>
    %59 = arith.addf %55, %58 : vector<8x512xf32>
    %60 = vector.extract_strided_slice %59 {offsets = [0, 0], sizes = [8, 128], strides = [1, 1]} : vector<8x512xf32> to vector<8x128xf32>
    %61 = arith.negf %60 : vector<8x128xf32>
    %62 = math.exp %61 : vector<8x128xf32>
    %cst_36 = arith.constant 1.000000e+00 : f32
    %63 = vector.broadcast %cst_36 : f32 to vector<8x128xf32>
    %64 = arith.addf %63, %62 : vector<8x128xf32>
    %65 = arith.divf %63, %64 : vector<8x128xf32>
    %66 = vector.extract_strided_slice %59 {offsets = [0, 128], sizes = [8, 128], strides = [1, 1]} : vector<8x512xf32> to vector<8x128xf32>
    %67 = arith.negf %66 : vector<8x128xf32>
    %68 = math.exp %67 : vector<8x128xf32>
    %cst_37 = arith.constant 1.000000e+00 : f32
    %69 = vector.broadcast %cst_37 : f32 to vector<8x128xf32>
    %70 = arith.addf %69, %68 : vector<8x128xf32>
    %71 = arith.divf %69, %70 : vector<8x128xf32>
    %72 = vector.extract_strided_slice %59 {offsets = [0, 256], sizes = [8, 128], strides = [1, 1]} : vector<8x512xf32> to vector<8x128xf32>
    %73 = math.tanh %72 : vector<8x128xf32>
    %74 = vector.extract_strided_slice %59 {offsets = [0, 384], sizes = [8, 128], strides = [1, 1]} : vector<8x512xf32> to vector<8x128xf32>
    %75 = arith.negf %74 : vector<8x128xf32>
    %76 = math.exp %75 : vector<8x128xf32>
    %cst_38 = arith.constant 1.000000e+00 : f32
    %77 = vector.broadcast %cst_38 : f32 to vector<8x128xf32>
    %78 = arith.addf %77, %76 : vector<8x128xf32>
    %79 = arith.divf %77, %78 : vector<8x128xf32>
    %c0_39 = arith.constant 0 : index
    %c0_40 = arith.constant 0 : index
    %80 = vector.load %arg12[%c0_39, %c0_40] : memref<8x128xf32, #tpu.memory_space<vmem>>, vector<8x128xf32>
    %81 = arith.mulf %71, %80 : vector<8x128xf32>
    %82 = arith.mulf %65, %73 : vector<8x128xf32>
    %83 = arith.addf %81, %82 : vector<8x128xf32>
    %84 = math.tanh %83 : vector<8x128xf32>
    %85 = arith.mulf %79, %84 : vector<8x128xf32>
    %c0_41 = arith.constant 0 : index
    %c0_42 = arith.constant 0 : index
    %86 = vector.load %arg12[%c0_41, %c0_42] : memref<8x128xf32, #tpu.memory_space<vmem>>, vector<8x128xf32>
    tpu.vector_store %arg12[%c0_41, %c0_42], %83 {strides = array<i32>} : memref<8x128xf32, #tpu.memory_space<vmem>>, vector<8x128xf32>,
    %87 = arith.truncf %85 : vector<8x128xf32> to vector<8x128xbf16>
    %c0_43 = arith.constant 0 : index
    %c0_44 = arith.constant 0 : index
    %88 = vector.load %arg11[%c0_43, %c0_44] : memref<8x128xbf16, #tpu.memory_space<vmem>>, vector<8x128xbf16>
    tpu.vector_store %arg11[%c0_43, %c0_44], %87 {strides = array<i32>} : memref<8x128xbf16, #tpu.memory_space<vmem>>, vector<8x128xbf16>,
    %89 = arith.index_cast %c1_i32 : i32 to index
    %c0_45 = arith.constant 0 : index
    %c0_46 = arith.constant 0 : index
    %90 = vector.load %arg6[%89, %c0_45, %c0_46] : memref<8x8x128xf32, #tpu.memory_space<vmem>>, vector<1x8x128xf32>
    %91 = vector.shape_cast %90 : vector<1x8x128xf32> to vector<8x128xf32>
    %92 = vector.shape_cast %85 : vector<8x128xf32> to vector<1x8x128xf32>
    tpu.vector_store %arg6[%89, %c0_45, %c0_46], %92 {strides = array<i32>} : memref<8x8x128xf32, #tpu.memory_space<vmem>>, vector<1x8x128xf32>,
    %c2_i32 = arith.constant 2 : i32
    %93 = arith.index_cast %c2_i32 : i32 to index
    %c0_47 = arith.constant 0 : index
    %c0_48 = arith.constant 0 : index
    %94 = vector.load %arg10[%93, %c0_47, %c0_48] : memref<8x8x512xf32, #tpu.memory_space<vmem>>, vector<1x8x512xf32>
    %95 = vector.shape_cast %94 : vector<1x8x512xf32> to vector<8x512xf32>
    %c0_49 = arith.constant 0 : index
    %c0_50 = arith.constant 0 : index
    %96 = vector.load %arg11[%c0_49, %c0_50] : memref<8x128xbf16, #tpu.memory_space<vmem>>, vector<8x128xbf16>
    %c0_51 = arith.constant 0 : index
    %c0_52 = arith.constant 0 : index
    %97 = vector.load %arg9[%c0_51, %c0_52] : memref<128x512xbf16, #tpu.memory_space<vmem>>, vector<128x512xbf16>
    %cst_53 = arith.constant dense<0.000000e+00> : vector<8x512xf32>
    %98 = tpu.matmul %96, %97, %cst_53 {dimension_numbers = #tpu.dot_dimension_numbers<[1], [0], [0], [1], [0, 0, 1, 1], [], []>} : vector<8x128xbf16>, vector<128x512xbf16>, vector<8x512xf32> -> vector<8x512xf32>
    %99 = arith.addf %95, %98 : vector<8x512xf32>
    %100 = vector.extract_strided_slice %99 {offsets = [0, 0], sizes = [8, 128], strides = [1, 1]} : vector<8x512xf32> to vector<8x128xf32>
    %101 = arith.negf %100 : vector<8x128xf32>
    %102 = math.exp %101 : vector<8x128xf32>
    %cst_54 = arith.constant 1.000000e+00 : f32
    %103 = vector.broadcast %cst_54 : f32 to vector<8x128xf32>
    %104 = arith.addf %103, %102 : vector<8x128xf32>
    %105 = arith.divf %103, %104 : vector<8x128xf32>
    %106 = vector.extract_strided_slice %99 {offsets = [0, 128], sizes = [8, 128], strides = [1, 1]} : vector<8x512xf32> to vector<8x128xf32>
    %107 = arith.negf %106 : vector<8x128xf32>
    %108 = math.exp %107 : vector<8x128xf32>
    %cst_55 = arith.constant 1.000000e+00 : f32
    %109 = vector.broadcast %cst_55 : f32 to vector<8x128xf32>
    %110 = arith.addf %109, %108 : vector<8x128xf32>
    %111 = arith.divf %109, %110 : vector<8x128xf32>
    %112 = vector.extract_strided_slice %99 {offsets = [0, 256], sizes = [8, 128], strides = [1, 1]} : vector<8x512xf32> to vector<8x128xf32>
    %113 = math.tanh %112 : vector<8x128xf32>
    %114 = vector.extract_strided_slice %99 {offsets = [0, 384], sizes = [8, 128], strides = [1, 1]} : vector<8x512xf32> to vector<8x128xf32>
    %115 = arith.negf %114 : vector<8x128xf32>
    %116 = math.exp %115 : vector<8x128xf32>
    %cst_56 = arith.constant 1.000000e+00 : f32
    %117 = vector.broadcast %cst_56 : f32 to vector<8x128xf32>
    %118 = arith.addf %117, %116 : vector<8x128xf32>
    %119 = arith.divf %117, %118 : vector<8x128xf32>
    %c0_57 = arith.constant 0 : index
    %c0_58 = arith.constant 0 : index
    %120 = vector.load %arg12[%c0_57, %c0_58] : memref<8x128xf32, #tpu.memory_space<vmem>>, vector<8x128xf32>
    %121 = arith.mulf %111, %120 : vector<8x128xf32>
    %122 = arith.mulf %105, %113 : vector<8x128xf32>
    %123 = arith.addf %121, %122 : vector<8x128xf32>
    %124 = math.tanh %123 : vector<8x128xf32>
    %125 = arith.mulf %119, %124 : vector<8x128xf32>
    %c0_59 = arith.constant 0 : index
    %c0_60 = arith.constant 0 : index
    %126 = vector.load %arg12[%c0_59, %c0_60] : memref<8x128xf32, #tpu.memory_space<vmem>>, vector<8x128xf32>
    tpu.vector_store %arg12[%c0_59, %c0_60], %123 {strides = array<i32>} : memref<8x128xf32, #tpu.memory_space<vmem>>, vector<8x128xf32>,
    %127 = arith.truncf %125 : vector<8x128xf32> to vector<8x128xbf16>
    %c0_61 = arith.constant 0 : index
    %c0_62 = arith.constant 0 : index
    %128 = vector.load %arg11[%c0_61, %c0_62] : memref<8x128xbf16, #tpu.memory_space<vmem>>, vector<8x128xbf16>
    tpu.vector_store %arg11[%c0_61, %c0_62], %127 {strides = array<i32>} : memref<8x128xbf16, #tpu.memory_space<vmem>>, vector<8x128xbf16>,
    %129 = arith.index_cast %c2_i32 : i32 to index
    %c0_63 = arith.constant 0 : index
    %c0_64 = arith.constant 0 : index
    %130 = vector.load %arg6[%129, %c0_63, %c0_64] : memref<8x8x128xf32, #tpu.memory_space<vmem>>, vector<1x8x128xf32>
    %131 = vector.shape_cast %130 : vector<1x8x128xf32> to vector<8x128xf32>
    %132 = vector.shape_cast %125 : vector<8x128xf32> to vector<1x8x128xf32>
    tpu.vector_store %arg6[%129, %c0_63, %c0_64], %132 {strides = array<i32>} : memref<8x8x128xf32, #tpu.memory_space<vmem>>, vector<1x8x128xf32>,
    %c3_i32 = arith.constant 3 : i32
    %133 = arith.index_cast %c3_i32 : i32 to index
    %c0_65 = arith.constant 0 : index
    %c0_66 = arith.constant 0 : index
    %134 = vector.load %arg10[%133, %c0_65, %c0_66] : memref<8x8x512xf32, #tpu.memory_space<vmem>>, vector<1x8x512xf32>
    %135 = vector.shape_cast %134 : vector<1x8x512xf32> to vector<8x512xf32>
    %c0_67 = arith.constant 0 : index
    %c0_68 = arith.constant 0 : index
    %136 = vector.load %arg11[%c0_67, %c0_68] : memref<8x128xbf16, #tpu.memory_space<vmem>>, vector<8x128xbf16>
    %c0_69 = arith.constant 0 : index
    %c0_70 = arith.constant 0 : index
    %137 = vector.load %arg9[%c0_69, %c0_70] : memref<128x512xbf16, #tpu.memory_space<vmem>>, vector<128x512xbf16>
    %cst_71 = arith.constant dense<0.000000e+00> : vector<8x512xf32>
    %138 = tpu.matmul %136, %137, %cst_71 {dimension_numbers = #tpu.dot_dimension_numbers<[1], [0], [0], [1], [0, 0, 1, 1], [], []>} : vector<8x128xbf16>, vector<128x512xbf16>, vector<8x512xf32> -> vector<8x512xf32>
    %139 = arith.addf %135, %138 : vector<8x512xf32>
    %140 = vector.extract_strided_slice %139 {offsets = [0, 0], sizes = [8, 128], strides = [1, 1]} : vector<8x512xf32> to vector<8x128xf32>
    %141 = arith.negf %140 : vector<8x128xf32>
    %142 = math.exp %141 : vector<8x128xf32>
    %cst_72 = arith.constant 1.000000e+00 : f32
    %143 = vector.broadcast %cst_72 : f32 to vector<8x128xf32>
    %144 = arith.addf %143, %142 : vector<8x128xf32>
    %145 = arith.divf %143, %144 : vector<8x128xf32>
    %146 = vector.extract_strided_slice %139 {offsets = [0, 128], sizes = [8, 128], strides = [1, 1]} : vector<8x512xf32> to vector<8x128xf32>
    %147 = arith.negf %146 : vector<8x128xf32>
    %148 = math.exp %147 : vector<8x128xf32>
    %cst_73 = arith.constant 1.000000e+00 : f32
    %149 = vector.broadcast %cst_73 : f32 to vector<8x128xf32>
    %150 = arith.addf %149, %148 : vector<8x128xf32>
    %151 = arith.divf %149, %150 : vector<8x128xf32>
    %152 = vector.extract_strided_slice %139 {offsets = [0, 256], sizes = [8, 128], strides = [1, 1]} : vector<8x512xf32> to vector<8x128xf32>
    %153 = math.tanh %152 : vector<8x128xf32>
    %154 = vector.extract_strided_slice %139 {offsets = [0, 384], sizes = [8, 128], strides = [1, 1]} : vector<8x512xf32> to vector<8x128xf32>
    %155 = arith.negf %154 : vector<8x128xf32>
    %156 = math.exp %155 : vector<8x128xf32>
    %cst_74 = arith.constant 1.000000e+00 : f32
    %157 = vector.broadcast %cst_74 : f32 to vector<8x128xf32>
    %158 = arith.addf %157, %156 : vector<8x128xf32>
    %159 = arith.divf %157, %158 : vector<8x128xf32>
    %c0_75 = arith.constant 0 : index
    %c0_76 = arith.constant 0 : index
    %160 = vector.load %arg12[%c0_75, %c0_76] : memref<8x128xf32, #tpu.memory_space<vmem>>, vector<8x128xf32>
    %161 = arith.mulf %151, %160 : vector<8x128xf32>
    %162 = arith.mulf %145, %153 : vector<8x128xf32>
    %163 = arith.addf %161, %162 : vector<8x128xf32>
    %164 = math.tanh %163 : vector<8x128xf32>
    %165 = arith.mulf %159, %164 : vector<8x128xf32>
    %c0_77 = arith.constant 0 : index
    %c0_78 = arith.constant 0 : index
    %166 = vector.load %arg12[%c0_77, %c0_78] : memref<8x128xf32, #tpu.memory_space<vmem>>, vector<8x128xf32>
    tpu.vector_store %arg12[%c0_77, %c0_78], %163 {strides = array<i32>} : memref<8x128xf32, #tpu.memory_space<vmem>>, vector<8x128xf32>,
    %167 = arith.truncf %165 : vector<8x128xf32> to vector<8x128xbf16>
    %c0_79 = arith.constant 0 : index
    %c0_80 = arith.constant 0 : index
    %168 = vector.load %arg11[%c0_79, %c0_80] : memref<8x128xbf16, #tpu.memory_space<vmem>>, vector<8x128xbf16>
    tpu.vector_store %arg11[%c0_79, %c0_80], %167 {strides = array<i32>} : memref<8x128xbf16, #tpu.memory_space<vmem>>, vector<8x128xbf16>,
    %169 = arith.index_cast %c3_i32 : i32 to index
    %c0_81 = arith.constant 0 : index
    %c0_82 = arith.constant 0 : index
    %170 = vector.load %arg6[%169, %c0_81, %c0_82] : memref<8x8x128xf32, #tpu.memory_space<vmem>>, vector<1x8x128xf32>
    %171 = vector.shape_cast %170 : vector<1x8x128xf32> to vector<8x128xf32>
    %172 = vector.shape_cast %165 : vector<8x128xf32> to vector<1x8x128xf32>
    tpu.vector_store %arg6[%169, %c0_81, %c0_82], %172 {strides = array<i32>} : memref<8x8x128xf32, #tpu.memory_space<vmem>>, vector<1x8x128xf32>,
    %c4_i32 = arith.constant 4 : i32
    %173 = arith.index_cast %c4_i32 : i32 to index
    %c0_83 = arith.constant 0 : index
    %c0_84 = arith.constant 0 : index
    %174 = vector.load %arg10[%173, %c0_83, %c0_84] : memref<8x8x512xf32, #tpu.memory_space<vmem>>, vector<1x8x512xf32>
    %175 = vector.shape_cast %174 : vector<1x8x512xf32> to vector<8x512xf32>
    %c0_85 = arith.constant 0 : index
    %c0_86 = arith.constant 0 : index
    %176 = vector.load %arg11[%c0_85, %c0_86] : memref<8x128xbf16, #tpu.memory_space<vmem>>, vector<8x128xbf16>
    %c0_87 = arith.constant 0 : index
    %c0_88 = arith.constant 0 : index
    %177 = vector.load %arg9[%c0_87, %c0_88] : memref<128x512xbf16, #tpu.memory_space<vmem>>, vector<128x512xbf16>
    %cst_89 = arith.constant dense<0.000000e+00> : vector<8x512xf32>
    %178 = tpu.matmul %176, %177, %cst_89 {dimension_numbers = #tpu.dot_dimension_numbers<[1], [0], [0], [1], [0, 0, 1, 1], [], []>} : vector<8x128xbf16>, vector<128x512xbf16>, vector<8x512xf32> -> vector<8x512xf32>
    %179 = arith.addf %175, %178 : vector<8x512xf32>
    %180 = vector.extract_strided_slice %179 {offsets = [0, 0], sizes = [8, 128], strides = [1, 1]} : vector<8x512xf32> to vector<8x128xf32>
    %181 = arith.negf %180 : vector<8x128xf32>
    %182 = math.exp %181 : vector<8x128xf32>
    %cst_90 = arith.constant 1.000000e+00 : f32
    %183 = vector.broadcast %cst_90 : f32 to vector<8x128xf32>
    %184 = arith.addf %183, %182 : vector<8x128xf32>
    %185 = arith.divf %183, %184 : vector<8x128xf32>
    %186 = vector.extract_strided_slice %179 {offsets = [0, 128], sizes = [8, 128], strides = [1, 1]} : vector<8x512xf32> to vector<8x128xf32>
    %187 = arith.negf %186 : vector<8x128xf32>
    %188 = math.exp %187 : vector<8x128xf32>
    %cst_91 = arith.constant 1.000000e+00 : f32
    %189 = vector.broadcast %cst_91 : f32 to vector<8x128xf32>
    %190 = arith.addf %189, %188 : vector<8x128xf32>
    %191 = arith.divf %189, %190 : vector<8x128xf32>
    %192 = vector.extract_strided_slice %179 {offsets = [0, 256], sizes = [8, 128], strides = [1, 1]} : vector<8x512xf32> to vector<8x128xf32>
    %193 = math.tanh %192 : vector<8x128xf32>
    %194 = vector.extract_strided_slice %179 {offsets = [0, 384], sizes = [8, 128], strides = [1, 1]} : vector<8x512xf32> to vector<8x128xf32>
    %195 = arith.negf %194 : vector<8x128xf32>
    %196 = math.exp %195 : vector<8x128xf32>
    %cst_92 = arith.constant 1.000000e+00 : f32
    %197 = vector.broadcast %cst_92 : f32 to vector<8x128xf32>
    %198 = arith.addf %197, %196 : vector<8x128xf32>
    %199 = arith.divf %197, %198 : vector<8x128xf32>
    %c0_93 = arith.constant 0 : index
    %c0_94 = arith.constant 0 : index
    %200 = vector.load %arg12[%c0_93, %c0_94] : memref<8x128xf32, #tpu.memory_space<vmem>>, vector<8x128xf32>
    %201 = arith.mulf %191, %200 : vector<8x128xf32>
    %202 = arith.mulf %185, %193 : vector<8x128xf32>
    %203 = arith.addf %201, %202 : vector<8x128xf32>
    %204 = math.tanh %203 : vector<8x128xf32>
    %205 = arith.mulf %199, %204 : vector<8x128xf32>
    %c0_95 = arith.constant 0 : index
    %c0_96 = arith.constant 0 : index
    %206 = vector.load %arg12[%c0_95, %c0_96] : memref<8x128xf32, #tpu.memory_space<vmem>>, vector<8x128xf32>
    tpu.vector_store %arg12[%c0_95, %c0_96], %203 {strides = array<i32>} : memref<8x128xf32, #tpu.memory_space<vmem>>, vector<8x128xf32>,
    %207 = arith.truncf %205 : vector<8x128xf32> to vector<8x128xbf16>
    %c0_97 = arith.constant 0 : index
    %c0_98 = arith.constant 0 : index
    %208 = vector.load %arg11[%c0_97, %c0_98] : memref<8x128xbf16, #tpu.memory_space<vmem>>, vector<8x128xbf16>
    tpu.vector_store %arg11[%c0_97, %c0_98], %207 {strides = array<i32>} : memref<8x128xbf16, #tpu.memory_space<vmem>>, vector<8x128xbf16>,
    %209 = arith.index_cast %c4_i32 : i32 to index
    %c0_99 = arith.constant 0 : index
    %c0_100 = arith.constant 0 : index
    %210 = vector.load %arg6[%209, %c0_99, %c0_100] : memref<8x8x128xf32, #tpu.memory_space<vmem>>, vector<1x8x128xf32>
    %211 = vector.shape_cast %210 : vector<1x8x128xf32> to vector<8x128xf32>
    %212 = vector.shape_cast %205 : vector<8x128xf32> to vector<1x8x128xf32>
    tpu.vector_store %arg6[%209, %c0_99, %c0_100], %212 {strides = array<i32>} : memref<8x8x128xf32, #tpu.memory_space<vmem>>, vector<1x8x128xf32>,
    %c5_i32 = arith.constant 5 : i32
    %213 = arith.index_cast %c5_i32 : i32 to index
    %c0_101 = arith.constant 0 : index
    %c0_102 = arith.constant 0 : index
    %214 = vector.load %arg10[%213, %c0_101, %c0_102] : memref<8x8x512xf32, #tpu.memory_space<vmem>>, vector<1x8x512xf32>
    %215 = vector.shape_cast %214 : vector<1x8x512xf32> to vector<8x512xf32>
    %c0_103 = arith.constant 0 : index
    %c0_104 = arith.constant 0 : index
    %216 = vector.load %arg11[%c0_103, %c0_104] : memref<8x128xbf16, #tpu.memory_space<vmem>>, vector<8x128xbf16>
    %c0_105 = arith.constant 0 : index
    %c0_106 = arith.constant 0 : index
    %217 = vector.load %arg9[%c0_105, %c0_106] : memref<128x512xbf16, #tpu.memory_space<vmem>>, vector<128x512xbf16>
    %cst_107 = arith.constant dense<0.000000e+00> : vector<8x512xf32>
    %218 = tpu.matmul %216, %217, %cst_107 {dimension_numbers = #tpu.dot_dimension_numbers<[1], [0], [0], [1], [0, 0, 1, 1], [], []>} : vector<8x128xbf16>, vector<128x512xbf16>, vector<8x512xf32> -> vector<8x512xf32>
    %219 = arith.addf %215, %218 : vector<8x512xf32>
    %220 = vector.extract_strided_slice %219 {offsets = [0, 0], sizes = [8, 128], strides = [1, 1]} : vector<8x512xf32> to vector<8x128xf32>
    %221 = arith.negf %220 : vector<8x128xf32>
    %222 = math.exp %221 : vector<8x128xf32>
    %cst_108 = arith.constant 1.000000e+00 : f32
    %223 = vector.broadcast %cst_108 : f32 to vector<8x128xf32>
    %224 = arith.addf %223, %222 : vector<8x128xf32>
    %225 = arith.divf %223, %224 : vector<8x128xf32>
    %226 = vector.extract_strided_slice %219 {offsets = [0, 128], sizes = [8, 128], strides = [1, 1]} : vector<8x512xf32> to vector<8x128xf32>
    %227 = arith.negf %226 : vector<8x128xf32>
    %228 = math.exp %227 : vector<8x128xf32>
    %cst_109 = arith.constant 1.000000e+00 : f32
    %229 = vector.broadcast %cst_109 : f32 to vector<8x128xf32>
    %230 = arith.addf %229, %228 : vector<8x128xf32>
    %231 = arith.divf %229, %230 : vector<8x128xf32>
    %232 = vector.extract_strided_slice %219 {offsets = [0, 256], sizes = [8, 128], strides = [1, 1]} : vector<8x512xf32> to vector<8x128xf32>
    %233 = math.tanh %232 : vector<8x128xf32>
    %234 = vector.extract_strided_slice %219 {offsets = [0, 384], sizes = [8, 128], strides = [1, 1]} : vector<8x512xf32> to vector<8x128xf32>
    %235 = arith.negf %234 : vector<8x128xf32>
    %236 = math.exp %235 : vector<8x128xf32>
    %cst_110 = arith.constant 1.000000e+00 : f32
    %237 = vector.broadcast %cst_110 : f32 to vector<8x128xf32>
    %238 = arith.addf %237, %236 : vector<8x128xf32>
    %239 = arith.divf %237, %238 : vector<8x128xf32>
    %c0_111 = arith.constant 0 : index
    %c0_112 = arith.constant 0 : index
    %240 = vector.load %arg12[%c0_111, %c0_112] : memref<8x128xf32, #tpu.memory_space<vmem>>, vector<8x128xf32>
    %241 = arith.mulf %231, %240 : vector<8x128xf32>
    %242 = arith.mulf %225, %233 : vector<8x128xf32>
    %243 = arith.addf %241, %242 : vector<8x128xf32>
    %244 = math.tanh %243 : vector<8x128xf32>
    %245 = arith.mulf %239, %244 : vector<8x128xf32>
    %c0_113 = arith.constant 0 : index
    %c0_114 = arith.constant 0 : index
    %246 = vector.load %arg12[%c0_113, %c0_114] : memref<8x128xf32, #tpu.memory_space<vmem>>, vector<8x128xf32>
    tpu.vector_store %arg12[%c0_113, %c0_114], %243 {strides = array<i32>} : memref<8x128xf32, #tpu.memory_space<vmem>>, vector<8x128xf32>,
    %247 = arith.truncf %245 : vector<8x128xf32> to vector<8x128xbf16>
    %c0_115 = arith.constant 0 : index
    %c0_116 = arith.constant 0 : index
    %248 = vector.load %arg11[%c0_115, %c0_116] : memref<8x128xbf16, #tpu.memory_space<vmem>>, vector<8x128xbf16>
    tpu.vector_store %arg11[%c0_115, %c0_116], %247 {strides = array<i32>} : memref<8x128xbf16, #tpu.memory_space<vmem>>, vector<8x128xbf16>,
    %249 = arith.index_cast %c5_i32 : i32 to index
    %c0_117 = arith.constant 0 : index
    %c0_118 = arith.constant 0 : index
    %250 = vector.load %arg6[%249, %c0_117, %c0_118] : memref<8x8x128xf32, #tpu.memory_space<vmem>>, vector<1x8x128xf32>
    %251 = vector.shape_cast %250 : vector<1x8x128xf32> to vector<8x128xf32>
    %252 = vector.shape_cast %245 : vector<8x128xf32> to vector<1x8x128xf32>
    tpu.vector_store %arg6[%249, %c0_117, %c0_118], %252 {strides = array<i32>} : memref<8x8x128xf32, #tpu.memory_space<vmem>>, vector<1x8x128xf32>,
    %c6_i32 = arith.constant 6 : i32
    %253 = arith.index_cast %c6_i32 : i32 to index
    %c0_119 = arith.constant 0 : index
    %c0_120 = arith.constant 0 : index
    %254 = vector.load %arg10[%253, %c0_119, %c0_120] : memref<8x8x512xf32, #tpu.memory_space<vmem>>, vector<1x8x512xf32>
    %255 = vector.shape_cast %254 : vector<1x8x512xf32> to vector<8x512xf32>
    %c0_121 = arith.constant 0 : index
    %c0_122 = arith.constant 0 : index
    %256 = vector.load %arg11[%c0_121, %c0_122] : memref<8x128xbf16, #tpu.memory_space<vmem>>, vector<8x128xbf16>
    %c0_123 = arith.constant 0 : index
    %c0_124 = arith.constant 0 : index
    %257 = vector.load %arg9[%c0_123, %c0_124] : memref<128x512xbf16, #tpu.memory_space<vmem>>, vector<128x512xbf16>
    %cst_125 = arith.constant dense<0.000000e+00> : vector<8x512xf32>
    %258 = tpu.matmul %256, %257, %cst_125 {dimension_numbers = #tpu.dot_dimension_numbers<[1], [0], [0], [1], [0, 0, 1, 1], [], []>} : vector<8x128xbf16>, vector<128x512xbf16>, vector<8x512xf32> -> vector<8x512xf32>
    %259 = arith.addf %255, %258 : vector<8x512xf32>
    %260 = vector.extract_strided_slice %259 {offsets = [0, 0], sizes = [8, 128], strides = [1, 1]} : vector<8x512xf32> to vector<8x128xf32>
    %261 = arith.negf %260 : vector<8x128xf32>
    %262 = math.exp %261 : vector<8x128xf32>
    %cst_126 = arith.constant 1.000000e+00 : f32
    %263 = vector.broadcast %cst_126 : f32 to vector<8x128xf32>
    %264 = arith.addf %263, %262 : vector<8x128xf32>
    %265 = arith.divf %263, %264 : vector<8x128xf32>
    %266 = vector.extract_strided_slice %259 {offsets = [0, 128], sizes = [8, 128], strides = [1, 1]} : vector<8x512xf32> to vector<8x128xf32>
    %267 = arith.negf %266 : vector<8x128xf32>
    %268 = math.exp %267 : vector<8x128xf32>
    %cst_127 = arith.constant 1.000000e+00 : f32
    %269 = vector.broadcast %cst_127 : f32 to vector<8x128xf32>
    %270 = arith.addf %269, %268 : vector<8x128xf32>
    %271 = arith.divf %269, %270 : vector<8x128xf32>
    %272 = vector.extract_strided_slice %259 {offsets = [0, 256], sizes = [8, 128], strides = [1, 1]} : vector<8x512xf32> to vector<8x128xf32>
    %273 = math.tanh %272 : vector<8x128xf32>
    %274 = vector.extract_strided_slice %259 {offsets = [0, 384], sizes = [8, 128], strides = [1, 1]} : vector<8x512xf32> to vector<8x128xf32>
    %275 = arith.negf %274 : vector<8x128xf32>
    %276 = math.exp %275 : vector<8x128xf32>
    %cst_128 = arith.constant 1.000000e+00 : f32
    %277 = vector.broadcast %cst_128 : f32 to vector<8x128xf32>
    %278 = arith.addf %277, %276 : vector<8x128xf32>
    %279 = arith.divf %277, %278 : vector<8x128xf32>
    %c0_129 = arith.constant 0 : index
    %c0_130 = arith.constant 0 : index
    %280 = vector.load %arg12[%c0_129, %c0_130] : memref<8x128xf32, #tpu.memory_space<vmem>>, vector<8x128xf32>
    %281 = arith.mulf %271, %280 : vector<8x128xf32>
    %282 = arith.mulf %265, %273 : vector<8x128xf32>
    %283 = arith.addf %281, %282 : vector<8x128xf32>
    %284 = math.tanh %283 : vector<8x128xf32>
    %285 = arith.mulf %279, %284 : vector<8x128xf32>
    %c0_131 = arith.constant 0 : index
    %c0_132 = arith.constant 0 : index
    %286 = vector.load %arg12[%c0_131, %c0_132] : memref<8x128xf32, #tpu.memory_space<vmem>>, vector<8x128xf32>
    tpu.vector_store %arg12[%c0_131, %c0_132], %283 {strides = array<i32>} : memref<8x128xf32, #tpu.memory_space<vmem>>, vector<8x128xf32>,
    %287 = arith.truncf %285 : vector<8x128xf32> to vector<8x128xbf16>
    %c0_133 = arith.constant 0 : index
    %c0_134 = arith.constant 0 : index
    %288 = vector.load %arg11[%c0_133, %c0_134] : memref<8x128xbf16, #tpu.memory_space<vmem>>, vector<8x128xbf16>
    tpu.vector_store %arg11[%c0_133, %c0_134], %287 {strides = array<i32>} : memref<8x128xbf16, #tpu.memory_space<vmem>>, vector<8x128xbf16>,
    %289 = arith.index_cast %c6_i32 : i32 to index
    %c0_135 = arith.constant 0 : index
    %c0_136 = arith.constant 0 : index
    %290 = vector.load %arg6[%289, %c0_135, %c0_136] : memref<8x8x128xf32, #tpu.memory_space<vmem>>, vector<1x8x128xf32>
    %291 = vector.shape_cast %290 : vector<1x8x128xf32> to vector<8x128xf32>
    %292 = vector.shape_cast %285 : vector<8x128xf32> to vector<1x8x128xf32>
    tpu.vector_store %arg6[%289, %c0_135, %c0_136], %292 {strides = array<i32>} : memref<8x8x128xf32, #tpu.memory_space<vmem>>, vector<1x8x128xf32>,
    %c7_i32 = arith.constant 7 : i32
    %293 = arith.index_cast %c7_i32 : i32 to index
    %c0_137 = arith.constant 0 : index
    %c0_138 = arith.constant 0 : index
    %294 = vector.load %arg10[%293, %c0_137, %c0_138] : memref<8x8x512xf32, #tpu.memory_space<vmem>>, vector<1x8x512xf32>
    %295 = vector.shape_cast %294 : vector<1x8x512xf32> to vector<8x512xf32>
    %c0_139 = arith.constant 0 : index
    %c0_140 = arith.constant 0 : index
    %296 = vector.load %arg11[%c0_139, %c0_140] : memref<8x128xbf16, #tpu.memory_space<vmem>>, vector<8x128xbf16>
    %c0_141 = arith.constant 0 : index
    %c0_142 = arith.constant 0 : index
    %297 = vector.load %arg9[%c0_141, %c0_142] : memref<128x512xbf16, #tpu.memory_space<vmem>>, vector<128x512xbf16>
    %cst_143 = arith.constant dense<0.000000e+00> : vector<8x512xf32>
    %298 = tpu.matmul %296, %297, %cst_143 {dimension_numbers = #tpu.dot_dimension_numbers<[1], [0], [0], [1], [0, 0, 1, 1], [], []>} : vector<8x128xbf16>, vector<128x512xbf16>, vector<8x512xf32> -> vector<8x512xf32>
    %299 = arith.addf %295, %298 : vector<8x512xf32>
    %300 = vector.extract_strided_slice %299 {offsets = [0, 0], sizes = [8, 128], strides = [1, 1]} : vector<8x512xf32> to vector<8x128xf32>
    %301 = arith.negf %300 : vector<8x128xf32>
    %302 = math.exp %301 : vector<8x128xf32>
    %cst_144 = arith.constant 1.000000e+00 : f32
    %303 = vector.broadcast %cst_144 : f32 to vector<8x128xf32>
    %304 = arith.addf %303, %302 : vector<8x128xf32>
    %305 = arith.divf %303, %304 : vector<8x128xf32>
    %306 = vector.extract_strided_slice %299 {offsets = [0, 128], sizes = [8, 128], strides = [1, 1]} : vector<8x512xf32> to vector<8x128xf32>
    %307 = arith.negf %306 : vector<8x128xf32>
    %308 = math.exp %307 : vector<8x128xf32>
    %cst_145 = arith.constant 1.000000e+00 : f32
    %309 = vector.broadcast %cst_145 : f32 to vector<8x128xf32>
    %310 = arith.addf %309, %308 : vector<8x128xf32>
    %311 = arith.divf %309, %310 : vector<8x128xf32>
    %312 = vector.extract_strided_slice %299 {offsets = [0, 256], sizes = [8, 128], strides = [1, 1]} : vector<8x512xf32> to vector<8x128xf32>
    %313 = math.tanh %312 : vector<8x128xf32>
    %314 = vector.extract_strided_slice %299 {offsets = [0, 384], sizes = [8, 128], strides = [1, 1]} : vector<8x512xf32> to vector<8x128xf32>
    %315 = arith.negf %314 : vector<8x128xf32>
    %316 = math.exp %315 : vector<8x128xf32>
    %cst_146 = arith.constant 1.000000e+00 : f32
    %317 = vector.broadcast %cst_146 : f32 to vector<8x128xf32>
    %318 = arith.addf %317, %316 : vector<8x128xf32>
    %319 = arith.divf %317, %318 : vector<8x128xf32>
    %c0_147 = arith.constant 0 : index
    %c0_148 = arith.constant 0 : index
    %320 = vector.load %arg12[%c0_147, %c0_148] : memref<8x128xf32, #tpu.memory_space<vmem>>, vector<8x128xf32>
    %321 = arith.mulf %311, %320 : vector<8x128xf32>
    %322 = arith.mulf %305, %313 : vector<8x128xf32>
    %323 = arith.addf %321, %322 : vector<8x128xf32>
    %324 = math.tanh %323 : vector<8x128xf32>
    %325 = arith.mulf %319, %324 : vector<8x128xf32>
    %c0_149 = arith.constant 0 : index
    %c0_150 = arith.constant 0 : index
    %326 = vector.load %arg12[%c0_149, %c0_150] : memref<8x128xf32, #tpu.memory_space<vmem>>, vector<8x128xf32>
    tpu.vector_store %arg12[%c0_149, %c0_150], %323 {strides = array<i32>} : memref<8x128xf32, #tpu.memory_space<vmem>>, vector<8x128xf32>,
    %327 = arith.truncf %325 : vector<8x128xf32> to vector<8x128xbf16>
    %c0_151 = arith.constant 0 : index
    %c0_152 = arith.constant 0 : index
    %328 = vector.load %arg11[%c0_151, %c0_152] : memref<8x128xbf16, #tpu.memory_space<vmem>>, vector<8x128xbf16>
    tpu.vector_store %arg11[%c0_151, %c0_152], %327 {strides = array<i32>} : memref<8x128xbf16, #tpu.memory_space<vmem>>, vector<8x128xbf16>,
    %329 = arith.index_cast %c7_i32 : i32 to index
    %c0_153 = arith.constant 0 : index
    %c0_154 = arith.constant 0 : index
    %330 = vector.load %arg6[%329, %c0_153, %c0_154] : memref<8x8x128xf32, #tpu.memory_space<vmem>>, vector<1x8x128xf32>
    %331 = vector.shape_cast %330 : vector<1x8x128xf32> to vector<8x128xf32>
    %332 = vector.shape_cast %325 : vector<8x128xf32> to vector<1x8x128xf32>
    tpu.vector_store %arg6[%329, %c0_153, %c0_154], %332 {strides = array<i32>} : memref<8x8x128xf32, #tpu.memory_space<vmem>>, vector<1x8x128xf32>,
    %c8_i32 = arith.constant 8 : i32
    %c0_155 = arith.constant 0 : index
    %c0_156 = arith.constant 0 : index
    %333 = vector.load %arg12[%c0_155, %c0_156] : memref<8x128xf32, #tpu.memory_space<vmem>>, vector<8x128xf32>
    %c0_157 = arith.constant 0 : index
    %c0_158 = arith.constant 0 : index
    %334 = vector.load %arg7[%c0_157, %c0_158] : memref<8x128xf32, #tpu.memory_space<vmem>>, vector<8x128xf32>
    tpu.vector_store %arg7[%c0_157, %c0_158], %333 {strides = array<i32>} : memref<8x128xf32, #tpu.memory_space<vmem>>, vector<8x128xf32>,
    return
  }
  func.func @transform_0(%arg0: i32, %arg1: i32) -> (i32, i32, i32) {
    %c0_i32 = arith.constant 0 : i32
    %c0_i32_0 = arith.constant 0 : i32
    return %arg1, %arg0, %c0_i32 : i32, i32, i32
  }
  func.func @transform_3(%arg0: i32, %arg1: i32) -> (i32, i32) {
    %c0_i32 = arith.constant 0 : i32
    %c0_i32_0 = arith.constant 0 : i32
    %c0_i32_1 = arith.constant 0 : i32
    return %c0_i32, %c0_i32_0 : i32, i32
  }
  func.func @transform_4(%arg0: i32, %arg1: i32) -> (i32, i32, i32) {
    %c0_i32 = arith.constant 0 : i32
    %c0_i32_0 = arith.constant 0 : i32
    return %arg1, %arg0, %c0_i32 : i32, i32, i32
  }
  func.func @transform_5(%arg0: i32, %arg1: i32) -> (i32, i32) {
    %c0_i32 = arith.constant 0 : i32
    %c0_i32_0 = arith.constant 0 : i32
    return %arg0, %c0_i32 : i32, i32
  }
}

</mosaic_0001>

<llo_original>
// kernel: lstm_forward.1
$region0: #{lstm_forward.1}
  #allocation0 [shape = 'u32[]', space=smem, size = 0x4, offset = 0x4, fixed_abs, tag = 'smem constant byte address 0x4 - core index']
  #allocation1 [shape = 'u32[144,128]{1,0:T(1,128)}', space=vmem, size = 0x12000, scoped, tag = 'internal scratch']
  #allocation2 [shape = 'bf16[128,512]{1,0:T(16,128)(2,1)}', space=vmem, size = 0x20000, scoped, tag = 'scratch operand']
  #allocation3 [shape = 'bf16[128,512]{1,0:T(16,128)(2,1)}', space=vmem, size = 0x20000, scoped, tag = 'scratch operand']
  #allocation4 [shape = 'f32[8,8,512]{2,1,0:T(8,128)}', space=vmem, size = 0x20000, scoped, tag = 'scratch operand']
  #allocation5 [shape = 'bf16[8,128]{1,0:T(8,128)(2,1)}', space=vmem, size = 0x800, scoped, tag = 'scratch operand']
  #allocation6 [shape = 'f32[8,128]{1,0:T(8,128)}', space=vmem, size = 0x1000, scoped, tag = 'scratch operand']
  #allocation7 [shape = 's32[2]{0}', space=sflag, size = 0x8, scoped, tag = 'scratch operand']
  #allocation10 [shape = 's32[]', space=sflag, size = 0x4, offset = 0, fixed_abs, tag = 'sflag constant byte address 0x0 - dummy sync flag']
  #allocation11 [shape = 's32[]', space=sflag, size = 0x4, offset = 0, fixed_abs, tag = 'sflag constant byte address 0x0 - dummy sync flag']
  %s0 = inlined_call_operand.vmem [shape: f32[8,8,128], index: 0, kind: input, shape index: {}]
  %s1 = inlined_call_operand.vmem [shape: bf16[128,512], index: 1, kind: input, shape index: {}]
  %s2 = inlined_call_operand.vmem [shape: bf16[128,512], index: 2, kind: input, shape index: {}]
  %s3 = inlined_call_operand.vmem [shape: f32[1,512], index: 3, kind: input, shape index: {}]
  %s4 = inlined_call_operand.vmem [shape: f32[8,8,128], index: 4, kind: output, shape index: {0}]
  %s5 = inlined_call_operand.hbm [shape: f32[8,128], index: 5, kind: output, shape index: {1}]
  %6 = xla_tuple %s4, %s5
  %s7 = sld [smem:[#allocation0]]
  $region104: #{lstm_forward.1} parent=0
    _
  %s9 = ssub.s32 1, %s7
  %s10 = scalar_select 0, %s9, %s7
  $region1: #{lstm_forward.1} parent=0
    #allocation8 [shape = 'u8[4096]{0}', space=vmem, size = 0x1000, scoped, tag = 'output window, operand 1, single buffered']
    #allocation9 [shape = 's32[1]{0}', space=sflag, size = 0x4, scoped, tag = 'scoped memory for lstm_forward.1']
    %11 = vsyncpa [#allocation9], 0
    // Predicated region
    $region2: #{lstm_forward.1} parent=1 // pred_check
      _
    $region3: #{lstm_forward.1} parent=1 // pred_check_branch
      %13 = sbr.rel (0) target = $region5
    $region4: #{lstm_forward.1} parent=1 // pred_region
      _
    $region5: #{lstm_forward.1} parent=1 // pred_fallthru
      _
    // Predicated region
    $region6: #{lstm_forward.1} parent=1 // pred_check
      _
    $region7: #{lstm_forward.1} parent=1 // pred_check_branch
      %15 = sbr.rel (0) target = $region9
    $region8: #{lstm_forward.1} parent=1 // pred_region
      _
    $region9: #{lstm_forward.1} parent=1 // pred_fallthru
      _
    %p17 = scmp.eq.s32.totalorder 0, 0
    // Predicated region
    $region10: #{lstm_forward.1} parent=1 // pred_check
      %p18 = pneg %p17
    $region11: #{lstm_forward.1} parent=1 // pred_check_branch
      %20 = sbr.rel (%p18) target = $region13
    $region12: #{lstm_forward.1} parent=1 // pred_region
      %p22 = scmp.lt.u32.totalorder 4, 8
      %p23 = pneg %p22
      // Predicated region
      $region14: #{lstm_forward.1} parent=12 // pred_check
        _
      $region15: #{lstm_forward.1} parent=12 // pred_check_branch
        %25 = sbr.rel (%p22) target = $region17
      $region16: #{lstm_forward.1} parent=12 // pred_region
        %s166 = sand.u32 4, 7
        %p167 = scmp.eq.s32.totalorder %s166, 0
        %p168 = pneg %p167
        // Predicated region
        $region29: #{lstm_forward.1} parent=16 // pred_check
          _
        $region30: #{lstm_forward.1} parent=16 // pred_check_branch
          %170 = sbr.rel (%p167) target = $region32
        $region31: #{lstm_forward.1} parent=16 // pred_region
          %s171 = sand.u32 4, 7
          %s172 = ssub.s32 4, %s171
          %s173 = scalar_lea.vmem %s1, %s172
          %s174 = ssub.s32 4, %s171
          %s175 = scalar_lea.vmem [#allocation2], %s174
          loop: start=0, step=1, limit=1
          $region33: #{lstm_forward.1} parent=31 // loop_pre_header
            _
          $region34: #{lstm_forward.1} parent=31 // loop_header
            %s177 = sphi 0, %s181
            %p178 = scmp.ge.s32.totalorder %s177, 1
            %s182 = sphi %s1, %s1
            %s183 = sphi [#allocation2], [#allocation2]
          $region35: #{lstm_forward.1} parent=31 // loop_header_branch
            %180 = sbr.rel (%p178) target = $region39
          $region36: #{lstm_forward.1} parent=31 // loop_body
            _
          $region37: #{lstm_forward.1} parent=31 // loop_footer
            %s181 = sadd.s32 1, %s177
          $region38: #{lstm_forward.1} parent=31 // loop_footer_branch
            %176 = sbr.rel target = $region34
          $region39: #{lstm_forward.1} parent=31 // loop_exit
            _
          %s184 = sshllo.u32 0, %s171
          loop: start=0, step=1, limit=1
          $region40: #{lstm_forward.1} parent=31 // loop_pre_header
            _
          $region41: #{lstm_forward.1} parent=31 // loop_header
            %s186 = sphi 0, %s190
            %p187 = scmp.ge.s32.totalorder %s186, 1
            %s191 = sphi %s173, %s173
            %s192 = sphi %s175, %s175
          $region42: #{lstm_forward.1} parent=31 // loop_header_branch
            %189 = sbr.rel (%p187) target = $region46
          $region43: #{lstm_forward.1} parent=31 // loop_body
            %v193 = vld [vmem:[%s191] sm:%s184]
            %194 = vst [vmem:[%s192] sm:%s184] %v193
            %v195 = vld [vmem:[%s191 + $0x10] sm:%s184]
            %196 = vst [vmem:[%s192 + $0x4] sm:%s184] %v195
            %v197 = vld [vmem:[%s191 + $0x4] sm:%s184]
            %198 = vst [vmem:[%s192 + $0x8] sm:%s184] %v197
            %v199 = vld [vmem:[%s191 + $0x14] sm:%s184]
            %200 = vst [vmem:[%s192 + $0xc] sm:%s184] %v199
            %v201 = vld [vmem:[%s191 + $0x8] sm:%s184]
            %202 = vst [vmem:[%s192 + $0x10] sm:%s184] %v201
            %v203 = vld [vmem:[%s191 + $0x18] sm:%s184]
            %204 = vst [vmem:[%s192 + $0x14] sm:%s184] %v203
            %v205 = vld [vmem:[%s191 + $0xc] sm:%s184]
            %206 = vst [vmem:[%s192 + $0x18] sm:%s184] %v205
            %v207 = vld [vmem:[%s191 + $0x1c] sm:%s184]
            %208 = vst [vmem:[%s192 + $0x1c] sm:%s184] %v207
            %v209 = vld [vmem:[%s191 + $0x20] sm:%s184]
            %210 = vst [vmem:[%s192 + $0x20] sm:%s184] %v209
            %v211 = vld [vmem:[%s191 + $0x30] sm:%s184]
            %212 = vst [vmem:[%s192 + $0x24] sm:%s184] %v211
            %v213 = vld [vmem:[%s191 + $0x24] sm:%s184]
            %214 = vst [vmem:[%s192 + $0x28] sm:%s184] %v213
            %v215 = vld [vmem:[%s191 + $0x34] sm:%s184]
            %216 = vst [vmem:[%s192 + $0x2c] sm:%s184] %v215
            %v217 = vld [vmem:[%s191 + $0x28] sm:%s184]
            %218 = vst [vmem:[%s192 + $0x30] sm:%s184] %v217
            %v219 = vld [vmem:[%s191 + $0x38] sm:%s184]
            %220 = vst [vmem:[%s192 + $0x34] sm:%s184] %v219
            %v221 = vld [vmem:[%s191 + $0x2c] sm:%s184]
            %222 = vst [vmem:[%s192 + $0x38] sm:%s184] %v221
            %v223 = vld [vmem:[%s191 + $0x3c] sm:%s184]
            %224 = vst [vmem:[%s192 + $0x3c] sm:%s184] %v223
            %v225 = vld [vmem:[%s191 + $0x40] sm:%s184]
            %226 = vst [vmem:[%s192 + $0x40] sm:%s184] %v225
            %v227 = vld [vmem:[%s191 + $0x50] sm:%s184]
            %228 = vst [vmem:[%s192 + $0x44] sm:%s184] %v227
            %v229 = vld [vmem:[%s191 + $0x44] sm:%s184]
            %230 = vst [vmem:[%s192 + $0x48] sm:%s184] %v229
            %v231 = vld [vmem:[%s191 + $0x54] sm:%s184]
            %232 = vst [vmem:[%s192 + $0x4c] sm:%s184] %v231
            %v233 = vld [vmem:[%s191 + $0x48] sm:%s184]
            %234 = vst [vmem:[%s192 + $0x50] sm:%s184] %v233
            %v235 = vld [vmem:[%s191 + $0x58] sm:%s184]
            %236 = vst [vmem:[%s192 + $0x54] sm:%s184] %v235
            %v237 = vld [vmem:[%s191 + $0x4c] sm:%s184]
            %238 = vst [vmem:[%s192 + $0x58] sm:%s184] %v237
            %v239 = vld [vmem:[%s191 + $0x5c] sm:%s184]
            %240 = vst [vmem:[%s192 + $0x5c] sm:%s184] %v239
            %v241 = vld [vmem:[%s191 + $0x60] sm:%s184]
            %242 = vst [vmem:[%s192 + $0x60] sm:%s184] %v241
            %v243 = vld [vmem:[%s191 + $0x70] sm:%s184]
            %244 = vst [vmem:[%s192 + $0x64] sm:%s184] %v243
            %v245 = vld [vmem:[%s191 + $0x64] sm:%s184]
            %246 = vst [vmem:[%s192 + $0x68] sm:%s184] %v245
            %v247 = vld [vmem:[%s191 + $0x74] sm:%s184]
            %248 = vst [vmem:[%s192 + $0x6c] sm:%s184] %v247
            %v249 = vld [vmem:[%s191 + $0x68] sm:%s184]
            %250 = vst [vmem:[%s192 + $0x70] sm:%s184] %v249
            %v251 = vld [vmem:[%s191 + $0x78] sm:%s184]
            %252 = vst [vmem:[%s192 + $0x74] sm:%s184] %v251
            %v253 = vld [vmem:[%s191 + $0x6c] sm:%s184]
            %254 = vst [vmem:[%s192 + $0x78] sm:%s184] %v253
            %v255 = vld [vmem:[%s191 + $0x7c] sm:%s184]
            %256 = vst [vmem:[%s192 + $0x7c] sm:%s184] %v255
            %v257 = vld [vmem:[%s191 + $0x80] sm:%s184]
            %258 = vst [vmem:[%s192 + $0x80] sm:%s184] %v257
            %v259 = vld [vmem:[%s191 + $0x90] sm:%s184]
            %260 = vst [vmem:[%s192 + $0x84] sm:%s184] %v259
            %v261 = vld [vmem:[%s191 + $0x84] sm:%s184]
            %262 = vst [vmem:[%s192 + $0x88] sm:%s184] %v261
            %v263 = vld [vmem:[%s191 + $0x94] sm:%s184]
            %264 = vst [vmem:[%s192 + $0x8c] sm:%s184] %v263
            %v265 = vld [vmem:[%s191 + $0x88] sm:%s184]
            %266 = vst [vmem:[%s192 + $0x90] sm:%s184] %v265
            %v267 = vld [vmem:[%s191 + $0x98] sm:%s184]
            %268 = vst [vmem:[%s192 + $0x94] sm:%s184] %v267
            %v269 = vld [vmem:[%s191 + $0x8c] sm:%s184]
            %270 = vst [vmem:[%s192 + $0x98] sm:%s184] %v269
            %v271 = vld [vmem:[%s191 + $0x9c] sm:%s184]
            %272 = vst [vmem:[%s192 + $0x9c] sm:%s184] %v271
            %v273 = vld [vmem:[%s191 + $0xa0] sm:%s184]
            %274 = vst [vmem:[%s192 + $0xa0] sm:%s184] %v273
            %v275 = vld [vmem:[%s191 + $0xb0] sm:%s184]
            %276 = vst [vmem:[%s192 + $0xa4] sm:%s184] %v275
            %v277 = vld [vmem:[%s191 + $0xa4] sm:%s184]
            %278 = vst [vmem:[%s192 + $0xa8] sm:%s184] %v277
            %v279 = vld [vmem:[%s191 + $0xb4] sm:%s184]
            %280 = vst [vmem:[%s192 + $0xac] sm:%s184] %v279
            %v281 = vld [vmem:[%s191 + $0xa8] sm:%s184]
            %282 = vst [vmem:[%s192 + $0xb0] sm:%s184] %v281
            %v283 = vld [vmem:[%s191 + $0xb8] sm:%s184]
            %284 = vst [vmem:[%s192 + $0xb4] sm:%s184] %v283
            %v285 = vld [vmem:[%s191 + $0xac] sm:%s184]
            %286 = vst [vmem:[%s192 + $0xb8] sm:%s184] %v285
            %v287 = vld [vmem:[%s191 + $0xbc] sm:%s184]
            %288 = vst [vmem:[%s192 + $0xbc] sm:%s184] %v287
            %v289 = vld [vmem:[%s191 + $0xc0] sm:%s184]
            %290 = vst [vmem:[%s192 + $0xc0] sm:%s184] %v289
            %v291 = vld [vmem:[%s191 + $0xd0] sm:%s184]
            %292 = vst [vmem:[%s192 + $0xc4] sm:%s184] %v291
            %v293 = vld [vmem:[%s191 + $0xc4] sm:%s184]
            %294 = vst [vmem:[%s192 + $0xc8] sm:%s184] %v293
            %v295 = vld [vmem:[%s191 + $0xd4] sm:%s184]
            %296 = vst [vmem:[%s192 + $0xcc] sm:%s184] %v295
            %v297 = vld [vmem:[%s191 + $0xc8] sm:%s184]
            %298 = vst [vmem:[%s192 + $0xd0] sm:%s184] %v297
            %v299 = vld [vmem:[%s191 + $0xd8] sm:%s184]
            %300 = vst [vmem:[%s192 + $0xd4] sm:%s184] %v299
            %v301 = vld [vmem:[%s191 + $0xcc] sm:%s184]
            %302 = vst [vmem:[%s192 + $0xd8] sm:%s184] %v301
            %v303 = vld [vmem:[%s191 + $0xdc] sm:%s184]
            %304 = vst [vmem:[%s192 + $0xdc] sm:%s184] %v303
            %v305 = vld [vmem:[%s191 + $0xe0] sm:%s184]
            %306 = vst [vmem:[%s192 + $0xe0] sm:%s184] %v305
            %v307 = vld [vmem:[%s191 + $0xf0] sm:%s184]
            %308 = vst [vmem:[%s192 + $0xe4] sm:%s184] %v307
            %v309 = vld [vmem:[%s191 + $0xe4] sm:%s184]
            %310 = vst [vmem:[%s192 + $0xe8] sm:%s184] %v309
            %v311 = vld [vmem:[%s191 + $0xf4] sm:%s184]
            %312 = vst [vmem:[%s192 + $0xec] sm:%s184] %v311
            %v313 = vld [vmem:[%s191 + $0xe8] sm:%s184]
            %314 = vst [vmem:[%s192 + $0xf0] sm:%s184] %v313
            %v315 = vld [vmem:[%s191 + $0xf8] sm:%s184]
            %316 = vst [vmem:[%s192 + $0xf4] sm:%s184] %v315
            %v317 = vld [vmem:[%s191 + $0xec] sm:%s184]
            %318 = vst [vmem:[%s192 + $0xf8] sm:%s184] %v317
            %v319 = vld [vmem:[%s191 + $0xfc] sm:%s184]
            %320 = vst [vmem:[%s192 + $0xfc] sm:%s184] %v319
          $region44: #{lstm_forward.1} parent=31 // loop_footer
            %s190 = sadd.s32 1, %s186
          $region45: #{lstm_forward.1} parent=31 // loop_footer_branch
            %185 = sbr.rel target = $region41
          $region46: #{lstm_forward.1} parent=31 // loop_exit
            _
        $region32: #{lstm_forward.1} parent=16 // pred_fallthru
          _
      $region17: #{lstm_forward.1} parent=12 // pred_fallthru
        _
      // Predicated region
      $region18: #{lstm_forward.1} parent=12 // pred_check
        %p26 = pneg %p22
      $region19: #{lstm_forward.1} parent=12 // pred_check_branch
        %28 = sbr.rel (%p26) target = $region21
      $region20: #{lstm_forward.1} parent=12 // pred_region
        %s29 = sshllo.u32 0, 4
        loop: start=0, step=1, limit=1
        $region22: #{lstm_forward.1} parent=20 // loop_pre_header
          _
        $region23: #{lstm_forward.1} parent=20 // loop_header
          %s31 = sphi 0, %s35
          %p32 = scmp.ge.s32.totalorder %s31, 1
          %s36 = sphi %s1, %s1
          %s37 = sphi [#allocation2], [#allocation2]
        $region24: #{lstm_forward.1} parent=20 // loop_header_branch
          %34 = sbr.rel (%p32) target = $region28
        $region25: #{lstm_forward.1} parent=20 // loop_body
          %v38 = vld [vmem:[%s36] sm:%s29]
          %39 = vst [vmem:[%s37] sm:%s29] %v38
          %v40 = vld [vmem:[%s36 + $0x10] sm:%s29]
          %41 = vst [vmem:[%s37 + $0x4] sm:%s29] %v40
          %v42 = vld [vmem:[%s36 + $0x4] sm:%s29]
          %43 = vst [vmem:[%s37 + $0x8] sm:%s29] %v42
          %v44 = vld [vmem:[%s36 + $0x14] sm:%s29]
          %45 = vst [vmem:[%s37 + $0xc] sm:%s29] %v44
          %v46 = vld [vmem:[%s36 + $0x8] sm:%s29]
          %47 = vst [vmem:[%s37 + $0x10] sm:%s29] %v46
          %v48 = vld [vmem:[%s36 + $0x18] sm:%s29]
          %49 = vst [vmem:[%s37 + $0x14] sm:%s29] %v48
          %v50 = vld [vmem:[%s36 + $0xc] sm:%s29]
          %51 = vst [vmem:[%s37 + $0x18] sm:%s29] %v50
          %v52 = vld [vmem:[%s36 + $0x1c] sm:%s29]
          %53 = vst [vmem:[%s37 + $0x1c] sm:%s29] %v52
          %v54 = vld [vmem:[%s36 + $0x20] sm:%s29]
          %55 = vst [vmem:[%s37 + $0x20] sm:%s29] %v54
          %v56 = vld [vmem:[%s36 + $0x30] sm:%s29]
          %57 = vst [vmem:[%s37 + $0x24] sm:%s29] %v56
          %v58 = vld [vmem:[%s36 + $0x24] sm:%s29]
          %59 = vst [vmem:[%s37 + $0x28] sm:%s29] %v58
          %v60 = vld [vmem:[%s36 + $0x34] sm:%s29]
          %61 = vst [vmem:[%s37 + $0x2c] sm:%s29] %v60
          %v62 = vld [vmem:[%s36 + $0x28] sm:%s29]
          %63 = vst [vmem:[%s37 + $0x30] sm:%s29] %v62
          %v64 = vld [vmem:[%s36 + $0x38] sm:%s29]
          %65 = vst [vmem:[%s37 + $0x34] sm:%s29] %v64
          %v66 = vld [vmem:[%s36 + $0x2c] sm:%s29]
          %67 = vst [vmem:[%s37 + $0x38] sm:%s29] %v66
          %v68 = vld [vmem:[%s36 + $0x3c] sm:%s29]
          %69 = vst [vmem:[%s37 + $0x3c] sm:%s29] %v68
          %v70 = vld [vmem:[%s36 + $0x40] sm:%s29]
          %71 = vst [vmem:[%s37 + $0x40] sm:%s29] %v70
          %v72 = vld [vmem:[%s36 + $0x50] sm:%s29]
          %73 = vst [vmem:[%s37 + $0x44] sm:%s29] %v72
          %v74 = vld [vmem:[%s36 + $0x44] sm:%s29]
          %75 = vst [vmem:[%s37 + $0x48] sm:%s29] %v74
          %v76 = vld [vmem:[%s36 + $0x54] sm:%s29]
          %77 = vst [vmem:[%s37 + $0x4c] sm:%s29] %v76
          %v78 = vld [vmem:[%s36 + $0x48] sm:%s29]
          %79 = vst [vmem:[%s37 + $0x50] sm:%s29] %v78
          %v80 = vld [vmem:[%s36 + $0x58] sm:%s29]
          %81 = vst [vmem:[%s37 + $0x54] sm:%s29] %v80
          %v82 = vld [vmem:[%s36 + $0x4c] sm:%s29]
          %83 = vst [vmem:[%s37 + $0x58] sm:%s29] %v82
          %v84 = vld [vmem:[%s36 + $0x5c] sm:%s29]
          %85 = vst [vmem:[%s37 + $0x5c] sm:%s29] %v84
          %v86 = vld [vmem:[%s36 + $0x60] sm:%s29]
          %87 = vst [vmem:[%s37 + $0x60] sm:%s29] %v86
          %v88 = vld [vmem:[%s36 + $0x70] sm:%s29]
          %89 = vst [vmem:[%s37 + $0x64] sm:%s29] %v88
          %v90 = vld [vmem:[%s36 + $0x64] sm:%s29]
          %91 = vst [vmem:[%s37 + $0x68] sm:%s29] %v90
          %v92 = vld [vmem:[%s36 + $0x74] sm:%s29]
          %93 = vst [vmem:[%s37 + $0x6c] sm:%s29] %v92
          %v94 = vld [vmem:[%s36 + $0x68] sm:%s29]
          %95 = vst [vmem:[%s37 + $0x70] sm:%s29] %v94
          %v96 = vld [vmem:[%s36 + $0x78] sm:%s29]
          %97 = vst [vmem:[%s37 + $0x74] sm:%s29] %v96
          %v98 = vld [vmem:[%s36 + $0x6c] sm:%s29]
          %99 = vst [vmem:[%s37 + $0x78] sm:%s29] %v98
          %v100 = vld [vmem:[%s36 + $0x7c] sm:%s29]
          %101 = vst [vmem:[%s37 + $0x7c] sm:%s29] %v100
          %v102 = vld [vmem:[%s36 + $0x80] sm:%s29]
          %103 = vst [vmem:[%s37 + $0x80] sm:%s29] %v102
          %v104 = vld [vmem:[%s36 + $0x90] sm:%s29]
          %105 = vst [vmem:[%s37 + $0x84] sm:%s29] %v104
          %v106 = vld [vmem:[%s36 + $0x84] sm:%s29]
          %107 = vst [vmem:[%s37 + $0x88] sm:%s29] %v106
          %v108 = vld [vmem:[%s36 + $0x94] sm:%s29]
          %109 = vst [vmem:[%s37 + $0x8c] sm:%s29] %v108
          %v110 = vld [vmem:[%s36 + $0x88] sm:%s29]
          %111 = vst [vmem:[%s37 + $0x90] sm:%s29] %v110
          %v112 = vld [vmem:[%s36 + $0x98] sm:%s29]
          %113 = vst [vmem:[%s37 + $0x94] sm:%s29] %v112
          %v114 = vld [vmem:[%s36 + $0x8c] sm:%s29]
          %115 = vst [vmem:[%s37 + $0x98] sm:%s29] %v114
          %v116 = vld [vmem:[%s36 + $0x9c] sm:%s29]
          %117 = vst [vmem:[%s37 + $0x9c] sm:%s29] %v116
          %v118 = vld [vmem:[%s36 + $0xa0] sm:%s29]
          %119 = vst [vmem:[%s37 + $0xa0] sm:%s29] %v118
          %v120 = vld [vmem:[%s36 + $0xb0] sm:%s29]
          %121 = vst [vmem:[%s37 + $0xa4] sm:%s29] %v120
          %v122 = vld [vmem:[%s36 + $0xa4] sm:%s29]
          %123 = vst [vmem:[%s37 + $0xa8] sm:%s29] %v122
          %v124 = vld [vmem:[%s36 + $0xb4] sm:%s29]
          %125 = vst [vmem:[%s37 + $0xac] sm:%s29] %v124
          %v126 = vld [vmem:[%s36 + $0xa8] sm:%s29]
          %127 = vst [vmem:[%s37 + $0xb0] sm:%s29] %v126
          %v128 = vld [vmem:[%s36 + $0xb8] sm:%s29]
          %129 = vst [vmem:[%s37 + $0xb4] sm:%s29] %v128
          %v130 = vld [vmem:[%s36 + $0xac] sm:%s29]
          %131 = vst [vmem:[%s37 + $0xb8] sm:%s29] %v130
          %v132 = vld [vmem:[%s36 + $0xbc] sm:%s29]
          %133 = vst [vmem:[%s37 + $0xbc] sm:%s29] %v132
          %v134 = vld [vmem:[%s36 + $0xc0] sm:%s29]
          %135 = vst [vmem:[%s37 + $0xc0] sm:%s29] %v134
          %v136 = vld [vmem:[%s36 + $0xd0] sm:%s29]
          %137 = vst [vmem:[%s37 + $0xc4] sm:%s29] %v136
          %v138 = vld [vmem:[%s36 + $0xc4] sm:%s29]
          %139 = vst [vmem:[%s37 + $0xc8] sm:%s29] %v138
          %v140 = vld [vmem:[%s36 + $0xd4] sm:%s29]
          %141 = vst [vmem:[%s37 + $0xcc] sm:%s29] %v140
          %v142 = vld [vmem:[%s36 + $0xc8] sm:%s29]
          %143 = vst [vmem:[%s37 + $0xd0] sm:%s29] %v142
          %v144 = vld [vmem:[%s36 + $0xd8] sm:%s29]
          %145 = vst [vmem:[%s37 + $0xd4] sm:%s29] %v144
          %v146 = vld [vmem:[%s36 + $0xcc] sm:%s29]
          %147 = vst [vmem:[%s37 + $0xd8] sm:%s29] %v146
          %v148 = vld [vmem:[%s36 + $0xdc] sm:%s29]
          %149 = vst [vmem:[%s37 + $0xdc] sm:%s29] %v148
          %v150 = vld [vmem:[%s36 + $0xe0] sm:%s29]
          %151 = vst [vmem:[%s37 + $0xe0] sm:%s29] %v150
          %v152 = vld [vmem:[%s36 + $0xf0] sm:%s29]
          %153 = vst [vmem:[%s37 + $0xe4] sm:%s29] %v152
          %v154 = vld [vmem:[%s36 + $0xe4] sm:%s29]
          %155 = vst [vmem:[%s37 + $0xe8] sm:%s29] %v154
          %v156 = vld [vmem:[%s36 + $0xf4] sm:%s29]
          %157 = vst [vmem:[%s37 + $0xec] sm:%s29] %v156
          %v158 = vld [vmem:[%s36 + $0xe8] sm:%s29]
          %159 = vst [vmem:[%s37 + $0xf0] sm:%s29] %v158
          %v160 = vld [vmem:[%s36 + $0xf8] sm:%s29]
          %161 = vst [vmem:[%s37 + $0xf4] sm:%s29] %v160
          %v162 = vld [vmem:[%s36 + $0xec] sm:%s29]
          %163 = vst [vmem:[%s37 + $0xf8] sm:%s29] %v162
          %v164 = vld [vmem:[%s36 + $0xfc] sm:%s29]
          %165 = vst [vmem:[%s37 + $0xfc] sm:%s29] %v164
        $region26: #{lstm_forward.1} parent=20 // loop_footer
          %s35 = sadd.s32 1, %s31
        $region27: #{lstm_forward.1} parent=20 // loop_footer_branch
          %30 = sbr.rel target = $region23
        $region28: #{lstm_forward.1} parent=20 // loop_exit
          _
      $region21: #{lstm_forward.1} parent=12 // pred_fallthru
        _
      // Predicated region
      $region47: #{lstm_forward.1} parent=12 // pred_check
        _
      $region48: #{lstm_forward.1} parent=12 // pred_check_branch
        %323 = sbr.rel (0) target = $region50
      $region49: #{lstm_forward.1} parent=12 // pred_region
        %324 = vsyncadd [#allocation7], 4096
      $region50: #{lstm_forward.1} parent=12 // pred_fallthru
        _
      %s325 = scalar_lea.sflag [#allocation7], 1
      %p327 = scmp.lt.u32.totalorder 4, 8
      %p328 = pneg %p327
      // Predicated region
      $region51: #{lstm_forward.1} parent=12 // pred_check
        _
      $region52: #{lstm_forward.1} parent=12 // pred_check_branch
        %330 = sbr.rel (%p327) target = $region54
      $region53: #{lstm_forward.1} parent=12 // pred_region
        %s471 = sand.u32 4, 7
        %p472 = scmp.eq.s32.totalorder %s471, 0
        %p473 = pneg %p472
        // Predicated region
        $region66: #{lstm_forward.1} parent=53 // pred_check
          _
        $region67: #{lstm_forward.1} parent=53 // pred_check_branch
          %475 = sbr.rel (%p472) target = $region69
        $region68: #{lstm_forward.1} parent=53 // pred_region
          %s476 = sand.u32 4, 7
          %s477 = ssub.s32 4, %s476
          %s478 = scalar_lea.vmem %s2, %s477
          %s479 = ssub.s32 4, %s476
          %s480 = scalar_lea.vmem [#allocation3], %s479
          loop: start=0, step=1, limit=1
          $region70: #{lstm_forward.1} parent=68 // loop_pre_header
            _
          $region71: #{lstm_forward.1} parent=68 // loop_header
            %s482 = sphi 0, %s486
            %p483 = scmp.ge.s32.totalorder %s482, 1
            %s487 = sphi %s2, %s2
            %s488 = sphi [#allocation3], [#allocation3]
          $region72: #{lstm_forward.1} parent=68 // loop_header_branch
            %485 = sbr.rel (%p483) target = $region76
          $region73: #{lstm_forward.1} parent=68 // loop_body
            _
          $region74: #{lstm_forward.1} parent=68 // loop_footer
            %s486 = sadd.s32 1, %s482
          $region75: #{lstm_forward.1} parent=68 // loop_footer_branch
            %481 = sbr.rel target = $region71
          $region76: #{lstm_forward.1} parent=68 // loop_exit
            _
          %s489 = sshllo.u32 0, %s476
          loop: start=0, step=1, limit=1
          $region77: #{lstm_forward.1} parent=68 // loop_pre_header
            _
          $region78: #{lstm_forward.1} parent=68 // loop_header
            %s491 = sphi 0, %s495
            %p492 = scmp.ge.s32.totalorder %s491, 1
            %s496 = sphi %s478, %s478
            %s497 = sphi %s480, %s480
          $region79: #{lstm_forward.1} parent=68 // loop_header_branch
            %494 = sbr.rel (%p492) target = $region83
          $region80: #{lstm_forward.1} parent=68 // loop_body
            %v498 = vld [vmem:[%s496] sm:%s489]
            %499 = vst [vmem:[%s497] sm:%s489] %v498
            %v500 = vld [vmem:[%s496 + $0x10] sm:%s489]
            %501 = vst [vmem:[%s497 + $0x4] sm:%s489] %v500
            %v502 = vld [vmem:[%s496 + $0x4] sm:%s489]
            %503 = vst [vmem:[%s497 + $0x8] sm:%s489] %v502
            %v504 = vld [vmem:[%s496 + $0x14] sm:%s489]
            %505 = vst [vmem:[%s497 + $0xc] sm:%s489] %v504
            %v506 = vld [vmem:[%s496 + $0x8] sm:%s489]
            %507 = vst [vmem:[%s497 + $0x10] sm:%s489] %v506
            %v508 = vld [vmem:[%s496 + $0x18] sm:%s489]
            %509 = vst [vmem:[%s497 + $0x14] sm:%s489] %v508
            %v510 = vld [vmem:[%s496 + $0xc] sm:%s489]
            %511 = vst [vmem:[%s497 + $0x18] sm:%s489] %v510
            %v512 = vld [vmem:[%s496 + $0x1c] sm:%s489]
            %513 = vst [vmem:[%s497 + $0x1c] sm:%s489] %v512
            %v514 = vld [vmem:[%s496 + $0x20] sm:%s489]
            %515 = vst [vmem:[%s497 + $0x20] sm:%s489] %v514
            %v516 = vld [vmem:[%s496 + $0x30] sm:%s489]
            %517 = vst [vmem:[%s497 + $0x24] sm:%s489] %v516
            %v518 = vld [vmem:[%s496 + $0x24] sm:%s489]
            %519 = vst [vmem:[%s497 + $0x28] sm:%s489] %v518
            %v520 = vld [vmem:[%s496 + $0x34] sm:%s489]
            %521 = vst [vmem:[%s497 + $0x2c] sm:%s489] %v520
            %v522 = vld [vmem:[%s496 + $0x28] sm:%s489]
            %523 = vst [vmem:[%s497 + $0x30] sm:%s489] %v522
            %v524 = vld [vmem:[%s496 + $0x38] sm:%s489]
            %525 = vst [vmem:[%s497 + $0x34] sm:%s489] %v524
            %v526 = vld [vmem:[%s496 + $0x2c] sm:%s489]
            %527 = vst [vmem:[%s497 + $0x38] sm:%s489] %v526
            %v528 = vld [vmem:[%s496 + $0x3c] sm:%s489]
            %529 = vst [vmem:[%s497 + $0x3c] sm:%s489] %v528
            %v530 = vld [vmem:[%s496 + $0x40] sm:%s489]
            %531 = vst [vmem:[%s497 + $0x40] sm:%s489] %v530
            %v532 = vld [vmem:[%s496 + $0x50] sm:%s489]
            %533 = vst [vmem:[%s497 + $0x44] sm:%s489] %v532
            %v534 = vld [vmem:[%s496 + $0x44] sm:%s489]
            %535 = vst [vmem:[%s497 + $0x48] sm:%s489] %v534
            %v536 = vld [vmem:[%s496 + $0x54] sm:%s489]
            %537 = vst [vmem:[%s497 + $0x4c] sm:%s489] %v536
            %v538 = vld [vmem:[%s496 + $0x48] sm:%s489]
            %539 = vst [vmem:[%s497 + $0x50] sm:%s489] %v538
            %v540 = vld [vmem:[%s496 + $0x58] sm:%s489]
            %541 = vst [vmem:[%s497 + $0x54] sm:%s489] %v540
            %v542 = vld [vmem:[%s496 + $0x4c] sm:%s489]
            %543 = vst [vmem:[%s497 + $0x58] sm:%s489] %v542
            %v544 = vld [vmem:[%s496 + $0x5c] sm:%s489]
            %545 = vst [vmem:[%s497 + $0x5c] sm:%s489] %v544
            %v546 = vld [vmem:[%s496 + $0x60] sm:%s489]
            %547 = vst [vmem:[%s497 + $0x60] sm:%s489] %v546
            %v548 = vld [vmem:[%s496 + $0x70] sm:%s489]
            %549 = vst [vmem:[%s497 + $0x64] sm:%s489] %v548
            %v550 = vld [vmem:[%s496 + $0x64] sm:%s489]
            %551 = vst [vmem:[%s497 + $0x68] sm:%s489] %v550
            %v552 = vld [vmem:[%s496 + $0x74] sm:%s489]
            %553 = vst [vmem:[%s497 + $0x6c] sm:%s489] %v552
            %v554 = vld [vmem:[%s496 + $0x68] sm:%s489]
            %555 = vst [vmem:[%s497 + $0x70] sm:%s489] %v554
            %v556 = vld [vmem:[%s496 + $0x78] sm:%s489]
            %557 = vst [vmem:[%s497 + $0x74] sm:%s489] %v556
            %v558 = vld [vmem:[%s496 + $0x6c] sm:%s489]
            %559 = vst [vmem:[%s497 + $0x78] sm:%s489] %v558
            %v560 = vld [vmem:[%s496 + $0x7c] sm:%s489]
            %561 = vst [vmem:[%s497 + $0x7c] sm:%s489] %v560
            %v562 = vld [vmem:[%s496 + $0x80] sm:%s489]
            %563 = vst [vmem:[%s497 + $0x80] sm:%s489] %v562
            %v564 = vld [vmem:[%s496 + $0x90] sm:%s489]
            %565 = vst [vmem:[%s497 + $0x84] sm:%s489] %v564
            %v566 = vld [vmem:[%s496 + $0x84] sm:%s489]
            %567 = vst [vmem:[%s497 + $0x88] sm:%s489] %v566
            %v568 = vld [vmem:[%s496 + $0x94] sm:%s489]
            %569 = vst [vmem:[%s497 + $0x8c] sm:%s489] %v568
            %v570 = vld [vmem:[%s496 + $0x88] sm:%s489]
            %571 = vst [vmem:[%s497 + $0x90] sm:%s489] %v570
            %v572 = vld [vmem:[%s496 + $0x98] sm:%s489]
            %573 = vst [vmem:[%s497 + $0x94] sm:%s489] %v572
            %v574 = vld [vmem:[%s496 + $0x8c] sm:%s489]
            %575 = vst [vmem:[%s497 + $0x98] sm:%s489] %v574
            %v576 = vld [vmem:[%s496 + $0x9c] sm:%s489]
            %577 = vst [vmem:[%s497 + $0x9c] sm:%s489] %v576
            %v578 = vld [vmem:[%s496 + $0xa0] sm:%s489]
            %579 = vst [vmem:[%s497 + $0xa0] sm:%s489] %v578
            %v580 = vld [vmem:[%s496 + $0xb0] sm:%s489]
            %581 = vst [vmem:[%s497 + $0xa4] sm:%s489] %v580
            %v582 = vld [vmem:[%s496 + $0xa4] sm:%s489]
            %583 = vst [vmem:[%s497 + $0xa8] sm:%s489] %v582
            %v584 = vld [vmem:[%s496 + $0xb4] sm:%s489]
            %585 = vst [vmem:[%s497 + $0xac] sm:%s489] %v584
            %v586 = vld [vmem:[%s496 + $0xa8] sm:%s489]
            %587 = vst [vmem:[%s497 + $0xb0] sm:%s489] %v586
            %v588 = vld [vmem:[%s496 + $0xb8] sm:%s489]
            %589 = vst [vmem:[%s497 + $0xb4] sm:%s489] %v588
            %v590 = vld [vmem:[%s496 + $0xac] sm:%s489]
            %591 = vst [vmem:[%s497 + $0xb8] sm:%s489] %v590
            %v592 = vld [vmem:[%s496 + $0xbc] sm:%s489]
            %593 = vst [vmem:[%s497 + $0xbc] sm:%s489] %v592
            %v594 = vld [vmem:[%s496 + $0xc0] sm:%s489]
            %595 = vst [vmem:[%s497 + $0xc0] sm:%s489] %v594
            %v596 = vld [vmem:[%s496 + $0xd0] sm:%s489]
            %597 = vst [vmem:[%s497 + $0xc4] sm:%s489] %v596
            %v598 = vld [vmem:[%s496 + $0xc4] sm:%s489]
            %599 = vst [vmem:[%s497 + $0xc8] sm:%s489] %v598
            %v600 = vld [vmem:[%s496 + $0xd4] sm:%s489]
            %601 = vst [vmem:[%s497 + $0xcc] sm:%s489] %v600
            %v602 = vld [vmem:[%s496 + $0xc8] sm:%s489]
            %603 = vst [vmem:[%s497 + $0xd0] sm:%s489] %v602
            %v604 = vld [vmem:[%s496 + $0xd8] sm:%s489]
            %605 = vst [vmem:[%s497 + $0xd4] sm:%s489] %v604
            %v606 = vld [vmem:[%s496 + $0xcc] sm:%s489]
            %607 = vst [vmem:[%s497 + $0xd8] sm:%s489] %v606
            %v608 = vld [vmem:[%s496 + $0xdc] sm:%s489]
            %609 = vst [vmem:[%s497 + $0xdc] sm:%s489] %v608
            %v610 = vld [vmem:[%s496 + $0xe0] sm:%s489]
            %611 = vst [vmem:[%s497 + $0xe0] sm:%s489] %v610
            %v612 = vld [vmem:[%s496 + $0xf0] sm:%s489]
            %613 = vst [vmem:[%s497 + $0xe4] sm:%s489] %v612
            %v614 = vld [vmem:[%s496 + $0xe4] sm:%s489]
            %615 = vst [vmem:[%s497 + $0xe8] sm:%s489] %v614
            %v616 = vld [vmem:[%s496 + $0xf4] sm:%s489]
            %617 = vst [vmem:[%s497 + $0xec] sm:%s489] %v616
            %v618 = vld [vmem:[%s496 + $0xe8] sm:%s489]
            %619 = vst [vmem:[%s497 + $0xf0] sm:%s489] %v618
            %v620 = vld [vmem:[%s496 + $0xf8] sm:%s489]
            %621 = vst [vmem:[%s497 + $0xf4] sm:%s489] %v620
            %v622 = vld [vmem:[%s496 + $0xec] sm:%s489]
            %623 = vst [vmem:[%s497 + $0xf8] sm:%s489] %v622
            %v624 = vld [vmem:[%s496 + $0xfc] sm:%s489]
            %625 = vst [vmem:[%s497 + $0xfc] sm:%s489] %v624
          $region81: #{lstm_forward.1} parent=68 // loop_footer
            %s495 = sadd.s32 1, %s491
          $region82: #{lstm_forward.1} parent=68 // loop_footer_branch
            %490 = sbr.rel target = $region78
          $region83: #{lstm_forward.1} parent=68 // loop_exit
            _
        $region69: #{lstm_forward.1} parent=53 // pred_fallthru
          _
      $region54: #{lstm_forward.1} parent=12 // pred_fallthru
        _
      // Predicated region
      $region55: #{lstm_forward.1} parent=12 // pred_check
        %p331 = pneg %p327
      $region56: #{lstm_forward.1} parent=12 // pred_check_branch
        %333 = sbr.rel (%p331) target = $region58
      $region57: #{lstm_forward.1} parent=12 // pred_region
        %s334 = sshllo.u32 0, 4
        loop: start=0, step=1, limit=1
        $region59: #{lstm_forward.1} parent=57 // loop_pre_header
          _
        $region60: #{lstm_forward.1} parent=57 // loop_header
          %s336 = sphi 0, %s340
          %p337 = scmp.ge.s32.totalorder %s336, 1
          %s341 = sphi %s2, %s2
          %s342 = sphi [#allocation3], [#allocation3]
        $region61: #{lstm_forward.1} parent=57 // loop_header_branch
          %339 = sbr.rel (%p337) target = $region65
        $region62: #{lstm_forward.1} parent=57 // loop_body
          %v343 = vld [vmem:[%s341] sm:%s334]
          %344 = vst [vmem:[%s342] sm:%s334] %v343
          %v345 = vld [vmem:[%s341 + $0x10] sm:%s334]
          %346 = vst [vmem:[%s342 + $0x4] sm:%s334] %v345
          %v347 = vld [vmem:[%s341 + $0x4] sm:%s334]
          %348 = vst [vmem:[%s342 + $0x8] sm:%s334] %v347
          %v349 = vld [vmem:[%s341 + $0x14] sm:%s334]
          %350 = vst [vmem:[%s342 + $0xc] sm:%s334] %v349
          %v351 = vld [vmem:[%s341 + $0x8] sm:%s334]
          %352 = vst [vmem:[%s342 + $0x10] sm:%s334] %v351
          %v353 = vld [vmem:[%s341 + $0x18] sm:%s334]
          %354 = vst [vmem:[%s342 + $0x14] sm:%s334] %v353
          %v355 = vld [vmem:[%s341 + $0xc] sm:%s334]
          %356 = vst [vmem:[%s342 + $0x18] sm:%s334] %v355
          %v357 = vld [vmem:[%s341 + $0x1c] sm:%s334]
          %358 = vst [vmem:[%s342 + $0x1c] sm:%s334] %v357
          %v359 = vld [vmem:[%s341 + $0x20] sm:%s334]
          %360 = vst [vmem:[%s342 + $0x20] sm:%s334] %v359
          %v361 = vld [vmem:[%s341 + $0x30] sm:%s334]
          %362 = vst [vmem:[%s342 + $0x24] sm:%s334] %v361
          %v363 = vld [vmem:[%s341 + $0x24] sm:%s334]
          %364 = vst [vmem:[%s342 + $0x28] sm:%s334] %v363
          %v365 = vld [vmem:[%s341 + $0x34] sm:%s334]
          %366 = vst [vmem:[%s342 + $0x2c] sm:%s334] %v365
          %v367 = vld [vmem:[%s341 + $0x28] sm:%s334]
          %368 = vst [vmem:[%s342 + $0x30] sm:%s334] %v367
          %v369 = vld [vmem:[%s341 + $0x38] sm:%s334]
          %370 = vst [vmem:[%s342 + $0x34] sm:%s334] %v369
          %v371 = vld [vmem:[%s341 + $0x2c] sm:%s334]
          %372 = vst [vmem:[%s342 + $0x38] sm:%s334] %v371
          %v373 = vld [vmem:[%s341 + $0x3c] sm:%s334]
          %374 = vst [vmem:[%s342 + $0x3c] sm:%s334] %v373
          %v375 = vld [vmem:[%s341 + $0x40] sm:%s334]
          %376 = vst [vmem:[%s342 + $0x40] sm:%s334] %v375
          %v377 = vld [vmem:[%s341 + $0x50] sm:%s334]
          %378 = vst [vmem:[%s342 + $0x44] sm:%s334] %v377
          %v379 = vld [vmem:[%s341 + $0x44] sm:%s334]
          %380 = vst [vmem:[%s342 + $0x48] sm:%s334] %v379
          %v381 = vld [vmem:[%s341 + $0x54] sm:%s334]
          %382 = vst [vmem:[%s342 + $0x4c] sm:%s334] %v381
          %v383 = vld [vmem:[%s341 + $0x48] sm:%s334]
          %384 = vst [vmem:[%s342 + $0x50] sm:%s334] %v383
          %v385 = vld [vmem:[%s341 + $0x58] sm:%s334]
          %386 = vst [vmem:[%s342 + $0x54] sm:%s334] %v385
          %v387 = vld [vmem:[%s341 + $0x4c] sm:%s334]
          %388 = vst [vmem:[%s342 + $0x58] sm:%s334] %v387
          %v389 = vld [vmem:[%s341 + $0x5c] sm:%s334]
          %390 = vst [vmem:[%s342 + $0x5c] sm:%s334] %v389
          %v391 = vld [vmem:[%s341 + $0x60] sm:%s334]
          %392 = vst [vmem:[%s342 + $0x60] sm:%s334] %v391
          %v393 = vld [vmem:[%s341 + $0x70] sm:%s334]
          %394 = vst [vmem:[%s342 + $0x64] sm:%s334] %v393
          %v395 = vld [vmem:[%s341 + $0x64] sm:%s334]
          %396 = vst [vmem:[%s342 + $0x68] sm:%s334] %v395
          %v397 = vld [vmem:[%s341 + $0x74] sm:%s334]
          %398 = vst [vmem:[%s342 + $0x6c] sm:%s334] %v397
          %v399 = vld [vmem:[%s341 + $0x68] sm:%s334]
          %400 = vst [vmem:[%s342 + $0x70] sm:%s334] %v399
          %v401 = vld [vmem:[%s341 + $0x78] sm:%s334]
          %402 = vst [vmem:[%s342 + $0x74] sm:%s334] %v401
          %v403 = vld [vmem:[%s341 + $0x6c] sm:%s334]
          %404 = vst [vmem:[%s342 + $0x78] sm:%s334] %v403
          %v405 = vld [vmem:[%s341 + $0x7c] sm:%s334]
          %406 = vst [vmem:[%s342 + $0x7c] sm:%s334] %v405
          %v407 = vld [vmem:[%s341 + $0x80] sm:%s334]
          %408 = vst [vmem:[%s342 + $0x80] sm:%s334] %v407
          %v409 = vld [vmem:[%s341 + $0x90] sm:%s334]
          %410 = vst [vmem:[%s342 + $0x84] sm:%s334] %v409
          %v411 = vld [vmem:[%s341 + $0x84] sm:%s334]
          %412 = vst [vmem:[%s342 + $0x88] sm:%s334] %v411
          %v413 = vld [vmem:[%s341 + $0x94] sm:%s334]
          %414 = vst [vmem:[%s342 + $0x8c] sm:%s334] %v413
          %v415 = vld [vmem:[%s341 + $0x88] sm:%s334]
          %416 = vst [vmem:[%s342 + $0x90] sm:%s334] %v415
          %v417 = vld [vmem:[%s341 + $0x98] sm:%s334]
          %418 = vst [vmem:[%s342 + $0x94] sm:%s334] %v417
          %v419 = vld [vmem:[%s341 + $0x8c] sm:%s334]
          %420 = vst [vmem:[%s342 + $0x98] sm:%s334] %v419
          %v421 = vld [vmem:[%s341 + $0x9c] sm:%s334]
          %422 = vst [vmem:[%s342 + $0x9c] sm:%s334] %v421
          %v423 = vld [vmem:[%s341 + $0xa0] sm:%s334]
          %424 = vst [vmem:[%s342 + $0xa0] sm:%s334] %v423
          %v425 = vld [vmem:[%s341 + $0xb0] sm:%s334]
          %426 = vst [vmem:[%s342 + $0xa4] sm:%s334] %v425
          %v427 = vld [vmem:[%s341 + $0xa4] sm:%s334]
          %428 = vst [vmem:[%s342 + $0xa8] sm:%s334] %v427
          %v429 = vld [vmem:[%s341 + $0xb4] sm:%s334]
          %430 = vst [vmem:[%s342 + $0xac] sm:%s334] %v429
          %v431 = vld [vmem:[%s341 + $0xa8] sm:%s334]
          %432 = vst [vmem:[%s342 + $0xb0] sm:%s334] %v431
          %v433 = vld [vmem:[%s341 + $0xb8] sm:%s334]
          %434 = vst [vmem:[%s342 + $0xb4] sm:%s334] %v433
          %v435 = vld [vmem:[%s341 + $0xac] sm:%s334]
          %436 = vst [vmem:[%s342 + $0xb8] sm:%s334] %v435
          %v437 = vld [vmem:[%s341 + $0xbc] sm:%s334]
          %438 = vst [vmem:[%s342 + $0xbc] sm:%s334] %v437
          %v439 = vld [vmem:[%s341 + $0xc0] sm:%s334]
          %440 = vst [vmem:[%s342 + $0xc0] sm:%s334] %v439
          %v441 = vld [vmem:[%s341 + $0xd0] sm:%s334]
          %442 = vst [vmem:[%s342 + $0xc4] sm:%s334] %v441
          %v443 = vld [vmem:[%s341 + $0xc4] sm:%s334]
          %444 = vst [vmem:[%s342 + $0xc8] sm:%s334] %v443
          %v445 = vld [vmem:[%s341 + $0xd4] sm:%s334]
          %446 = vst [vmem:[%s342 + $0xcc] sm:%s334] %v445
          %v447 = vld [vmem:[%s341 + $0xc8] sm:%s334]
          %448 = vst [vmem:[%s342 + $0xd0] sm:%s334] %v447
          %v449 = vld [vmem:[%s341 + $0xd8] sm:%s334]
          %450 = vst [vmem:[%s342 + $0xd4] sm:%s334] %v449
          %v451 = vld [vmem:[%s341 + $0xcc] sm:%s334]
          %452 = vst [vmem:[%s342 + $0xd8] sm:%s334] %v451
          %v453 = vld [vmem:[%s341 + $0xdc] sm:%s334]
          %454 = vst [vmem:[%s342 + $0xdc] sm:%s334] %v453
          %v455 = vld [vmem:[%s341 + $0xe0] sm:%s334]
          %456 = vst [vmem:[%s342 + $0xe0] sm:%s334] %v455
          %v457 = vld [vmem:[%s341 + $0xf0] sm:%s334]
          %458 = vst [vmem:[%s342 + $0xe4] sm:%s334] %v457
          %v459 = vld [vmem:[%s341 + $0xe4] sm:%s334]
          %460 = vst [vmem:[%s342 + $0xe8] sm:%s334] %v459
          %v461 = vld [vmem:[%s341 + $0xf4] sm:%s334]
          %462 = vst [vmem:[%s342 + $0xec] sm:%s334] %v461
          %v463 = vld [vmem:[%s341 + $0xe8] sm:%s334]
          %464 = vst [vmem:[%s342 + $0xf0] sm:%s334] %v463
          %v465 = vld [vmem:[%s341 + $0xf8] sm:%s334]
          %466 = vst [vmem:[%s342 + $0xf4] sm:%s334] %v465
          %v467 = vld [vmem:[%s341 + $0xec] sm:%s334]
          %468 = vst [vmem:[%s342 + $0xf8] sm:%s334] %v467
          %v469 = vld [vmem:[%s341 + $0xfc] sm:%s334]
          %470 = vst [vmem:[%s342 + $0xfc] sm:%s334] %v469
        $region63: #{lstm_forward.1} parent=57 // loop_footer
          %s340 = sadd.s32 1, %s336
        $region64: #{lstm_forward.1} parent=57 // loop_footer_branch
          %335 = sbr.rel target = $region60
        $region65: #{lstm_forward.1} parent=57 // loop_exit
          _
      $region58: #{lstm_forward.1} parent=12 // pred_fallthru
        _
      // Predicated region
      $region84: #{lstm_forward.1} parent=12 // pred_check
        _
      $region85: #{lstm_forward.1} parent=12 // pred_check_branch
        %628 = sbr.rel (0) target = $region87
      $region86: #{lstm_forward.1} parent=12 // pred_region
        %629 = vsyncadd %s325, 4096
      $region87: #{lstm_forward.1} parent=12 // pred_fallthru
        _
      %630 = vst [vmem:[#allocation5] sm:$0xf] 0
      %631 = vst [vmem:[#allocation6] sm:$0xff] 0.0
      %s632 = smul.u32 4, 16
      %s633 = smul.u32 %s632, 4
      %s634 = sshll.u32 %s633, 4
      %635 = dma.done [#allocation7], %s634
      %s636 = sshll.u32 %s633, 4
      %637 = dma.done %s325, %s636
    $region13: #{lstm_forward.1} parent=1 // pred_fallthru
      _
    %v638 = vld [vmem:[%s0] sm:$0xff]
    %v639 = vld [vmem:[%s0 + $0x8] sm:$0xff]
    %v640 = vld [vmem:[%s0 + $0x10] sm:$0xff]
    %v641 = vld [vmem:[%s0 + $0x18] sm:$0xff]
    %v642 = vld [vmem:[%s0 + $0x20] sm:$0xff]
    %v643 = vld [vmem:[%s0 + $0x28] sm:$0xff]
    %v644 = vld [vmem:[%s0 + $0x30] sm:$0xff]
    %v645 = vld [vmem:[%s0 + $0x38] sm:$0xff]
    %v646 = vpack.c.bf16 %v639, %v638
    %v647 = vpack.c.bf16 %v641, %v640
    %v648 = vpack.c.bf16 %v643, %v642
    %v649 = vpack.c.bf16 %v645, %v644
    %v650 = vld [vmem:[#allocation2] sm:$0xff]
    %v651 = vld [vmem:[#allocation2 + $0x8] sm:$0xff]
    %v652 = vld [vmem:[#allocation2 + $0x10] sm:$0xff]
    %v653 = vld [vmem:[#allocation2 + $0x18] sm:$0xff]
    %v654 = vld [vmem:[#allocation2 + $0x20] sm:$0xff]
    %v655 = vld [vmem:[#allocation2 + $0x28] sm:$0xff]
    %v656 = vld [vmem:[#allocation2 + $0x30] sm:$0xff]
    %v657 = vld [vmem:[#allocation2 + $0x38] sm:$0xff]
    %v658 = vld [vmem:[#allocation2 + $0x40] sm:$0xff]
    %v659 = vld [vmem:[#allocation2 + $0x48] sm:$0xff]
    %v660 = vld [vmem:[#allocation2 + $0x50] sm:$0xff]
    %v661 = vld [vmem:[#allocation2 + $0x58] sm:$0xff]
    %v662 = vld [vmem:[#allocation2 + $0x60] sm:$0xff]
    %v663 = vld [vmem:[#allocation2 + $0x68] sm:$0xff]
    %v664 = vld [vmem:[#allocation2 + $0x70] sm:$0xff]
    %v665 = vld [vmem:[#allocation2 + $0x78] sm:$0xff]
    %v666 = vld [vmem:[#allocation2 + $0x80] sm:$0xff]
    %v667 = vld [vmem:[#allocation2 + $0x88] sm:$0xff]
    %v668 = vld [vmem:[#allocation2 + $0x90] sm:$0xff]
    %v669 = vld [vmem:[#allocation2 + $0x98] sm:$0xff]
    %v670 = vld [vmem:[#allocation2 + $0xa0] sm:$0xff]
    %v671 = vld [vmem:[#allocation2 + $0xa8] sm:$0xff]
    %v672 = vld [vmem:[#allocation2 + $0xb0] sm:$0xff]
    %v673 = vld [vmem:[#allocation2 + $0xb8] sm:$0xff]
    %v674 = vld [vmem:[#allocation2 + $0xc0] sm:$0xff]
    %v675 = vld [vmem:[#allocation2 + $0xc8] sm:$0xff]
    %v676 = vld [vmem:[#allocation2 + $0xd0] sm:$0xff]
    %v677 = vld [vmem:[#allocation2 + $0xd8] sm:$0xff]
    %v678 = vld [vmem:[#allocation2 + $0xe0] sm:$0xff]
    %v679 = vld [vmem:[#allocation2 + $0xe8] sm:$0xff]
    %v680 = vld [vmem:[#allocation2 + $0xf0] sm:$0xff]
    %v681 = vld [vmem:[#allocation2 + $0xf8] sm:$0xff]
    %v682 = vld [vmem:[%s3] sm:$0xf]
    %v684 = vlaneseq
    %v685 = vshrl.u32 %v684, 7
    %v686 = vsub.s32 0, %v685
    %v687 = vrot.slane %v682, %v686
    %v688 = vlaneseq
    %v689 = vshrl.u32 %v688, 7
    %v690 = vsub.s32 1, %v689
    %v691 = vrot.slane %v682, %v690
    %v692 = vlaneseq
    %v693 = vshrl.u32 %v692, 7
    %v694 = vsub.s32 2, %v693
    %v695 = vrot.slane %v682, %v694
    %v696 = vlaneseq
    %v697 = vshrl.u32 %v696, 7
    %v698 = vsub.s32 3, %v697
    %v699 = vrot.slane %v682, %v698
    %704 = vmatprep.subr.bf16.mxu0 %v651
    %705 = vmatpush1.bf16.msra.mxu0 %v650
    %706 = vmatprep.subr.bf16.mxu0 %v655
    %707 = vmatpush1.bf16.msra.mxu0 %v654
    %708 = vmatprep.subr.bf16.mxu0 %v659
    %709 = vmatpush1.bf16.msra.mxu0 %v658
    %710 = vmatprep.subr.bf16.mxu0 %v663
    %711 = vmatpush1.bf16.msra.mxu0 %v662
    %712 = vmatprep.subr.bf16.mxu0 %v667
    %713 = vmatpush1.bf16.msra.mxu0 %v666
    %714 = vmatprep.subr.bf16.mxu0 %v671
    %715 = vmatpush1.bf16.msra.mxu0 %v670
    %716 = vmatprep.subr.bf16.mxu0 %v675
    %717 = vmatpush1.bf16.msra.mxu0 %v674
    %718 = vmatprep.subr.bf16.mxu0 %v679
    %719 = vmatpush1.bf16.msra.mxu0 %v678
    %720 = vmatprep.subr.bf16.mxu0 0
    %721 = vmatpush1.bf16.msra.mxu0 0
    %722 = vmatprep.subr.bf16.mxu0 0
    %723 = vmatpush1.bf16.msra.mxu0 0
    %724 = vmatprep.subr.bf16.mxu0 0
    %725 = vmatpush1.bf16.msra.mxu0 0
    %726 = vmatprep.subr.bf16.mxu0 0
    %727 = vmatpush1.bf16.msra.mxu0 0
    %728 = vmatprep.subr.bf16.mxu0 0
    %729 = vmatpush1.bf16.msra.mxu0 0
    %730 = vmatprep.subr.bf16.mxu0 0
    %731 = vmatpush1.bf16.msra.mxu0 0
    %732 = vmatprep.subr.bf16.mxu0 0
    %733 = vmatpush1.bf16.msra.mxu0 0
    %734 = vmatprep.subr.bf16.mxu0 0
    %735 = vmatpush1.bf16.msra.mxu0 0
    %736 = vmatprep.mubr.bf16.mxu0 0
    %737 = vmatmul.mubr.bf16.gmra.mrb[0].mxu0 %v646
    %v738 = vpop.f32.mrb[0].mxu0
    %v739 = vadd.f32 %v687, %v738
    %v740 = vpop.f32.mrb[0].mxu0
    %v741 = vadd.f32 %v691, %v740
    %v742 = vpop.f32.mrb[0].mxu0
    %v743 = vadd.f32 %v687, %v742
    %v744 = vpop.f32.mrb[0].mxu0
    %v745 = vadd.f32 %v691, %v744
    %746 = vmatprep.mubr.bf16.mxu0 0
    %747 = vmatmul.mubr.bf16.gmra.mrb[0].mxu0 %v647
    %v748 = vpop.f32.mrb[0].mxu0
    %v749 = vadd.f32 %v687, %v748
    %v750 = vpop.f32.mrb[0].mxu0
    %v751 = vadd.f32 %v691, %v750
    %v752 = vpop.f32.mrb[0].mxu0
    %v753 = vadd.f32 %v687, %v752
    %v754 = vpop.f32.mrb[0].mxu0
    %v755 = vadd.f32 %v691, %v754
    %756 = vmatprep.mubr.bf16.mxu0 0
    %757 = vmatmul.mubr.bf16.gmra.mrb[0].mxu0 %v648
    %v758 = vpop.f32.mrb[0].mxu0
    %v759 = vadd.f32 %v687, %v758
    %v760 = vpop.f32.mrb[0].mxu0
    %v761 = vadd.f32 %v691, %v760
    %v762 = vpop.f32.mrb[0].mxu0
    %v763 = vadd.f32 %v687, %v762
    %v764 = vpop.f32.mrb[0].mxu0
    %v765 = vadd.f32 %v691, %v764
    %766 = vmatprep.mubr.bf16.mxu0 0
    %767 = vmatmul.mubr.bf16.gmra.mrb[0].mxu0 %v649
    %v768 = vpop.f32.mrb[0].mxu0
    %v769 = vadd.f32 %v687, %v768
    %v770 = vpop.f32.mrb[0].mxu0
    %v771 = vadd.f32 %v691, %v770
    %v772 = vpop.f32.mrb[0].mxu0
    %v773 = vadd.f32 %v687, %v772
    %v774 = vpop.f32.mrb[0].mxu0
    %v775 = vadd.f32 %v691, %v774
    %776 = vdwg.mxu0
    %777 = vmatprep.subr.bf16.mxu0 %v653
    %778 = vmatpush1.bf16.msra.mxu0 %v652
    %779 = vmatprep.subr.bf16.mxu0 %v657
    %780 = vmatpush1.bf16.msra.mxu0 %v656
    %781 = vmatprep.subr.bf16.mxu0 %v661
    %782 = vmatpush1.bf16.msra.mxu0 %v660
    %783 = vmatprep.subr.bf16.mxu0 %v665
    %784 = vmatpush1.bf16.msra.mxu0 %v664
    %785 = vmatprep.subr.bf16.mxu0 %v669
    %786 = vmatpush1.bf16.msra.mxu0 %v668
    %787 = vmatprep.subr.bf16.mxu0 %v673
    %788 = vmatpush1.bf16.msra.mxu0 %v672
    %789 = vmatprep.subr.bf16.mxu0 %v677
    %790 = vmatpush1.bf16.msra.mxu0 %v676
    %791 = vmatprep.subr.bf16.mxu0 %v681
    %792 = vmatpush1.bf16.msra.mxu0 %v680
    %793 = vmatprep.subr.bf16.mxu0 0
    %794 = vmatpush1.bf16.msra.mxu0 0
    %795 = vmatprep.subr.bf16.mxu0 0
    %796 = vmatpush1.bf16.msra.mxu0 0
    %797 = vmatprep.subr.bf16.mxu0 0
    %798 = vmatpush1.bf16.msra.mxu0 0
    %799 = vmatprep.subr.bf16.mxu0 0
    %800 = vmatpush1.bf16.msra.mxu0 0
    %801 = vmatprep.subr.bf16.mxu0 0
    %802 = vmatpush1.bf16.msra.mxu0 0
    %803 = vmatprep.subr.bf16.mxu0 0
    %804 = vmatpush1.bf16.msra.mxu0 0
    %805 = vmatprep.subr.bf16.mxu0 0
    %806 = vmatpush1.bf16.msra.mxu0 0
    %807 = vmatprep.subr.bf16.mxu0 0
    %808 = vmatpush1.bf16.msra.mxu0 0
    %809 = vmatprep.mubr.bf16.mxu0 0
    %810 = vmatmul.mubr.bf16.gmra.mrb[0].mxu0 %v646
    %v811 = vpop.f32.mrb[0].mxu0
    %v812 = vadd.f32 %v695, %v811
    %v813 = vpop.f32.mrb[0].mxu0
    %v814 = vadd.f32 %v699, %v813
    %v815 = vpop.f32.mrb[0].mxu0
    %v816 = vadd.f32 %v695, %v815
    %v817 = vpop.f32.mrb[0].mxu0
    %v818 = vadd.f32 %v699, %v817
    %819 = vmatprep.mubr.bf16.mxu0 0
    %820 = vmatmul.mubr.bf16.gmra.mrb[0].mxu0 %v647
    %v821 = vpop.f32.mrb[0].mxu0
    %v822 = vadd.f32 %v695, %v821
    %v823 = vpop.f32.mrb[0].mxu0
    %v824 = vadd.f32 %v699, %v823
    %v825 = vpop.f32.mrb[0].mxu0
    %v826 = vadd.f32 %v695, %v825
    %v827 = vpop.f32.mrb[0].mxu0
    %v828 = vadd.f32 %v699, %v827
    %829 = vmatprep.mubr.bf16.mxu0 0
    %830 = vmatmul.mubr.bf16.gmra.mrb[0].mxu0 %v648
    %v831 = vpop.f32.mrb[0].mxu0
    %v832 = vadd.f32 %v695, %v831
    %v833 = vpop.f32.mrb[0].mxu0
    %v834 = vadd.f32 %v699, %v833
    %v835 = vpop.f32.mrb[0].mxu0
    %v836 = vadd.f32 %v695, %v835
    %v837 = vpop.f32.mrb[0].mxu0
    %v838 = vadd.f32 %v699, %v837
    %839 = vmatprep.mubr.bf16.mxu0 0
    %840 = vmatmul.mubr.bf16.gmra.mrb[0].mxu0 %v649
    %v841 = vpop.f32.mrb[0].mxu0
    %v842 = vadd.f32 %v695, %v841
    %v843 = vpop.f32.mrb[0].mxu0
    %v844 = vadd.f32 %v699, %v843
    %v845 = vpop.f32.mrb[0].mxu0
    %v846 = vadd.f32 %v695, %v845
    %v847 = vpop.f32.mrb[0].mxu0
    %v848 = vadd.f32 %v699, %v847
    %849 = vdwg.mxu0
    %850 = vst [vmem:[#allocation4] sm:$0xff] %v739
    %851 = vst [vmem:[#allocation4 + $0x8] sm:$0xff] %v741
    %852 = vst [vmem:[#allocation4 + $0x10] sm:$0xff] %v812
    %853 = vst [vmem:[#allocation4 + $0x18] sm:$0xff] %v814
    %854 = vst [vmem:[#allocation4 + $0x20] sm:$0xff] %v743
    %855 = vst [vmem:[#allocation4 + $0x28] sm:$0xff] %v745
    %856 = vst [vmem:[#allocation4 + $0x30] sm:$0xff] %v816
    %857 = vst [vmem:[#allocation4 + $0x38] sm:$0xff] %v818
    %858 = vst [vmem:[#allocation4 + $0x40] sm:$0xff] %v749
    %859 = vst [vmem:[#allocation4 + $0x48] sm:$0xff] %v751
    %860 = vst [vmem:[#allocation4 + $0x50] sm:$0xff] %v822
    %861 = vst [vmem:[#allocation4 + $0x58] sm:$0xff] %v824
    %862 = vst [vmem:[#allocation4 + $0x60] sm:$0xff] %v753
    %863 = vst [vmem:[#allocation4 + $0x68] sm:$0xff] %v755
    %864 = vst [vmem:[#allocation4 + $0x70] sm:$0xff] %v826
    %865 = vst [vmem:[#allocation4 + $0x78] sm:$0xff] %v828
    %866 = vst [vmem:[#allocation4 + $0x80] sm:$0xff] %v759
    %867 = vst [vmem:[#allocation4 + $0x88] sm:$0xff] %v761
    %868 = vst [vmem:[#allocation4 + $0x90] sm:$0xff] %v832
    %869 = vst [vmem:[#allocation4 + $0x98] sm:$0xff] %v834
    %870 = vst [vmem:[#allocation4 + $0xa0] sm:$0xff] %v763
    %871 = vst [vmem:[#allocation4 + $0xa8] sm:$0xff] %v765
    %872 = vst [vmem:[#allocation4 + $0xb0] sm:$0xff] %v836
    %873 = vst [vmem:[#allocation4 + $0xb8] sm:$0xff] %v838
    %874 = vst [vmem:[#allocation4 + $0xc0] sm:$0xff] %v769
    %875 = vst [vmem:[#allocation4 + $0xc8] sm:$0xff] %v771
    %876 = vst [vmem:[#allocation4 + $0xd0] sm:$0xff] %v842
    %877 = vst [vmem:[#allocation4 + $0xd8] sm:$0xff] %v844
    %878 = vst [vmem:[#allocation4 + $0xe0] sm:$0xff] %v773
    %879 = vst [vmem:[#allocation4 + $0xe8] sm:$0xff] %v775
    %880 = vst [vmem:[#allocation4 + $0xf0] sm:$0xff] %v846
    %881 = vst [vmem:[#allocation4 + $0xf8] sm:$0xff] %v848
    %v882 = vld [vmem:[#allocation4] sm:$0xff]
    %v883 = vld [vmem:[#allocation4 + $0x8] sm:$0xff]
    %v884 = vld [vmem:[#allocation4 + $0x10] sm:$0xff]
    %v885 = vld [vmem:[#allocation4 + $0x18] sm:$0xff]
    %v886 = vld [vmem:[#allocation5] sm:$0xf]
    %v887 = vld [vmem:[#allocation3] sm:$0xff]
    %v888 = vld [vmem:[#allocation3 + $0x8] sm:$0xff]
    %v889 = vld [vmem:[#allocation3 + $0x10] sm:$0xff]
    %v890 = vld [vmem:[#allocation3 + $0x18] sm:$0xff]
    %v891 = vld [vmem:[#allocation3 + $0x20] sm:$0xff]
    %v892 = vld [vmem:[#allocation3 + $0x28] sm:$0xff]
    %v893 = vld [vmem:[#allocation3 + $0x30] sm:$0xff]
    %v894 = vld [vmem:[#allocation3 + $0x38] sm:$0xff]
    %v895 = vld [vmem:[#allocation3 + $0x40] sm:$0xff]
    %v896 = vld [vmem:[#allocation3 + $0x48] sm:$0xff]
    %v897 = vld [vmem:[#allocation3 + $0x50] sm:$0xff]
    %v898 = vld [vmem:[#allocation3 + $0x58] sm:$0xff]
    %v899 = vld [vmem:[#allocation3 + $0x60] sm:$0xff]
    %v900 = vld [vmem:[#allocation3 + $0x68] sm:$0xff]
    %v901 = vld [vmem:[#allocation3 + $0x70] sm:$0xff]
    %v902 = vld [vmem:[#allocation3 + $0x78] sm:$0xff]
    %v903 = vld [vmem:[#allocation3 + $0x80] sm:$0xff]
    %v904 = vld [vmem:[#allocation3 + $0x88] sm:$0xff]
    %v905 = vld [vmem:[#allocation3 + $0x90] sm:$0xff]
    %v906 = vld [vmem:[#allocation3 + $0x98] sm:$0xff]
    %v907 = vld [vmem:[#allocation3 + $0xa0] sm:$0xff]
    %v908 = vld [vmem:[#allocation3 + $0xa8] sm:$0xff]
    %v909 = vld [vmem:[#allocation3 + $0xb0] sm:$0xff]
    %v910 = vld [vmem:[#allocation3 + $0xb8] sm:$0xff]
    %v911 = vld [vmem:[#allocation3 + $0xc0] sm:$0xff]
    %v912 = vld [vmem:[#allocation3 + $0xc8] sm:$0xff]
    %v913 = vld [vmem:[#allocation3 + $0xd0] sm:$0xff]
    %v914 = vld [vmem:[#allocation3 + $0xd8] sm:$0xff]
    %v915 = vld [vmem:[#allocation3 + $0xe0] sm:$0xff]
    %v916 = vld [vmem:[#allocation3 + $0xe8] sm:$0xff]
    %v917 = vld [vmem:[#allocation3 + $0xf0] sm:$0xff]
    %v918 = vld [vmem:[#allocation3 + $0xf8] sm:$0xff]
    %919 = vmatprep.subr.bf16.mxu0 %v888
    %920 = vmatpush1.bf16.msra.mxu0 %v887
    %921 = vmatprep.subr.bf16.mxu0 %v892
    %922 = vmatpush1.bf16.msra.mxu0 %v891
    %923 = vmatprep.subr.bf16.mxu0 %v896
    %924 = vmatpush1.bf16.msra.mxu0 %v895
    %925 = vmatprep.subr.bf16.mxu0 %v900
    %926 = vmatpush1.bf16.msra.mxu0 %v899
    %927 = vmatprep.subr.bf16.mxu0 %v904
    %928 = vmatpush1.bf16.msra.mxu0 %v903
    %929 = vmatprep.subr.bf16.mxu0 %v908
    %930 = vmatpush1.bf16.msra.mxu0 %v907
    %931 = vmatprep.subr.bf16.mxu0 %v912
    %932 = vmatpush1.bf16.msra.mxu0 %v911
    %933 = vmatprep.subr.bf16.mxu0 %v916
    %934 = vmatpush1.bf16.msra.mxu0 %v915
    %935 = vmatprep.subr.bf16.mxu0 0
    %936 = vmatpush1.bf16.msra.mxu0 0
    %937 = vmatprep.subr.bf16.mxu0 0
    %938 = vmatpush1.bf16.msra.mxu0 0
    %939 = vmatprep.subr.bf16.mxu0 0
    %940 = vmatpush1.bf16.msra.mxu0 0
    %941 = vmatprep.subr.bf16.mxu0 0
    %942 = vmatpush1.bf16.msra.mxu0 0
    %943 = vmatprep.subr.bf16.mxu0 0
    %944 = vmatpush1.bf16.msra.mxu0 0
    %945 = vmatprep.subr.bf16.mxu0 0
    %946 = vmatpush1.bf16.msra.mxu0 0
    %947 = vmatprep.subr.bf16.mxu0 0
    %948 = vmatpush1.bf16.msra.mxu0 0
    %949 = vmatprep.subr.bf16.mxu0 0
    %950 = vmatpush1.bf16.msra.mxu0 0
    %951 = vmatprep.mubr.bf16.mxu0 0
    %952 = vmatmul.mubr.bf16.gmra.mrb[0].mxu0 %v886
    %v953 = vpop.f32.mrb[0].mxu0
    %v954 = vadd.f32 0.0, %v953
    %v955 = vpop.f32.mrb[0].mxu0
    %v956 = vadd.f32 0.0, %v955
    %v957 = vpop.f32.mrb[0].mxu0
    %v958 = vpop.f32.mrb[0].mxu0
    %959 = vdwg.mxu0
    %960 = vmatprep.subr.bf16.mxu0 %v890
    %961 = vmatpush1.bf16.msra.mxu0 %v889
    %962 = vmatprep.subr.bf16.mxu0 %v894
    %963 = vmatpush1.bf16.msra.mxu0 %v893
    %964 = vmatprep.subr.bf16.mxu0 %v898
    %965 = vmatpush1.bf16.msra.mxu0 %v897
    %966 = vmatprep.subr.bf16.mxu0 %v902
    %967 = vmatpush1.bf16.msra.mxu0 %v901
    %968 = vmatprep.subr.bf16.mxu0 %v906
    %969 = vmatpush1.bf16.msra.mxu0 %v905
    %970 = vmatprep.subr.bf16.mxu0 %v910
    %971 = vmatpush1.bf16.msra.mxu0 %v909
    %972 = vmatprep.subr.bf16.mxu0 %v914
    %973 = vmatpush1.bf16.msra.mxu0 %v913
    %974 = vmatprep.subr.bf16.mxu0 %v918
    %975 = vmatpush1.bf16.msra.mxu0 %v917
    %976 = vmatprep.subr.bf16.mxu0 0
    %977 = vmatpush1.bf16.msra.mxu0 0
    %978 = vmatprep.subr.bf16.mxu0 0
    %979 = vmatpush1.bf16.msra.mxu0 0
    %980 = vmatprep.subr.bf16.mxu0 0
    %981 = vmatpush1.bf16.msra.mxu0 0
    %982 = vmatprep.subr.bf16.mxu0 0
    %983 = vmatpush1.bf16.msra.mxu0 0
    %984 = vmatprep.subr.bf16.mxu0 0
    %985 = vmatpush1.bf16.msra.mxu0 0
    %986 = vmatprep.subr.bf16.mxu0 0
    %987 = vmatpush1.bf16.msra.mxu0 0
    %988 = vmatprep.subr.bf16.mxu0 0
    %989 = vmatpush1.bf16.msra.mxu0 0
    %990 = vmatprep.subr.bf16.mxu0 0
    %991 = vmatpush1.bf16.msra.mxu0 0
    %992 = vmatprep.mubr.bf16.mxu0 0
    %993 = vmatmul.mubr.bf16.gmra.mrb[0].mxu0 %v886
    %v994 = vpop.f32.mrb[0].mxu0
    %v995 = vadd.f32 0.0, %v994
    %v996 = vpop.f32.mrb[0].mxu0
    %v997 = vadd.f32 0.0, %v996
    %v998 = vpop.f32.mrb[0].mxu0
    %v999 = vpop.f32.mrb[0].mxu0
    %1000 = vdwg.mxu0
    %v1001 = vadd.f32 %v882, %v954
    %v1002 = vadd.f32 %v883, %v956
    %v1003 = vadd.f32 %v884, %v995
    %v1004 = vadd.f32 %v885, %v997
    %v1005 = vxor.u32 %v1001, 2147483648
    %v1006 = vmul.f32 %v1005, 1.442695
    %v1007 = vpow.pop %v1006
    %v1008 = vadd.f32 %v1007, 1.0
    %v1009 = vrcp.pop %v1008
    %v1010 = vmul.f32 1.0, %v1009
    %v1011 = vxor.u32 %v1002, 2147483648
    %v1012 = vmul.f32 %v1011, 1.442695
    %v1013 = vpow.pop %v1012
    %v1014 = vadd.f32 %v1013, 1.0
    %v1015 = vrcp.pop %v1014
    %v1016 = vmul.f32 1.0, %v1015
    %v1017 = vtanh.pop %v1003
    %v1018 = vxor.u32 %v1004, 2147483648
    %v1019 = vmul.f32 %v1018, 1.442695
    %v1020 = vpow.pop %v1019
    %v1021 = vadd.f32 %v1020, 1.0
    %v1022 = vrcp.pop %v1021
    %v1023 = vmul.f32 1.0, %v1022
    %v1024 = vld [vmem:[#allocation6] sm:$0xff]
    %v1025 = vmul.f32 %v1016, %v1024
    %v1026 = vmul.f32 %v1010, %v1017
    %v1027 = vadd.f32 %v1025, %v1026
    %v1028 = vtanh.pop %v1027
    %v1029 = vmul.f32 %v1023, %v1028
    %1030 = vst [vmem:[#allocation6] sm:$0xff] %v1027
    %v1031 = vpack.c.bf16 %v1029, %v1029
    %1032 = vst [vmem:[#allocation5] sm:$0xf] %v1031
    %1033 = vst [vmem:[%s4] sm:$0xff] %v1029
    %s1034 = scalar_lea.vmem [#allocation4], 32
    %v1035 = vld [vmem:[%s1034] sm:$0xff]
    %v1036 = vld [vmem:[%s1034 + $0x8] sm:$0xff]
    %v1037 = vld [vmem:[%s1034 + $0x10] sm:$0xff]
    %v1038 = vld [vmem:[%s1034 + $0x18] sm:$0xff]
    %v1039 = vld [vmem:[#allocation5] sm:$0xf]
    %v1040 = vld [vmem:[#allocation3] sm:$0xff]
    %v1041 = vld [vmem:[#allocation3 + $0x8] sm:$0xff]
    %v1042 = vld [vmem:[#allocation3 + $0x10] sm:$0xff]
    %v1043 = vld [vmem:[#allocation3 + $0x18] sm:$0xff]
    %v1044 = vld [vmem:[#allocation3 + $0x20] sm:$0xff]
    %v1045 = vld [vmem:[#allocation3 + $0x28] sm:$0xff]
    %v1046 = vld [vmem:[#allocation3 + $0x30] sm:$0xff]
    %v1047 = vld [vmem:[#allocation3 + $0x38] sm:$0xff]
    %v1048 = vld [vmem:[#allocation3 + $0x40] sm:$0xff]
    %v1049 = vld [vmem:[#allocation3 + $0x48] sm:$0xff]
    %v1050 = vld [vmem:[#allocation3 + $0x50] sm:$0xff]
    %v1051 = vld [vmem:[#allocation3 + $0x58] sm:$0xff]
    %v1052 = vld [vmem:[#allocation3 + $0x60] sm:$0xff]
    %v1053 = vld [vmem:[#allocation3 + $0x68] sm:$0xff]
    %v1054 = vld [vmem:[#allocation3 + $0x70] sm:$0xff]
    %v1055 = vld [vmem:[#allocation3 + $0x78] sm:$0xff]
    %v1056 = vld [vmem:[#allocation3 + $0x80] sm:$0xff]
    %v1057 = vld [vmem:[#allocation3 + $0x88] sm:$0xff]
    %v1058 = vld [vmem:[#allocation3 + $0x90] sm:$0xff]
    %v1059 = vld [vmem:[#allocation3 + $0x98] sm:$0xff]
    %v1060 = vld [vmem:[#allocation3 + $0xa0] sm:$0xff]
    %v1061 = vld [vmem:[#allocation3 + $0xa8] sm:$0xff]
    %v1062 = vld [vmem:[#allocation3 + $0xb0] sm:$0xff]
    %v1063 = vld [vmem:[#allocation3 + $0xb8] sm:$0xff]
    %v1064 = vld [vmem:[#allocation3 + $0xc0] sm:$0xff]
    %v1065 = vld [vmem:[#allocation3 + $0xc8] sm:$0xff]
    %v1066 = vld [vmem:[#allocation3 + $0xd0] sm:$0xff]
    %v1067 = vld [vmem:[#allocation3 + $0xd8] sm:$0xff]
    %v1068 = vld [vmem:[#allocation3 + $0xe0] sm:$0xff]
    %v1069 = vld [vmem:[#allocation3 + $0xe8] sm:$0xff]
    %v1070 = vld [vmem:[#allocation3 + $0xf0] sm:$0xff]
    %v1071 = vld [vmem:[#allocation3 + $0xf8] sm:$0xff]
    %1072 = vmatprep.subr.bf16.mxu0 %v1041
    %1073 = vmatpush1.bf16.msra.mxu0 %v1040
    %1074 = vmatprep.subr.bf16.mxu0 %v1045
    %1075 = vmatpush1.bf16.msra.mxu0 %v1044
    %1076 = vmatprep.subr.bf16.mxu0 %v1049
    %1077 = vmatpush1.bf16.msra.mxu0 %v1048
    %1078 = vmatprep.subr.bf16.mxu0 %v1053
    %1079 = vmatpush1.bf16.msra.mxu0 %v1052
    %1080 = vmatprep.subr.bf16.mxu0 %v1057
    %1081 = vmatpush1.bf16.msra.mxu0 %v1056
    %1082 = vmatprep.subr.bf16.mxu0 %v1061
    %1083 = vmatpush1.bf16.msra.mxu0 %v1060
    %1084 = vmatprep.subr.bf16.mxu0 %v1065
    %1085 = vmatpush1.bf16.msra.mxu0 %v1064
    %1086 = vmatprep.subr.bf16.mxu0 %v1069
    %1087 = vmatpush1.bf16.msra.mxu0 %v1068
    %1088 = vmatprep.subr.bf16.mxu0 0
    %1089 = vmatpush1.bf16.msra.mxu0 0
    %1090 = vmatprep.subr.bf16.mxu0 0
    %1091 = vmatpush1.bf16.msra.mxu0 0
    %1092 = vmatprep.subr.bf16.mxu0 0
    %1093 = vmatpush1.bf16.msra.mxu0 0
    %1094 = vmatprep.subr.bf16.mxu0 0
    %1095 = vmatpush1.bf16.msra.mxu0 0
    %1096 = vmatprep.subr.bf16.mxu0 0
    %1097 = vmatpush1.bf16.msra.mxu0 0
    %1098 = vmatprep.subr.bf16.mxu0 0
    %1099 = vmatpush1.bf16.msra.mxu0 0
    %1100 = vmatprep.subr.bf16.mxu0 0
    %1101 = vmatpush1.bf16.msra.mxu0 0
    %1102 = vmatprep.subr.bf16.mxu0 0
    %1103 = vmatpush1.bf16.msra.mxu0 0
    %1104 = vmatprep.mubr.bf16.mxu0 0
    %1105 = vmatmul.mubr.bf16.gmra.mrb[0].mxu0 %v1039
    %v1106 = vpop.f32.mrb[0].mxu0
    %v1107 = vadd.f32 0.0, %v1106
    %v1108 = vpop.f32.mrb[0].mxu0
    %v1109 = vadd.f32 0.0, %v1108
    %v1110 = vpop.f32.mrb[0].mxu0
    %v1111 = vpop.f32.mrb[0].mxu0
    %1112 = vdwg.mxu0
    %1113 = vmatprep.subr.bf16.mxu0 %v1043
    %1114 = vmatpush1.bf16.msra.mxu0 %v1042
    %1115 = vmatprep.subr.bf16.mxu0 %v1047
    %1116 = vmatpush1.bf16.msra.mxu0 %v1046
    %1117 = vmatprep.subr.bf16.mxu0 %v1051
    %1118 = vmatpush1.bf16.msra.mxu0 %v1050
    %1119 = vmatprep.subr.bf16.mxu0 %v1055
    %1120 = vmatpush1.bf16.msra.mxu0 %v1054
    %1121 = vmatprep.subr.bf16.mxu0 %v1059
    %1122 = vmatpush1.bf16.msra.mxu0 %v1058
    %1123 = vmatprep.subr.bf16.mxu0 %v1063
    %1124 = vmatpush1.bf16.msra.mxu0 %v1062
    %1125 = vmatprep.subr.bf16.mxu0 %v1067
    %1126 = vmatpush1.bf16.msra.mxu0 %v1066
    %1127 = vmatprep.subr.bf16.mxu0 %v1071
    %1128 = vmatpush1.bf16.msra.mxu0 %v1070
    %1129 = vmatprep.subr.bf16.mxu0 0
    %1130 = vmatpush1.bf16.msra.mxu0 0
    %1131 = vmatprep.subr.bf16.mxu0 0
    %1132 = vmatpush1.bf16.msra.mxu0 0
    %1133 = vmatprep.subr.bf16.mxu0 0
    %1134 = vmatpush1.bf16.msra.mxu0 0
    %1135 = vmatprep.subr.bf16.mxu0 0
    %1136 = vmatpush1.bf16.msra.mxu0 0
    %1137 = vmatprep.subr.bf16.mxu0 0
    %1138 = vmatpush1.bf16.msra.mxu0 0
    %1139 = vmatprep.subr.bf16.mxu0 0
    %1140 = vmatpush1.bf16.msra.mxu0 0
    %1141 = vmatprep.subr.bf16.mxu0 0
    %1142 = vmatpush1.bf16.msra.mxu0 0
    %1143 = vmatprep.subr.bf16.mxu0 0
    %1144 = vmatpush1.bf16.msra.mxu0 0
    %1145 = vmatprep.mubr.bf16.mxu0 0
    %1146 = vmatmul.mubr.bf16.gmra.mrb[0].mxu0 %v1039
    %v1147 = vpop.f32.mrb[0].mxu0
    %v1148 = vadd.f32 0.0, %v1147
    %v1149 = vpop.f32.mrb[0].mxu0
    %v1150 = vadd.f32 0.0, %v1149
    %v1151 = vpop.f32.mrb[0].mxu0
    %v1152 = vpop.f32.mrb[0].mxu0
    %1153 = vdwg.mxu0
    %v1154 = vadd.f32 %v1035, %v1107
    %v1155 = vadd.f32 %v1036, %v1109
    %v1156 = vadd.f32 %v1037, %v1148
    %v1157 = vadd.f32 %v1038, %v1150
    %v1158 = vxor.u32 %v1154, 2147483648
    %v1159 = vmul.f32 %v1158, 1.442695
    %v1160 = vpow.pop %v1159
    %v1161 = vadd.f32 %v1160, 1.0
    %v1162 = vrcp.pop %v1161
    %v1163 = vmul.f32 1.0, %v1162
    %v1164 = vxor.u32 %v1155, 2147483648
    %v1165 = vmul.f32 %v1164, 1.442695
    %v1166 = vpow.pop %v1165
    %v1167 = vadd.f32 %v1166, 1.0
    %v1168 = vrcp.pop %v1167
    %v1169 = vmul.f32 1.0, %v1168
    %v1170 = vtanh.pop %v1156
    %v1171 = vxor.u32 %v1157, 2147483648
    %v1172 = vmul.f32 %v1171, 1.442695
    %v1173 = vpow.pop %v1172
    %v1174 = vadd.f32 %v1173, 1.0
    %v1175 = vrcp.pop %v1174
    %v1176 = vmul.f32 1.0, %v1175
    %v1177 = vld [vmem:[#allocation6] sm:$0xff]
    %v1178 = vmul.f32 %v1169, %v1177
    %v1179 = vmul.f32 %v1163, %v1170
    %v1180 = vadd.f32 %v1178, %v1179
    %v1181 = vtanh.pop %v1180
    %v1182 = vmul.f32 %v1176, %v1181
    %1183 = vst [vmem:[#allocation6] sm:$0xff] %v1180
    %v1184 = vpack.c.bf16 %v1182, %v1182
    %1185 = vst [vmem:[#allocation5] sm:$0xf] %v1184
    %s1186 = scalar_lea.vmem %s4, 8
    %1187 = vst [vmem:[%s1186] sm:$0xff] %v1182
    %s1188 = scalar_lea.vmem [#allocation4], 64
    %v1189 = vld [vmem:[%s1188] sm:$0xff]
    %v1190 = vld [vmem:[%s1188 + $0x8] sm:$0xff]
    %v1191 = vld [vmem:[%s1188 + $0x10] sm:$0xff]
    %v1192 = vld [vmem:[%s1188 + $0x18] sm:$0xff]
    %v1193 = vld [vmem:[#allocation5] sm:$0xf]
    %v1194 = vld [vmem:[#allocation3] sm:$0xff]
    %v1195 = vld [vmem:[#allocation3 + $0x8] sm:$0xff]
    %v1196 = vld [vmem:[#allocation3 + $0x10] sm:$0xff]
    %v1197 = vld [vmem:[#allocation3 + $0x18] sm:$0xff]
    %v1198 = vld [vmem:[#allocation3 + $0x20] sm:$0xff]
    %v1199 = vld [vmem:[#allocation3 + $0x28] sm:$0xff]
    %v1200 = vld [vmem:[#allocation3 + $0x30] sm:$0xff]
    %v1201 = vld [vmem:[#allocation3 + $0x38] sm:$0xff]
    %v1202 = vld [vmem:[#allocation3 + $0x40] sm:$0xff]
    %v1203 = vld [vmem:[#allocation3 + $0x48] sm:$0xff]
    %v1204 = vld [vmem:[#allocation3 + $0x50] sm:$0xff]
    %v1205 = vld [vmem:[#allocation3 + $0x58] sm:$0xff]
    %v1206 = vld [vmem:[#allocation3 + $0x60] sm:$0xff]
    %v1207 = vld [vmem:[#allocation3 + $0x68] sm:$0xff]
    %v1208 = vld [vmem:[#allocation3 + $0x70] sm:$0xff]
    %v1209 = vld [vmem:[#allocation3 + $0x78] sm:$0xff]
    %v1210 = vld [vmem:[#allocation3 + $0x80] sm:$0xff]
    %v1211 = vld [vmem:[#allocation3 + $0x88] sm:$0xff]
    %v1212 = vld [vmem:[#allocation3 + $0x90] sm:$0xff]
    %v1213 = vld [vmem:[#allocation3 + $0x98] sm:$0xff]
    %v1214 = vld [vmem:[#allocation3 + $0xa0] sm:$0xff]
    %v1215 = vld [vmem:[#allocation3 + $0xa8] sm:$0xff]
    %v1216 = vld [vmem:[#allocation3 + $0xb0] sm:$0xff]
    %v1217 = vld [vmem:[#allocation3 + $0xb8] sm:$0xff]
    %v1218 = vld [vmem:[#allocation3 + $0xc0] sm:$0xff]
    %v1219 = vld [vmem:[#allocation3 + $0xc8] sm:$0xff]
    %v1220 = vld [vmem:[#allocation3 + $0xd0] sm:$0xff]
    %v1221 = vld [vmem:[#allocation3 + $0xd8] sm:$0xff]
    %v1222 = vld [vmem:[#allocation3 + $0xe0] sm:$0xff]
    %v1223 = vld [vmem:[#allocation3 + $0xe8] sm:$0xff]
    %v1224 = vld [vmem:[#allocation3 + $0xf0] sm:$0xff]
    %v1225 = vld [vmem:[#allocation3 + $0xf8] sm:$0xff]
    %1226 = vmatprep.subr.bf16.mxu0 %v1195
    %1227 = vmatpush1.bf16.msra.mxu0 %v1194
    %1228 = vmatprep.subr.bf16.mxu0 %v1199
    %1229 = vmatpush1.bf16.msra.mxu0 %v1198
    %1230 = vmatprep.subr.bf16.mxu0 %v1203
    %1231 = vmatpush1.bf16.msra.mxu0 %v1202
    %1232 = vmatprep.subr.bf16.mxu0 %v1207
    %1233 = vmatpush1.bf16.msra.mxu0 %v1206
    %1234 = vmatprep.subr.bf16.mxu0 %v1211
    %1235 = vmatpush1.bf16.msra.mxu0 %v1210
    %1236 = vmatprep.subr.bf16.mxu0 %v1215
    %1237 = vmatpush1.bf16.msra.mxu0 %v1214
    %1238 = vmatprep.subr.bf16.mxu0 %v1219
    %1239 = vmatpush1.bf16.msra.mxu0 %v1218
    %1240 = vmatprep.subr.bf16.mxu0 %v1223
    %1241 = vmatpush1.bf16.msra.mxu0 %v1222
    %1242 = vmatprep.subr.bf16.mxu0 0
    %1243 = vmatpush1.bf16.msra.mxu0 0
    %1244 = vmatprep.subr.bf16.mxu0 0
    %1245 = vmatpush1.bf16.msra.mxu0 0
    %1246 = vmatprep.subr.bf16.mxu0 0
    %1247 = vmatpush1.bf16.msra.mxu0 0
    %1248 = vmatprep.subr.bf16.mxu0 0
    %1249 = vmatpush1.bf16.msra.mxu0 0
    %1250 = vmatprep.subr.bf16.mxu0 0
    %1251 = vmatpush1.bf16.msra.mxu0 0
    %1252 = vmatprep.subr.bf16.mxu0 0
    %1253 = vmatpush1.bf16.msra.mxu0 0
    %1254 = vmatprep.subr.bf16.mxu0 0
    %1255 = vmatpush1.bf16.msra.mxu0 0
    %1256 = vmatprep.subr.bf16.mxu0 0
    %1257 = vmatpush1.bf16.msra.mxu0 0
    %1258 = vmatprep.mubr.bf16.mxu0 0
    %1259 = vmatmul.mubr.bf16.gmra.mrb[0].mxu0 %v1193
    %v1260 = vpop.f32.mrb[0].mxu0
    %v1261 = vadd.f32 0.0, %v1260
    %v1262 = vpop.f32.mrb[0].mxu0
    %v1263 = vadd.f32 0.0, %v1262
    %v1264 = vpop.f32.mrb[0].mxu0
    %v1265 = vpop.f32.mrb[0].mxu0
    %1266 = vdwg.mxu0
    %1267 = vmatprep.subr.bf16.mxu0 %v1197
    %1268 = vmatpush1.bf16.msra.mxu0 %v1196
    %1269 = vmatprep.subr.bf16.mxu0 %v1201
    %1270 = vmatpush1.bf16.msra.mxu0 %v1200
    %1271 = vmatprep.subr.bf16.mxu0 %v1205
    %1272 = vmatpush1.bf16.msra.mxu0 %v1204
    %1273 = vmatprep.subr.bf16.mxu0 %v1209
    %1274 = vmatpush1.bf16.msra.mxu0 %v1208
    %1275 = vmatprep.subr.bf16.mxu0 %v1213
    %1276 = vmatpush1.bf16.msra.mxu0 %v1212
    %1277 = vmatprep.subr.bf16.mxu0 %v1217
    %1278 = vmatpush1.bf16.msra.mxu0 %v1216
    %1279 = vmatprep.subr.bf16.mxu0 %v1221
    %1280 = vmatpush1.bf16.msra.mxu0 %v1220
    %1281 = vmatprep.subr.bf16.mxu0 %v1225
    %1282 = vmatpush1.bf16.msra.mxu0 %v1224
    %1283 = vmatprep.subr.bf16.mxu0 0
    %1284 = vmatpush1.bf16.msra.mxu0 0
    %1285 = vmatprep.subr.bf16.mxu0 0
    %1286 = vmatpush1.bf16.msra.mxu0 0
    %1287 = vmatprep.subr.bf16.mxu0 0
    %1288 = vmatpush1.bf16.msra.mxu0 0
    %1289 = vmatprep.subr.bf16.mxu0 0
    %1290 = vmatpush1.bf16.msra.mxu0 0
    %1291 = vmatprep.subr.bf16.mxu0 0
    %1292 = vmatpush1.bf16.msra.mxu0 0
    %1293 = vmatprep.subr.bf16.mxu0 0
    %1294 = vmatpush1.bf16.msra.mxu0 0
    %1295 = vmatprep.subr.bf16.mxu0 0
    %1296 = vmatpush1.bf16.msra.mxu0 0
    %1297 = vmatprep.subr.bf16.mxu0 0
    %1298 = vmatpush1.bf16.msra.mxu0 0
    %1299 = vmatprep.mubr.bf16.mxu0 0
    %1300 = vmatmul.mubr.bf16.gmra.mrb[0].mxu0 %v1193
    %v1301 = vpop.f32.mrb[0].mxu0
    %v1302 = vadd.f32 0.0, %v1301
    %v1303 = vpop.f32.mrb[0].mxu0
    %v1304 = vadd.f32 0.0, %v1303
    %v1305 = vpop.f32.mrb[0].mxu0
    %v1306 = vpop.f32.mrb[0].mxu0
    %1307 = vdwg.mxu0
    %v1308 = vadd.f32 %v1189, %v1261
    %v1309 = vadd.f32 %v1190, %v1263
    %v1310 = vadd.f32 %v1191, %v1302
    %v1311 = vadd.f32 %v1192, %v1304
    %v1312 = vxor.u32 %v1308, 2147483648
    %v1313 = vmul.f32 %v1312, 1.442695
    %v1314 = vpow.pop %v1313
    %v1315 = vadd.f32 %v1314, 1.0
    %v1316 = vrcp.pop %v1315
    %v1317 = vmul.f32 1.0, %v1316
    %v1318 = vxor.u32 %v1309, 2147483648
    %v1319 = vmul.f32 %v1318, 1.442695
    %v1320 = vpow.pop %v1319
    %v1321 = vadd.f32 %v1320, 1.0
    %v1322 = vrcp.pop %v1321
    %v1323 = vmul.f32 1.0, %v1322
    %v1324 = vtanh.pop %v1310
    %v1325 = vxor.u32 %v1311, 2147483648
    %v1326 = vmul.f32 %v1325, 1.442695
    %v1327 = vpow.pop %v1326
    %v1328 = vadd.f32 %v1327, 1.0
    %v1329 = vrcp.pop %v1328
    %v1330 = vmul.f32 1.0, %v1329
    %v1331 = vld [vmem:[#allocation6] sm:$0xff]
    %v1332 = vmul.f32 %v1323, %v1331
    %v1333 = vmul.f32 %v1317, %v1324
    %v1334 = vadd.f32 %v1332, %v1333
    %v1335 = vtanh.pop %v1334
    %v1336 = vmul.f32 %v1330, %v1335
    %1337 = vst [vmem:[#allocation6] sm:$0xff] %v1334
    %v1338 = vpack.c.bf16 %v1336, %v1336
    %1339 = vst [vmem:[#allocation5] sm:$0xf] %v1338
    %s1340 = scalar_lea.vmem %s4, 16
    %1341 = vst [vmem:[%s1340] sm:$0xff] %v1336
    %s1342 = scalar_lea.vmem [#allocation4], 96
    %v1343 = vld [vmem:[%s1342] sm:$0xff]
    %v1344 = vld [vmem:[%s1342 + $0x8] sm:$0xff]
    %v1345 = vld [vmem:[%s1342 + $0x10] sm:$0xff]
    %v1346 = vld [vmem:[%s1342 + $0x18] sm:$0xff]
    %v1347 = vld [vmem:[#allocation5] sm:$0xf]
    %v1348 = vld [vmem:[#allocation3] sm:$0xff]
    %v1349 = vld [vmem:[#allocation3 + $0x8] sm:$0xff]
    %v1350 = vld [vmem:[#allocation3 + $0x10] sm:$0xff]
    %v1351 = vld [vmem:[#allocation3 + $0x18] sm:$0xff]
    %v1352 = vld [vmem:[#allocation3 + $0x20] sm:$0xff]
    %v1353 = vld [vmem:[#allocation3 + $0x28] sm:$0xff]
    %v1354 = vld [vmem:[#allocation3 + $0x30] sm:$0xff]
    %v1355 = vld [vmem:[#allocation3 + $0x38] sm:$0xff]
    %v1356 = vld [vmem:[#allocation3 + $0x40] sm:$0xff]
    %v1357 = vld [vmem:[#allocation3 + $0x48] sm:$0xff]
    %v1358 = vld [vmem:[#allocation3 + $0x50] sm:$0xff]
    %v1359 = vld [vmem:[#allocation3 + $0x58] sm:$0xff]
    %v1360 = vld [vmem:[#allocation3 + $0x60] sm:$0xff]
    %v1361 = vld [vmem:[#allocation3 + $0x68] sm:$0xff]
    %v1362 = vld [vmem:[#allocation3 + $0x70] sm:$0xff]
    %v1363 = vld [vmem:[#allocation3 + $0x78] sm:$0xff]
    %v1364 = vld [vmem:[#allocation3 + $0x80] sm:$0xff]
    %v1365 = vld [vmem:[#allocation3 + $0x88] sm:$0xff]
    %v1366 = vld [vmem:[#allocation3 + $0x90] sm:$0xff]
    %v1367 = vld [vmem:[#allocation3 + $0x98] sm:$0xff]
    %v1368 = vld [vmem:[#allocation3 + $0xa0] sm:$0xff]
    %v1369 = vld [vmem:[#allocation3 + $0xa8] sm:$0xff]
    %v1370 = vld [vmem:[#allocation3 + $0xb0] sm:$0xff]
    %v1371 = vld [vmem:[#allocation3 + $0xb8] sm:$0xff]
    %v1372 = vld [vmem:[#allocation3 + $0xc0] sm:$0xff]
    %v1373 = vld [vmem:[#allocation3 + $0xc8] sm:$0xff]
    %v1374 = vld [vmem:[#allocation3 + $0xd0] sm:$0xff]
    %v1375 = vld [vmem:[#allocation3 + $0xd8] sm:$0xff]
    %v1376 = vld [vmem:[#allocation3 + $0xe0] sm:$0xff]
    %v1377 = vld [vmem:[#allocation3 + $0xe8] sm:$0xff]
    %v1378 = vld [vmem:[#allocation3 + $0xf0] sm:$0xff]
    %v1379 = vld [vmem:[#allocation3 + $0xf8] sm:$0xff]
    %1380 = vmatprep.subr.bf16.mxu0 %v1349
    %1381 = vmatpush1.bf16.msra.mxu0 %v1348
    %1382 = vmatprep.subr.bf16.mxu0 %v1353
    %1383 = vmatpush1.bf16.msra.mxu0 %v1352
    %1384 = vmatprep.subr.bf16.mxu0 %v1357
    %1385 = vmatpush1.bf16.msra.mxu0 %v1356
    %1386 = vmatprep.subr.bf16.mxu0 %v1361
    %1387 = vmatpush1.bf16.msra.mxu0 %v1360
    %1388 = vmatprep.subr.bf16.mxu0 %v1365
    %1389 = vmatpush1.bf16.msra.mxu0 %v1364
    %1390 = vmatprep.subr.bf16.mxu0 %v1369
    %1391 = vmatpush1.bf16.msra.mxu0 %v1368
    %1392 = vmatprep.subr.bf16.mxu0 %v1373
    %1393 = vmatpush1.bf16.msra.mxu0 %v1372
    %1394 = vmatprep.subr.bf16.mxu0 %v1377
    %1395 = vmatpush1.bf16.msra.mxu0 %v1376
    %1396 = vmatprep.subr.bf16.mxu0 0
    %1397 = vmatpush1.bf16.msra.mxu0 0
    %1398 = vmatprep.subr.bf16.mxu0 0
    %1399 = vmatpush1.bf16.msra.mxu0 0
    %1400 = vmatprep.subr.bf16.mxu0 0
    %1401 = vmatpush1.bf16.msra.mxu0 0
    %1402 = vmatprep.subr.bf16.mxu0 0
    %1403 = vmatpush1.bf16.msra.mxu0 0
    %1404 = vmatprep.subr.bf16.mxu0 0
    %1405 = vmatpush1.bf16.msra.mxu0 0
    %1406 = vmatprep.subr.bf16.mxu0 0
    %1407 = vmatpush1.bf16.msra.mxu0 0
    %1408 = vmatprep.subr.bf16.mxu0 0
    %1409 = vmatpush1.bf16.msra.mxu0 0
    %1410 = vmatprep.subr.bf16.mxu0 0
    %1411 = vmatpush1.bf16.msra.mxu0 0
    %1412 = vmatprep.mubr.bf16.mxu0 0
    %1413 = vmatmul.mubr.bf16.gmra.mrb[0].mxu0 %v1347
    %v1414 = vpop.f32.mrb[0].mxu0
    %v1415 = vadd.f32 0.0, %v1414
    %v1416 = vpop.f32.mrb[0].mxu0
    %v1417 = vadd.f32 0.0, %v1416
    %v1418 = vpop.f32.mrb[0].mxu0
    %v1419 = vpop.f32.mrb[0].mxu0
    %1420 = vdwg.mxu0
    %1421 = vmatprep.subr.bf16.mxu0 %v1351
    %1422 = vmatpush1.bf16.msra.mxu0 %v1350
    %1423 = vmatprep.subr.bf16.mxu0 %v1355
    %1424 = vmatpush1.bf16.msra.mxu0 %v1354
    %1425 = vmatprep.subr.bf16.mxu0 %v1359
    %1426 = vmatpush1.bf16.msra.mxu0 %v1358
    %1427 = vmatprep.subr.bf16.mxu0 %v1363
    %1428 = vmatpush1.bf16.msra.mxu0 %v1362
    %1429 = vmatprep.subr.bf16.mxu0 %v1367
    %1430 = vmatpush1.bf16.msra.mxu0 %v1366
    %1431 = vmatprep.subr.bf16.mxu0 %v1371
    %1432 = vmatpush1.bf16.msra.mxu0 %v1370
    %1433 = vmatprep.subr.bf16.mxu0 %v1375
    %1434 = vmatpush1.bf16.msra.mxu0 %v1374
    %1435 = vmatprep.subr.bf16.mxu0 %v1379
    %1436 = vmatpush1.bf16.msra.mxu0 %v1378
    %1437 = vmatprep.subr.bf16.mxu0 0
    %1438 = vmatpush1.bf16.msra.mxu0 0
    %1439 = vmatprep.subr.bf16.mxu0 0
    %1440 = vmatpush1.bf16.msra.mxu0 0
    %1441 = vmatprep.subr.bf16.mxu0 0
    %1442 = vmatpush1.bf16.msra.mxu0 0
    %1443 = vmatprep.subr.bf16.mxu0 0
    %1444 = vmatpush1.bf16.msra.mxu0 0
    %1445 = vmatprep.subr.bf16.mxu0 0
    %1446 = vmatpush1.bf16.msra.mxu0 0
    %1447 = vmatprep.subr.bf16.mxu0 0
    %1448 = vmatpush1.bf16.msra.mxu0 0
    %1449 = vmatprep.subr.bf16.mxu0 0
    %1450 = vmatpush1.bf16.msra.mxu0 0
    %1451 = vmatprep.subr.bf16.mxu0 0
    %1452 = vmatpush1.bf16.msra.mxu0 0
    %1453 = vmatprep.mubr.bf16.mxu0 0
    %1454 = vmatmul.mubr.bf16.gmra.mrb[0].mxu0 %v1347
    %v1455 = vpop.f32.mrb[0].mxu0
    %v1456 = vadd.f32 0.0, %v1455
    %v1457 = vpop.f32.mrb[0].mxu0
    %v1458 = vadd.f32 0.0, %v1457
    %v1459 = vpop.f32.mrb[0].mxu0
    %v1460 = vpop.f32.mrb[0].mxu0
    %1461 = vdwg.mxu0
    %v1462 = vadd.f32 %v1343, %v1415
    %v1463 = vadd.f32 %v1344, %v1417
    %v1464 = vadd.f32 %v1345, %v1456
    %v1465 = vadd.f32 %v1346, %v1458
    %v1466 = vxor.u32 %v1462, 2147483648
    %v1467 = vmul.f32 %v1466, 1.442695
    %v1468 = vpow.pop %v1467
    %v1469 = vadd.f32 %v1468, 1.0
    %v1470 = vrcp.pop %v1469
    %v1471 = vmul.f32 1.0, %v1470
    %v1472 = vxor.u32 %v1463, 2147483648
    %v1473 = vmul.f32 %v1472, 1.442695
    %v1474 = vpow.pop %v1473
    %v1475 = vadd.f32 %v1474, 1.0
    %v1476 = vrcp.pop %v1475
    %v1477 = vmul.f32 1.0, %v1476
    %v1478 = vtanh.pop %v1464
    %v1479 = vxor.u32 %v1465, 2147483648
    %v1480 = vmul.f32 %v1479, 1.442695
    %v1481 = vpow.pop %v1480
    %v1482 = vadd.f32 %v1481, 1.0
    %v1483 = vrcp.pop %v1482
    %v1484 = vmul.f32 1.0, %v1483
    %v1485 = vld [vmem:[#allocation6] sm:$0xff]
    %v1486 = vmul.f32 %v1477, %v1485
    %v1487 = vmul.f32 %v1471, %v1478
    %v1488 = vadd.f32 %v1486, %v1487
    %v1489 = vtanh.pop %v1488
    %v1490 = vmul.f32 %v1484, %v1489
    %1491 = vst [vmem:[#allocation6] sm:$0xff] %v1488
    %v1492 = vpack.c.bf16 %v1490, %v1490
    %1493 = vst [vmem:[#allocation5] sm:$0xf] %v1492
    %s1494 = scalar_lea.vmem %s4, 24
    %1495 = vst [vmem:[%s1494] sm:$0xff] %v1490
    %s1496 = scalar_lea.vmem [#allocation4], 128
    %v1497 = vld [vmem:[%s1496] sm:$0xff]
    %v1498 = vld [vmem:[%s1496 + $0x8] sm:$0xff]
    %v1499 = vld [vmem:[%s1496 + $0x10] sm:$0xff]
    %v1500 = vld [vmem:[%s1496 + $0x18] sm:$0xff]
    %v1501 = vld [vmem:[#allocation5] sm:$0xf]
    %v1502 = vld [vmem:[#allocation3] sm:$0xff]
    %v1503 = vld [vmem:[#allocation3 + $0x8] sm:$0xff]
    %v1504 = vld [vmem:[#allocation3 + $0x10] sm:$0xff]
    %v1505 = vld [vmem:[#allocation3 + $0x18] sm:$0xff]
    %v1506 = vld [vmem:[#allocation3 + $0x20] sm:$0xff]
    %v1507 = vld [vmem:[#allocation3 + $0x28] sm:$0xff]
    %v1508 = vld [vmem:[#allocation3 + $0x30] sm:$0xff]
    %v1509 = vld [vmem:[#allocation3 + $0x38] sm:$0xff]
    %v1510 = vld [vmem:[#allocation3 + $0x40] sm:$0xff]
    %v1511 = vld [vmem:[#allocation3 + $0x48] sm:$0xff]
    %v1512 = vld [vmem:[#allocation3 + $0x50] sm:$0xff]
    %v1513 = vld [vmem:[#allocation3 + $0x58] sm:$0xff]
    %v1514 = vld [vmem:[#allocation3 + $0x60] sm:$0xff]
    %v1515 = vld [vmem:[#allocation3 + $0x68] sm:$0xff]
    %v1516 = vld [vmem:[#allocation3 + $0x70] sm:$0xff]
    %v1517 = vld [vmem:[#allocation3 + $0x78] sm:$0xff]
    %v1518 = vld [vmem:[#allocation3 + $0x80] sm:$0xff]
    %v1519 = vld [vmem:[#allocation3 + $0x88] sm:$0xff]
    %v1520 = vld [vmem:[#allocation3 + $0x90] sm:$0xff]
    %v1521 = vld [vmem:[#allocation3 + $0x98] sm:$0xff]
    %v1522 = vld [vmem:[#allocation3 + $0xa0] sm:$0xff]
    %v1523 = vld [vmem:[#allocation3 + $0xa8] sm:$0xff]
    %v1524 = vld [vmem:[#allocation3 + $0xb0] sm:$0xff]
    %v1525 = vld [vmem:[#allocation3 + $0xb8] sm:$0xff]
    %v1526 = vld [vmem:[#allocation3 + $0xc0] sm:$0xff]
    %v1527 = vld [vmem:[#allocation3 + $0xc8] sm:$0xff]
    %v1528 = vld [vmem:[#allocation3 + $0xd0] sm:$0xff]
    %v1529 = vld [vmem:[#allocation3 + $0xd8] sm:$0xff]
    %v1530 = vld [vmem:[#allocation3 + $0xe0] sm:$0xff]
    %v1531 = vld [vmem:[#allocation3 + $0xe8] sm:$0xff]
    %v1532 = vld [vmem:[#allocation3 + $0xf0] sm:$0xff]
    %v1533 = vld [vmem:[#allocation3 + $0xf8] sm:$0xff]
    %1534 = vmatprep.subr.bf16.mxu0 %v1503
    %1535 = vmatpush1.bf16.msra.mxu0 %v1502
    %1536 = vmatprep.subr.bf16.mxu0 %v1507
    %1537 = vmatpush1.bf16.msra.mxu0 %v1506
    %1538 = vmatprep.subr.bf16.mxu0 %v1511
    %1539 = vmatpush1.bf16.msra.mxu0 %v1510
    %1540 = vmatprep.subr.bf16.mxu0 %v1515
    %1541 = vmatpush1.bf16.msra.mxu0 %v1514
    %1542 = vmatprep.subr.bf16.mxu0 %v1519
    %1543 = vmatpush1.bf16.msra.mxu0 %v1518
    %1544 = vmatprep.subr.bf16.mxu0 %v1523
    %1545 = vmatpush1.bf16.msra.mxu0 %v1522
    %1546 = vmatprep.subr.bf16.mxu0 %v1527
    %1547 = vmatpush1.bf16.msra.mxu0 %v1526
    %1548 = vmatprep.subr.bf16.mxu0 %v1531
    %1549 = vmatpush1.bf16.msra.mxu0 %v1530
    %1550 = vmatprep.subr.bf16.mxu0 0
    %1551 = vmatpush1.bf16.msra.mxu0 0
    %1552 = vmatprep.subr.bf16.mxu0 0
    %1553 = vmatpush1.bf16.msra.mxu0 0
    %1554 = vmatprep.subr.bf16.mxu0 0
    %1555 = vmatpush1.bf16.msra.mxu0 0
    %1556 = vmatprep.subr.bf16.mxu0 0
    %1557 = vmatpush1.bf16.msra.mxu0 0
    %1558 = vmatprep.subr.bf16.mxu0 0
    %1559 = vmatpush1.bf16.msra.mxu0 0
    %1560 = vmatprep.subr.bf16.mxu0 0
    %1561 = vmatpush1.bf16.msra.mxu0 0
    %1562 = vmatprep.subr.bf16.mxu0 0
    %1563 = vmatpush1.bf16.msra.mxu0 0
    %1564 = vmatprep.subr.bf16.mxu0 0
    %1565 = vmatpush1.bf16.msra.mxu0 0
    %1566 = vmatprep.mubr.bf16.mxu0 0
    %1567 = vmatmul.mubr.bf16.gmra.mrb[0].mxu0 %v1501
    %v1568 = vpop.f32.mrb[0].mxu0
    %v1569 = vadd.f32 0.0, %v1568
    %v1570 = vpop.f32.mrb[0].mxu0
    %v1571 = vadd.f32 0.0, %v1570
    %v1572 = vpop.f32.mrb[0].mxu0
    %v1573 = vpop.f32.mrb[0].mxu0
    %1574 = vdwg.mxu0
    %1575 = vmatprep.subr.bf16.mxu0 %v1505
    %1576 = vmatpush1.bf16.msra.mxu0 %v1504
    %1577 = vmatprep.subr.bf16.mxu0 %v1509
    %1578 = vmatpush1.bf16.msra.mxu0 %v1508
    %1579 = vmatprep.subr.bf16.mxu0 %v1513
    %1580 = vmatpush1.bf16.msra.mxu0 %v1512
    %1581 = vmatprep.subr.bf16.mxu0 %v1517
    %1582 = vmatpush1.bf16.msra.mxu0 %v1516
    %1583 = vmatprep.subr.bf16.mxu0 %v1521
    %1584 = vmatpush1.bf16.msra.mxu0 %v1520
    %1585 = vmatprep.subr.bf16.mxu0 %v1525
    %1586 = vmatpush1.bf16.msra.mxu0 %v1524
    %1587 = vmatprep.subr.bf16.mxu0 %v1529
    %1588 = vmatpush1.bf16.msra.mxu0 %v1528
    %1589 = vmatprep.subr.bf16.mxu0 %v1533
    %1590 = vmatpush1.bf16.msra.mxu0 %v1532
    %1591 = vmatprep.subr.bf16.mxu0 0
    %1592 = vmatpush1.bf16.msra.mxu0 0
    %1593 = vmatprep.subr.bf16.mxu0 0
    %1594 = vmatpush1.bf16.msra.mxu0 0
    %1595 = vmatprep.subr.bf16.mxu0 0
    %1596 = vmatpush1.bf16.msra.mxu0 0
    %1597 = vmatprep.subr.bf16.mxu0 0
    %1598 = vmatpush1.bf16.msra.mxu0 0
    %1599 = vmatprep.subr.bf16.mxu0 0
    %1600 = vmatpush1.bf16.msra.mxu0 0
    %1601 = vmatprep.subr.bf16.mxu0 0
    %1602 = vmatpush1.bf16.msra.mxu0 0
    %1603 = vmatprep.subr.bf16.mxu0 0
    %1604 = vmatpush1.bf16.msra.mxu0 0
    %1605 = vmatprep.subr.bf16.mxu0 0
    %1606 = vmatpush1.bf16.msra.mxu0 0
    %1607 = vmatprep.mubr.bf16.mxu0 0
    %1608 = vmatmul.mubr.bf16.gmra.mrb[0].mxu0 %v1501
    %v1609 = vpop.f32.mrb[0].mxu0
    %v1610 = vadd.f32 0.0, %v1609
    %v1611 = vpop.f32.mrb[0].mxu0
    %v1612 = vadd.f32 0.0, %v1611
    %v1613 = vpop.f32.mrb[0].mxu0
    %v1614 = vpop.f32.mrb[0].mxu0
    %1615 = vdwg.mxu0
    %v1616 = vadd.f32 %v1497, %v1569
    %v1617 = vadd.f32 %v1498, %v1571
    %v1618 = vadd.f32 %v1499, %v1610
    %v1619 = vadd.f32 %v1500, %v1612
    %v1620 = vxor.u32 %v1616, 2147483648
    %v1621 = vmul.f32 %v1620, 1.442695
    %v1622 = vpow.pop %v1621
    %v1623 = vadd.f32 %v1622, 1.0
    %v1624 = vrcp.pop %v1623
    %v1625 = vmul.f32 1.0, %v1624
    %v1626 = vxor.u32 %v1617, 2147483648
    %v1627 = vmul.f32 %v1626, 1.442695
    %v1628 = vpow.pop %v1627
    %v1629 = vadd.f32 %v1628, 1.0
    %v1630 = vrcp.pop %v1629
    %v1631 = vmul.f32 1.0, %v1630
    %v1632 = vtanh.pop %v1618
    %v1633 = vxor.u32 %v1619, 2147483648
    %v1634 = vmul.f32 %v1633, 1.442695
    %v1635 = vpow.pop %v1634
    %v1636 = vadd.f32 %v1635, 1.0
    %v1637 = vrcp.pop %v1636
    %v1638 = vmul.f32 1.0, %v1637
    %v1639 = vld [vmem:[#allocation6] sm:$0xff]
    %v1640 = vmul.f32 %v1631, %v1639
    %v1641 = vmul.f32 %v1625, %v1632
    %v1642 = vadd.f32 %v1640, %v1641
    %v1643 = vtanh.pop %v1642
    %v1644 = vmul.f32 %v1638, %v1643
    %1645 = vst [vmem:[#allocation6] sm:$0xff] %v1642
    %v1646 = vpack.c.bf16 %v1644, %v1644
    %1647 = vst [vmem:[#allocation5] sm:$0xf] %v1646
    %s1648 = scalar_lea.vmem %s4, 32
    %1649 = vst [vmem:[%s1648] sm:$0xff] %v1644
    %s1650 = scalar_lea.vmem [#allocation4], 160
    %v1651 = vld [vmem:[%s1650] sm:$0xff]
    %v1652 = vld [vmem:[%s1650 + $0x8] sm:$0xff]
    %v1653 = vld [vmem:[%s1650 + $0x10] sm:$0xff]
    %v1654 = vld [vmem:[%s1650 + $0x18] sm:$0xff]
    %v1655 = vld [vmem:[#allocation5] sm:$0xf]
    %v1656 = vld [vmem:[#allocation3] sm:$0xff]
    %v1657 = vld [vmem:[#allocation3 + $0x8] sm:$0xff]
    %v1658 = vld [vmem:[#allocation3 + $0x10] sm:$0xff]
    %v1659 = vld [vmem:[#allocation3 + $0x18] sm:$0xff]
    %v1660 = vld [vmem:[#allocation3 + $0x20] sm:$0xff]
    %v1661 = vld [vmem:[#allocation3 + $0x28] sm:$0xff]
    %v1662 = vld [vmem:[#allocation3 + $0x30] sm:$0xff]
    %v1663 = vld [vmem:[#allocation3 + $0x38] sm:$0xff]
    %v1664 = vld [vmem:[#allocation3 + $0x40] sm:$0xff]
    %v1665 = vld [vmem:[#allocation3 + $0x48] sm:$0xff]
    %v1666 = vld [vmem:[#allocation3 + $0x50] sm:$0xff]
    %v1667 = vld [vmem:[#allocation3 + $0x58] sm:$0xff]
    %v1668 = vld [vmem:[#allocation3 + $0x60] sm:$0xff]
    %v1669 = vld [vmem:[#allocation3 + $0x68] sm:$0xff]
    %v1670 = vld [vmem:[#allocation3 + $0x70] sm:$0xff]
    %v1671 = vld [vmem:[#allocation3 + $0x78] sm:$0xff]
    %v1672 = vld [vmem:[#allocation3 + $0x80] sm:$0xff]
    %v1673 = vld [vmem:[#allocation3 + $0x88] sm:$0xff]
    %v1674 = vld [vmem:[#allocation3 + $0x90] sm:$0xff]
    %v1675 = vld [vmem:[#allocation3 + $0x98] sm:$0xff]
    %v1676 = vld [vmem:[#allocation3 + $0xa0] sm:$0xff]
    %v1677 = vld [vmem:[#allocation3 + $0xa8] sm:$0xff]
    %v1678 = vld [vmem:[#allocation3 + $0xb0] sm:$0xff]
    %v1679 = vld [vmem:[#allocation3 + $0xb8] sm:$0xff]
    %v1680 = vld [vmem:[#allocation3 + $0xc0] sm:$0xff]
    %v1681 = vld [vmem:[#allocation3 + $0xc8] sm:$0xff]
    %v1682 = vld [vmem:[#allocation3 + $0xd0] sm:$0xff]
    %v1683 = vld [vmem:[#allocation3 + $0xd8] sm:$0xff]
    %v1684 = vld [vmem:[#allocation3 + $0xe0] sm:$0xff]
    %v1685 = vld [vmem:[#allocation3 + $0xe8] sm:$0xff]
    %v1686 = vld [vmem:[#allocation3 + $0xf0] sm:$0xff]
    %v1687 = vld [vmem:[#allocation3 + $0xf8] sm:$0xff]
    %1688 = vmatprep.subr.bf16.mxu0 %v1657
    %1689 = vmatpush1.bf16.msra.mxu0 %v1656
    %1690 = vmatprep.subr.bf16.mxu0 %v1661
    %1691 = vmatpush1.bf16.msra.mxu0 %v1660
    %1692 = vmatprep.subr.bf16.mxu0 %v1665
    %1693 = vmatpush1.bf16.msra.mxu0 %v1664
    %1694 = vmatprep.subr.bf16.mxu0 %v1669
    %1695 = vmatpush1.bf16.msra.mxu0 %v1668
    %1696 = vmatprep.subr.bf16.mxu0 %v1673
    %1697 = vmatpush1.bf16.msra.mxu0 %v1672
    %1698 = vmatprep.subr.bf16.mxu0 %v1677
    %1699 = vmatpush1.bf16.msra.mxu0 %v1676
    %1700 = vmatprep.subr.bf16.mxu0 %v1681
    %1701 = vmatpush1.bf16.msra.mxu0 %v1680
    %1702 = vmatprep.subr.bf16.mxu0 %v1685
    %1703 = vmatpush1.bf16.msra.mxu0 %v1684
    %1704 = vmatprep.subr.bf16.mxu0 0
    %1705 = vmatpush1.bf16.msra.mxu0 0
    %1706 = vmatprep.subr.bf16.mxu0 0
    %1707 = vmatpush1.bf16.msra.mxu0 0
    %1708 = vmatprep.subr.bf16.mxu0 0
    %1709 = vmatpush1.bf16.msra.mxu0 0
    %1710 = vmatprep.subr.bf16.mxu0 0
    %1711 = vmatpush1.bf16.msra.mxu0 0
    %1712 = vmatprep.subr.bf16.mxu0 0
    %1713 = vmatpush1.bf16.msra.mxu0 0
    %1714 = vmatprep.subr.bf16.mxu0 0
    %1715 = vmatpush1.bf16.msra.mxu0 0
    %1716 = vmatprep.subr.bf16.mxu0 0
    %1717 = vmatpush1.bf16.msra.mxu0 0
    %1718 = vmatprep.subr.bf16.mxu0 0
    %1719 = vmatpush1.bf16.msra.mxu0 0
    %1720 = vmatprep.mubr.bf16.mxu0 0
    %1721 = vmatmul.mubr.bf16.gmra.mrb[0].mxu0 %v1655
    %v1722 = vpop.f32.mrb[0].mxu0
    %v1723 = vadd.f32 0.0, %v1722
    %v1724 = vpop.f32.mrb[0].mxu0
    %v1725 = vadd.f32 0.0, %v1724
    %v1726 = vpop.f32.mrb[0].mxu0
    %v1727 = vpop.f32.mrb[0].mxu0
    %1728 = vdwg.mxu0
    %1729 = vmatprep.subr.bf16.mxu0 %v1659
    %1730 = vmatpush1.bf16.msra.mxu0 %v1658
    %1731 = vmatprep.subr.bf16.mxu0 %v1663
    %1732 = vmatpush1.bf16.msra.mxu0 %v1662
    %1733 = vmatprep.subr.bf16.mxu0 %v1667
    %1734 = vmatpush1.bf16.msra.mxu0 %v1666
    %1735 = vmatprep.subr.bf16.mxu0 %v1671
    %1736 = vmatpush1.bf16.msra.mxu0 %v1670
    %1737 = vmatprep.subr.bf16.mxu0 %v1675
    %1738 = vmatpush1.bf16.msra.mxu0 %v1674
    %1739 = vmatprep.subr.bf16.mxu0 %v1679
    %1740 = vmatpush1.bf16.msra.mxu0 %v1678
    %1741 = vmatprep.subr.bf16.mxu0 %v1683
    %1742 = vmatpush1.bf16.msra.mxu0 %v1682
    %1743 = vmatprep.subr.bf16.mxu0 %v1687
    %1744 = vmatpush1.bf16.msra.mxu0 %v1686
    %1745 = vmatprep.subr.bf16.mxu0 0
    %1746 = vmatpush1.bf16.msra.mxu0 0
    %1747 = vmatprep.subr.bf16.mxu0 0
    %1748 = vmatpush1.bf16.msra.mxu0 0
    %1749 = vmatprep.subr.bf16.mxu0 0
    %1750 = vmatpush1.bf16.msra.mxu0 0
    %1751 = vmatprep.subr.bf16.mxu0 0
    %1752 = vmatpush1.bf16.msra.mxu0 0
    %1753 = vmatprep.subr.bf16.mxu0 0
    %1754 = vmatpush1.bf16.msra.mxu0 0
    %1755 = vmatprep.subr.bf16.mxu0 0
    %1756 = vmatpush1.bf16.msra.mxu0 0
    %1757 = vmatprep.subr.bf16.mxu0 0
    %1758 = vmatpush1.bf16.msra.mxu0 0
    %1759 = vmatprep.subr.bf16.mxu0 0
    %1760 = vmatpush1.bf16.msra.mxu0 0
    %1761 = vmatprep.mubr.bf16.mxu0 0
    %1762 = vmatmul.mubr.bf16.gmra.mrb[0].mxu0 %v1655
    %v1763 = vpop.f32.mrb[0].mxu0
    %v1764 = vadd.f32 0.0, %v1763
    %v1765 = vpop.f32.mrb[0].mxu0
    %v1766 = vadd.f32 0.0, %v1765
    %v1767 = vpop.f32.mrb[0].mxu0
    %v1768 = vpop.f32.mrb[0].mxu0
    %1769 = vdwg.mxu0
    %v1770 = vadd.f32 %v1651, %v1723
    %v1771 = vadd.f32 %v1652, %v1725
    %v1772 = vadd.f32 %v1653, %v1764
    %v1773 = vadd.f32 %v1654, %v1766
    %v1774 = vxor.u32 %v1770, 2147483648
    %v1775 = vmul.f32 %v1774, 1.442695
    %v1776 = vpow.pop %v1775
    %v1777 = vadd.f32 %v1776, 1.0
    %v1778 = vrcp.pop %v1777
    %v1779 = vmul.f32 1.0, %v1778
    %v1780 = vxor.u32 %v1771, 2147483648
    %v1781 = vmul.f32 %v1780, 1.442695
    %v1782 = vpow.pop %v1781
    %v1783 = vadd.f32 %v1782, 1.0
    %v1784 = vrcp.pop %v1783
    %v1785 = vmul.f32 1.0, %v1784
    %v1786 = vtanh.pop %v1772
    %v1787 = vxor.u32 %v1773, 2147483648
    %v1788 = vmul.f32 %v1787, 1.442695
    %v1789 = vpow.pop %v1788
    %v1790 = vadd.f32 %v1789, 1.0
    %v1791 = vrcp.pop %v1790
    %v1792 = vmul.f32 1.0, %v1791
    %v1793 = vld [vmem:[#allocation6] sm:$0xff]
    %v1794 = vmul.f32 %v1785, %v1793
    %v1795 = vmul.f32 %v1779, %v1786
    %v1796 = vadd.f32 %v1794, %v1795
    %v1797 = vtanh.pop %v1796
    %v1798 = vmul.f32 %v1792, %v1797
    %1799 = vst [vmem:[#allocation6] sm:$0xff] %v1796
    %v1800 = vpack.c.bf16 %v1798, %v1798
    %1801 = vst [vmem:[#allocation5] sm:$0xf] %v1800
    %s1802 = scalar_lea.vmem %s4, 40
    %1803 = vst [vmem:[%s1802] sm:$0xff] %v1798
    %s1804 = scalar_lea.vmem [#allocation4], 192
    %v1805 = vld [vmem:[%s1804] sm:$0xff]
    %v1806 = vld [vmem:[%s1804 + $0x8] sm:$0xff]
    %v1807 = vld [vmem:[%s1804 + $0x10] sm:$0xff]
    %v1808 = vld [vmem:[%s1804 + $0x18] sm:$0xff]
    %v1809 = vld [vmem:[#allocation5] sm:$0xf]
    %v1810 = vld [vmem:[#allocation3] sm:$0xff]
    %v1811 = vld [vmem:[#allocation3 + $0x8] sm:$0xff]
    %v1812 = vld [vmem:[#allocation3 + $0x10] sm:$0xff]
    %v1813 = vld [vmem:[#allocation3 + $0x18] sm:$0xff]
    %v1814 = vld [vmem:[#allocation3 + $0x20] sm:$0xff]
    %v1815 = vld [vmem:[#allocation3 + $0x28] sm:$0xff]
    %v1816 = vld [vmem:[#allocation3 + $0x30] sm:$0xff]
    %v1817 = vld [vmem:[#allocation3 + $0x38] sm:$0xff]
    %v1818 = vld [vmem:[#allocation3 + $0x40] sm:$0xff]
    %v1819 = vld [vmem:[#allocation3 + $0x48] sm:$0xff]
    %v1820 = vld [vmem:[#allocation3 + $0x50] sm:$0xff]
    %v1821 = vld [vmem:[#allocation3 + $0x58] sm:$0xff]
    %v1822 = vld [vmem:[#allocation3 + $0x60] sm:$0xff]
    %v1823 = vld [vmem:[#allocation3 + $0x68] sm:$0xff]
    %v1824 = vld [vmem:[#allocation3 + $0x70] sm:$0xff]
    %v1825 = vld [vmem:[#allocation3 + $0x78] sm:$0xff]
    %v1826 = vld [vmem:[#allocation3 + $0x80] sm:$0xff]
    %v1827 = vld [vmem:[#allocation3 + $0x88] sm:$0xff]
    %v1828 = vld [vmem:[#allocation3 + $0x90] sm:$0xff]
    %v1829 = vld [vmem:[#allocation3 + $0x98] sm:$0xff]
    %v1830 = vld [vmem:[#allocation3 + $0xa0] sm:$0xff]
    %v1831 = vld [vmem:[#allocation3 + $0xa8] sm:$0xff]
    %v1832 = vld [vmem:[#allocation3 + $0xb0] sm:$0xff]
    %v1833 = vld [vmem:[#allocation3 + $0xb8] sm:$0xff]
    %v1834 = vld [vmem:[#allocation3 + $0xc0] sm:$0xff]
    %v1835 = vld [vmem:[#allocation3 + $0xc8] sm:$0xff]
    %v1836 = vld [vmem:[#allocation3 + $0xd0] sm:$0xff]
    %v1837 = vld [vmem:[#allocation3 + $0xd8] sm:$0xff]
    %v1838 = vld [vmem:[#allocation3 + $0xe0] sm:$0xff]
    %v1839 = vld [vmem:[#allocation3 + $0xe8] sm:$0xff]
    %v1840 = vld [vmem:[#allocation3 + $0xf0] sm:$0xff]
    %v1841 = vld [vmem:[#allocation3 + $0xf8] sm:$0xff]
    %1842 = vmatprep.subr.bf16.mxu0 %v1811
    %1843 = vmatpush1.bf16.msra.mxu0 %v1810
    %1844 = vmatprep.subr.bf16.mxu0 %v1815
    %1845 = vmatpush1.bf16.msra.mxu0 %v1814
    %1846 = vmatprep.subr.bf16.mxu0 %v1819
    %1847 = vmatpush1.bf16.msra.mxu0 %v1818
    %1848 = vmatprep.subr.bf16.mxu0 %v1823
    %1849 = vmatpush1.bf16.msra.mxu0 %v1822
    %1850 = vmatprep.subr.bf16.mxu0 %v1827
    %1851 = vmatpush1.bf16.msra.mxu0 %v1826
    %1852 = vmatprep.subr.bf16.mxu0 %v1831
    %1853 = vmatpush1.bf16.msra.mxu0 %v1830
    %1854 = vmatprep.subr.bf16.mxu0 %v1835
    %1855 = vmatpush1.bf16.msra.mxu0 %v1834
    %1856 = vmatprep.subr.bf16.mxu0 %v1839
    %1857 = vmatpush1.bf16.msra.mxu0 %v1838
    %1858 = vmatprep.subr.bf16.mxu0 0
    %1859 = vmatpush1.bf16.msra.mxu0 0
    %1860 = vmatprep.subr.bf16.mxu0 0
    %1861 = vmatpush1.bf16.msra.mxu0 0
    %1862 = vmatprep.subr.bf16.mxu0 0
    %1863 = vmatpush1.bf16.msra.mxu0 0
    %1864 = vmatprep.subr.bf16.mxu0 0
    %1865 = vmatpush1.bf16.msra.mxu0 0
    %1866 = vmatprep.subr.bf16.mxu0 0
    %1867 = vmatpush1.bf16.msra.mxu0 0
    %1868 = vmatprep.subr.bf16.mxu0 0
    %1869 = vmatpush1.bf16.msra.mxu0 0
    %1870 = vmatprep.subr.bf16.mxu0 0
    %1871 = vmatpush1.bf16.msra.mxu0 0
    %1872 = vmatprep.subr.bf16.mxu0 0
    %1873 = vmatpush1.bf16.msra.mxu0 0
    %1874 = vmatprep.mubr.bf16.mxu0 0
    %1875 = vmatmul.mubr.bf16.gmra.mrb[0].mxu0 %v1809
    %v1876 = vpop.f32.mrb[0].mxu0
    %v1877 = vadd.f32 0.0, %v1876
    %v1878 = vpop.f32.mrb[0].mxu0
    %v1879 = vadd.f32 0.0, %v1878
    %v1880 = vpop.f32.mrb[0].mxu0
    %v1881 = vpop.f32.mrb[0].mxu0
    %1882 = vdwg.mxu0
    %1883 = vmatprep.subr.bf16.mxu0 %v1813
    %1884 = vmatpush1.bf16.msra.mxu0 %v1812
    %1885 = vmatprep.subr.bf16.mxu0 %v1817
    %1886 = vmatpush1.bf16.msra.mxu0 %v1816
    %1887 = vmatprep.subr.bf16.mxu0 %v1821
    %1888 = vmatpush1.bf16.msra.mxu0 %v1820
    %1889 = vmatprep.subr.bf16.mxu0 %v1825
    %1890 = vmatpush1.bf16.msra.mxu0 %v1824
    %1891 = vmatprep.subr.bf16.mxu0 %v1829
    %1892 = vmatpush1.bf16.msra.mxu0 %v1828
    %1893 = vmatprep.subr.bf16.mxu0 %v1833
    %1894 = vmatpush1.bf16.msra.mxu0 %v1832
    %1895 = vmatprep.subr.bf16.mxu0 %v1837
    %1896 = vmatpush1.bf16.msra.mxu0 %v1836
    %1897 = vmatprep.subr.bf16.mxu0 %v1841
    %1898 = vmatpush1.bf16.msra.mxu0 %v1840
    %1899 = vmatprep.subr.bf16.mxu0 0
    %1900 = vmatpush1.bf16.msra.mxu0 0
    %1901 = vmatprep.subr.bf16.mxu0 0
    %1902 = vmatpush1.bf16.msra.mxu0 0
    %1903 = vmatprep.subr.bf16.mxu0 0
    %1904 = vmatpush1.bf16.msra.mxu0 0
    %1905 = vmatprep.subr.bf16.mxu0 0
    %1906 = vmatpush1.bf16.msra.mxu0 0
    %1907 = vmatprep.subr.bf16.mxu0 0
    %1908 = vmatpush1.bf16.msra.mxu0 0
    %1909 = vmatprep.subr.bf16.mxu0 0
    %1910 = vmatpush1.bf16.msra.mxu0 0
    %1911 = vmatprep.subr.bf16.mxu0 0
    %1912 = vmatpush1.bf16.msra.mxu0 0
    %1913 = vmatprep.subr.bf16.mxu0 0
    %1914 = vmatpush1.bf16.msra.mxu0 0
    %1915 = vmatprep.mubr.bf16.mxu0 0
    %1916 = vmatmul.mubr.bf16.gmra.mrb[0].mxu0 %v1809
    %v1917 = vpop.f32.mrb[0].mxu0
    %v1918 = vadd.f32 0.0, %v1917
    %v1919 = vpop.f32.mrb[0].mxu0
    %v1920 = vadd.f32 0.0, %v1919
    %v1921 = vpop.f32.mrb[0].mxu0
    %v1922 = vpop.f32.mrb[0].mxu0
    %1923 = vdwg.mxu0
    %v1924 = vadd.f32 %v1805, %v1877
    %v1925 = vadd.f32 %v1806, %v1879
    %v1926 = vadd.f32 %v1807, %v1918
    %v1927 = vadd.f32 %v1808, %v1920
    %v1928 = vxor.u32 %v1924, 2147483648
    %v1929 = vmul.f32 %v1928, 1.442695
    %v1930 = vpow.pop %v1929
    %v1931 = vadd.f32 %v1930, 1.0
    %v1932 = vrcp.pop %v1931
    %v1933 = vmul.f32 1.0, %v1932
    %v1934 = vxor.u32 %v1925, 2147483648
    %v1935 = vmul.f32 %v1934, 1.442695
    %v1936 = vpow.pop %v1935
    %v1937 = vadd.f32 %v1936, 1.0
    %v1938 = vrcp.pop %v1937
    %v1939 = vmul.f32 1.0, %v1938
    %v1940 = vtanh.pop %v1926
    %v1941 = vxor.u32 %v1927, 2147483648
    %v1942 = vmul.f32 %v1941, 1.442695
    %v1943 = vpow.pop %v1942
    %v1944 = vadd.f32 %v1943, 1.0
    %v1945 = vrcp.pop %v1944
    %v1946 = vmul.f32 1.0, %v1945
    %v1947 = vld [vmem:[#allocation6] sm:$0xff]
    %v1948 = vmul.f32 %v1939, %v1947
    %v1949 = vmul.f32 %v1933, %v1940
    %v1950 = vadd.f32 %v1948, %v1949
    %v1951 = vtanh.pop %v1950
    %v1952 = vmul.f32 %v1946, %v1951
    %1953 = vst [vmem:[#allocation6] sm:$0xff] %v1950
    %v1954 = vpack.c.bf16 %v1952, %v1952
    %1955 = vst [vmem:[#allocation5] sm:$0xf] %v1954
    %s1956 = scalar_lea.vmem %s4, 48
    %1957 = vst [vmem:[%s1956] sm:$0xff] %v1952
    %s1958 = scalar_lea.vmem [#allocation4], 224
    %v1959 = vld [vmem:[%s1958] sm:$0xff]
    %v1960 = vld [vmem:[%s1958 + $0x8] sm:$0xff]
    %v1961 = vld [vmem:[%s1958 + $0x10] sm:$0xff]
    %v1962 = vld [vmem:[%s1958 + $0x18] sm:$0xff]
    %v1963 = vld [vmem:[#allocation5] sm:$0xf]
    %v1964 = vld [vmem:[#allocation3] sm:$0xff]
    %v1965 = vld [vmem:[#allocation3 + $0x8] sm:$0xff]
    %v1966 = vld [vmem:[#allocation3 + $0x10] sm:$0xff]
    %v1967 = vld [vmem:[#allocation3 + $0x18] sm:$0xff]
    %v1968 = vld [vmem:[#allocation3 + $0x20] sm:$0xff]
    %v1969 = vld [vmem:[#allocation3 + $0x28] sm:$0xff]
    %v1970 = vld [vmem:[#allocation3 + $0x30] sm:$0xff]
    %v1971 = vld [vmem:[#allocation3 + $0x38] sm:$0xff]
    %v1972 = vld [vmem:[#allocation3 + $0x40] sm:$0xff]
    %v1973 = vld [vmem:[#allocation3 + $0x48] sm:$0xff]
    %v1974 = vld [vmem:[#allocation3 + $0x50] sm:$0xff]
    %v1975 = vld [vmem:[#allocation3 + $0x58] sm:$0xff]
    %v1976 = vld [vmem:[#allocation3 + $0x60] sm:$0xff]
    %v1977 = vld [vmem:[#allocation3 + $0x68] sm:$0xff]
    %v1978 = vld [vmem:[#allocation3 + $0x70] sm:$0xff]
    %v1979 = vld [vmem:[#allocation3 + $0x78] sm:$0xff]
    %v1980 = vld [vmem:[#allocation3 + $0x80] sm:$0xff]
    %v1981 = vld [vmem:[#allocation3 + $0x88] sm:$0xff]
    %v1982 = vld [vmem:[#allocation3 + $0x90] sm:$0xff]
    %v1983 = vld [vmem:[#allocation3 + $0x98] sm:$0xff]
    %v1984 = vld [vmem:[#allocation3 + $0xa0] sm:$0xff]
    %v1985 = vld [vmem:[#allocation3 + $0xa8] sm:$0xff]
    %v1986 = vld [vmem:[#allocation3 + $0xb0] sm:$0xff]
    %v1987 = vld [vmem:[#allocation3 + $0xb8] sm:$0xff]
    %v1988 = vld [vmem:[#allocation3 + $0xc0] sm:$0xff]
    %v1989 = vld [vmem:[#allocation3 + $0xc8] sm:$0xff]
    %v1990 = vld [vmem:[#allocation3 + $0xd0] sm:$0xff]
    %v1991 = vld [vmem:[#allocation3 + $0xd8] sm:$0xff]
    %v1992 = vld [vmem:[#allocation3 + $0xe0] sm:$0xff]
    %v1993 = vld [vmem:[#allocation3 + $0xe8] sm:$0xff]
    %v1994 = vld [vmem:[#allocation3 + $0xf0] sm:$0xff]
    %v1995 = vld [vmem:[#allocation3 + $0xf8] sm:$0xff]
    %1996 = vmatprep.subr.bf16.mxu0 %v1965
    %1997 = vmatpush1.bf16.msra.mxu0 %v1964
    %1998 = vmatprep.subr.bf16.mxu0 %v1969
    %1999 = vmatpush1.bf16.msra.mxu0 %v1968
    %2000 = vmatprep.subr.bf16.mxu0 %v1973
    %2001 = vmatpush1.bf16.msra.mxu0 %v1972
    %2002 = vmatprep.subr.bf16.mxu0 %v1977
    %2003 = vmatpush1.bf16.msra.mxu0 %v1976
    %2004 = vmatprep.subr.bf16.mxu0 %v1981
    %2005 = vmatpush1.bf16.msra.mxu0 %v1980
    %2006 = vmatprep.subr.bf16.mxu0 %v1985
    %2007 = vmatpush1.bf16.msra.mxu0 %v1984
    %2008 = vmatprep.subr.bf16.mxu0 %v1989
    %2009 = vmatpush1.bf16.msra.mxu0 %v1988
    %2010 = vmatprep.subr.bf16.mxu0 %v1993
    %2011 = vmatpush1.bf16.msra.mxu0 %v1992
    %2012 = vmatprep.subr.bf16.mxu0 0
    %2013 = vmatpush1.bf16.msra.mxu0 0
    %2014 = vmatprep.subr.bf16.mxu0 0
    %2015 = vmatpush1.bf16.msra.mxu0 0
    %2016 = vmatprep.subr.bf16.mxu0 0
    %2017 = vmatpush1.bf16.msra.mxu0 0
    %2018 = vmatprep.subr.bf16.mxu0 0
    %2019 = vmatpush1.bf16.msra.mxu0 0
    %2020 = vmatprep.subr.bf16.mxu0 0
    %2021 = vmatpush1.bf16.msra.mxu0 0
    %2022 = vmatprep.subr.bf16.mxu0 0
    %2023 = vmatpush1.bf16.msra.mxu0 0
    %2024 = vmatprep.subr.bf16.mxu0 0
    %2025 = vmatpush1.bf16.msra.mxu0 0
    %2026 = vmatprep.subr.bf16.mxu0 0
    %2027 = vmatpush1.bf16.msra.mxu0 0
    %2028 = vmatprep.mubr.bf16.mxu0 0
    %2029 = vmatmul.mubr.bf16.gmra.mrb[0].mxu0 %v1963
    %v2030 = vpop.f32.mrb[0].mxu0
    %v2031 = vadd.f32 0.0, %v2030
    %v2032 = vpop.f32.mrb[0].mxu0
    %v2033 = vadd.f32 0.0, %v2032
    %v2034 = vpop.f32.mrb[0].mxu0
    %v2035 = vpop.f32.mrb[0].mxu0
    %2036 = vdwg.mxu0
    %2037 = vmatprep.subr.bf16.mxu0 %v1967
    %2038 = vmatpush1.bf16.msra.mxu0 %v1966
    %2039 = vmatprep.subr.bf16.mxu0 %v1971
    %2040 = vmatpush1.bf16.msra.mxu0 %v1970
    %2041 = vmatprep.subr.bf16.mxu0 %v1975
    %2042 = vmatpush1.bf16.msra.mxu0 %v1974
    %2043 = vmatprep.subr.bf16.mxu0 %v1979
    %2044 = vmatpush1.bf16.msra.mxu0 %v1978
    %2045 = vmatprep.subr.bf16.mxu0 %v1983
    %2046 = vmatpush1.bf16.msra.mxu0 %v1982
    %2047 = vmatprep.subr.bf16.mxu0 %v1987
    %2048 = vmatpush1.bf16.msra.mxu0 %v1986
    %2049 = vmatprep.subr.bf16.mxu0 %v1991
    %2050 = vmatpush1.bf16.msra.mxu0 %v1990
    %2051 = vmatprep.subr.bf16.mxu0 %v1995
    %2052 = vmatpush1.bf16.msra.mxu0 %v1994
    %2053 = vmatprep.subr.bf16.mxu0 0
    %2054 = vmatpush1.bf16.msra.mxu0 0
    %2055 = vmatprep.subr.bf16.mxu0 0
    %2056 = vmatpush1.bf16.msra.mxu0 0
    %2057 = vmatprep.subr.bf16.mxu0 0
    %2058 = vmatpush1.bf16.msra.mxu0 0
    %2059 = vmatprep.subr.bf16.mxu0 0
    %2060 = vmatpush1.bf16.msra.mxu0 0
    %2061 = vmatprep.subr.bf16.mxu0 0
    %2062 = vmatpush1.bf16.msra.mxu0 0
    %2063 = vmatprep.subr.bf16.mxu0 0
    %2064 = vmatpush1.bf16.msra.mxu0 0
    %2065 = vmatprep.subr.bf16.mxu0 0
    %2066 = vmatpush1.bf16.msra.mxu0 0
    %2067 = vmatprep.subr.bf16.mxu0 0
    %2068 = vmatpush1.bf16.msra.mxu0 0
    %2069 = vmatprep.mubr.bf16.mxu0 0
    %2070 = vmatmul.mubr.bf16.gmra.mrb[0].mxu0 %v1963
    %v2071 = vpop.f32.mrb[0].mxu0
    %v2072 = vadd.f32 0.0, %v2071
    %v2073 = vpop.f32.mrb[0].mxu0
    %v2074 = vadd.f32 0.0, %v2073
    %v2075 = vpop.f32.mrb[0].mxu0
    %v2076 = vpop.f32.mrb[0].mxu0
    %2077 = vdwg.mxu0
    %v2078 = vadd.f32 %v1959, %v2031
    %v2079 = vadd.f32 %v1960, %v2033
    %v2080 = vadd.f32 %v1961, %v2072
    %v2081 = vadd.f32 %v1962, %v2074
    %v2082 = vxor.u32 %v2078, 2147483648
    %v2083 = vmul.f32 %v2082, 1.442695
    %v2084 = vpow.pop %v2083
    %v2085 = vadd.f32 %v2084, 1.0
    %v2086 = vrcp.pop %v2085
    %v2087 = vmul.f32 1.0, %v2086
    %v2088 = vxor.u32 %v2079, 2147483648
    %v2089 = vmul.f32 %v2088, 1.442695
    %v2090 = vpow.pop %v2089
    %v2091 = vadd.f32 %v2090, 1.0
    %v2092 = vrcp.pop %v2091
    %v2093 = vmul.f32 1.0, %v2092
    %v2094 = vtanh.pop %v2080
    %v2095 = vxor.u32 %v2081, 2147483648
    %v2096 = vmul.f32 %v2095, 1.442695
    %v2097 = vpow.pop %v2096
    %v2098 = vadd.f32 %v2097, 1.0
    %v2099 = vrcp.pop %v2098
    %v2100 = vmul.f32 1.0, %v2099
    %v2101 = vld [vmem:[#allocation6] sm:$0xff]
    %v2102 = vmul.f32 %v2093, %v2101
    %v2103 = vmul.f32 %v2087, %v2094
    %v2104 = vadd.f32 %v2102, %v2103
    %v2105 = vtanh.pop %v2104
    %v2106 = vmul.f32 %v2100, %v2105
    %2107 = vst [vmem:[#allocation6] sm:$0xff] %v2104
    %v2108 = vpack.c.bf16 %v2106, %v2106
    %2109 = vst [vmem:[#allocation5] sm:$0xf] %v2108
    %s2110 = scalar_lea.vmem %s4, 56
    %2111 = vst [vmem:[%s2110] sm:$0xff] %v2106
    %v2112 = vld [vmem:[#allocation6] sm:$0xff]
    %2113 = vst [vmem:[#allocation8] sm:$0xff] %v2112
    // Predicated region
    $region88: #{lstm_forward.1} parent=1 // pred_check
      _
    $region89: #{lstm_forward.1} parent=1 // pred_check_branch
      %2115 = sbr.rel (0) target = $region91
    $region90: #{lstm_forward.1} parent=1 // pred_region
      _
    $region91: #{lstm_forward.1} parent=1 // pred_fallthru
      _
    // Predicated region
    $region92: #{lstm_forward.1} parent=1 // pred_check
      _
    $region93: #{lstm_forward.1} parent=1 // pred_check_branch
      %2117 = sbr.rel (0) target = $region95
    $region94: #{lstm_forward.1} parent=1 // pred_region
      %s2119 = ssub.s32 128, 128
      %2120 = vsyncadd [#allocation9], %s2119
      %s2122 = sshll.u32 [#allocation8], 4
      %s2123 = int_to_ptr.vmem [resolvable:$true] %s2122
      %2125 = dma.vmem_to_hbm [thread:$0]  %s2123, 128, %s5, [#allocation9]
    $region95: #{lstm_forward.1} parent=1 // pred_fallthru
      _
    // Predicated region
    $region96: #{lstm_forward.1} parent=1 // pred_check
      _
    $region97: #{lstm_forward.1} parent=1 // pred_check_branch
      %2127 = sbr.rel (0) target = $region99
    $region98: #{lstm_forward.1} parent=1 // pred_region
      _
    $region99: #{lstm_forward.1} parent=1 // pred_fallthru
      _
    // Predicated region
    $region100: #{lstm_forward.1} parent=1 // pred_check
      _
    $region101: #{lstm_forward.1} parent=1 // pred_check_branch
      %2129 = sbr.rel (0) target = $region103
    $region102: #{lstm_forward.1} parent=1 // pred_region
      %2130 = dma.done [#allocation9], 128
    $region103: #{lstm_forward.1} parent=1 // pred_fallthru
      _
    %2131 = vsyncpa [#allocation9], 1
  %2132 = vsyncmov [#allocation7]
  %s2133 = vpop.sfrf %2132
  %p2134 = scmp.eq.s32.totalorder %s2133, 0
  %p2135 = pneg %p2134
  %2137 = shalt.err (%p2135)
  %s2138 = scalar_lea.sflag [#allocation7], 1
  %2139 = vsyncmov %s2138
  %s2140 = vpop.sfrf %2139
  %p2141 = scmp.eq.s32.totalorder %s2140, 0
  %p2142 = pneg %p2141
  %2144 = shalt.err (%p2142)

</llo_original>
